<compile_context>
chip_gen: v7x
topology: tpu7x:2x2x1
jax: 0.10.0
libtpu: 0.0.40
codegen_flags: <defaults>
</compile_context>

<pallas_src>
import functools

import jax
import jax.numpy as jnp
import numpy as np
from jax.experimental import pallas as pl
from jax.experimental.pallas import tpu as pltpu


def _round_up(v, m):
    return ((v + m - 1) // m) * m


def gru_teach_kernel(y_ref, m_ref, x_ref,
                     wmu1_ref, bmu1_ref, wmu2_ref, bmu2_ref,
                     wihy_ref, wihm_ref, bih_ref, whh_ref, bhh_ref,
                     wl1_ref, bl1_ref, wl2_ref, bl2_ref,
                     wc1_ref, bc1_ref, wc2_ref, bc2_ref,
                     out_ref, cls_ref,
                     h_s, pred_s, gi_s,
                     *, tc, tail):
    f32 = jnp.float32
    bf16 = jnp.bfloat16
    Bp = x_ref.shape[0]            # padded batch (multiple of 8 sublanes)
    Y = y_ref.shape[1]             # y_dim (lane dim of y / mask / output)
    Lp = whh_ref.shape[0]          # lane-padded latent size (multiple of 128)
    i = pl.program_id(0)
    n_chunks = pl.num_programs(0)

    # ---- one-time encoder: h0 = mu = Linear(tanh(Linear(x))) (eval reparam) --
    @pl.when(i == 0)
    def _():
        xe = x_ref[...].astype(bf16)
        hmu = jnp.tanh(jnp.dot(xe, wmu1_ref[...], preferred_element_type=f32)
                       + bmu1_ref[...])
        h_s[...] = (jnp.dot(hmu.astype(bf16), wmu2_ref[...],
                            preferred_element_type=f32) + bmu2_ref[...])
        pred_s[...] = jnp.zeros(pred_s.shape, f32)

    # ---- batched precompute of the mask-dependent input projection ----------
    # gi_pre[t] = (m_t*y_t)@Wy + m_t@Wm + b_ih  for every step of this chunk,
    # computed as one MXU-efficient (tc*Bp, Y) @ (Y, 3Lp) matmul pair.
    y_blk = y_ref[...]                                    # (tc*Bp, Y) f32
    m_blk = m_ref[...]                                    # (tc*Bp, Y) f32
    gi_s[...] = (jnp.dot((m_blk * y_blk).astype(bf16), wihy_ref[...],
                         preferred_element_type=f32)
                 + jnp.dot(m_blk.astype(bf16), wihm_ref[...],
                           preferred_element_type=f32)
                 + bih_ref[...])

    # ---- hoisted bias broadcasts (JAX does not CSE broadcast_in_dim) --------
    bhh_b = jnp.broadcast_to(bhh_ref[...], (Bp, 3 * Lp))
    bl1_b = jnp.broadcast_to(bl1_ref[...], (Bp, Lp))
    bl2_b = jnp.broadcast_to(bl2_ref[...], (Bp, Y))

    h = h_s[...]                                          # (Bp, Lp) f32
    pred = pred_s[...]                                    # (Bp, Y)  f32

    if tail < tc:
        # Guard for zero-padded trailing time steps of the last chunk: freeze h.
        not_last = (i < n_chunks - 1).astype(f32)

    # ---- teacher-forced GRU rollout over this time chunk (fully unrolled) ---
    for tt in range(tc):
        r0 = tt * Bp                                      # static, sublane-aligned
        m_t = m_ref[r0:r0 + Bp, :]                        # (Bp, Y)
        yres = (1.0 - m_t) * pred                         # unmasked entries use pred
        gi = gi_s[r0:r0 + Bp, :] + jnp.dot(yres.astype(bf16), wihy_ref[...],
                                           preferred_element_type=f32)
        gh = jnp.dot(h.astype(bf16), whh_ref[...],
                     preferred_element_type=f32) + bhh_b
        # Gate slices are 128-lane aligned (Lp is a multiple of 128).
        r = jax.nn.sigmoid(gi[:, :Lp] + gh[:, :Lp])
        z = jax.nn.sigmoid(gi[:, Lp:2 * Lp] + gh[:, Lp:2 * Lp])
        n = jnp.tanh(gi[:, 2 * Lp:] + r * gh[:, 2 * Lp:])
        h_new = (1.0 - z) * n + z * h

        # per-step decoder: output_t = layer2(tanh(layer1(h)))
        d1 = jnp.tanh(jnp.dot(h_new.astype(bf16), wl1_ref[...],
                              preferred_element_type=f32) + bl1_b)
        pred = jnp.dot(d1.astype(bf16), wl2_ref[...],
                       preferred_element_type=f32) + bl2_b
        out_ref[r0:r0 + Bp, :] = pred

        if tt < tail:
            h = h_new
        else:
            h = not_last * h_new + (1.0 - not_last) * h

    h_s[...] = h
    pred_s[...] = pred

    # ---- classifier head (one-time, last chunk) ------------------------------
    @pl.when(i == n_chunks - 1)
    def _():
        c = jax.nn.relu(jnp.dot(h.astype(bf16), wc1_ref[...],
                                preferred_element_type=f32) + bc1_ref[...])
        # N=1 projection as a VPU multiply + lane reduction (avoids an MXU pass).
        cls_ref[...] = (jnp.sum(c * wc2_ref[...], axis=1, keepdims=True)
                        + bc2_ref[...])


def init_params(key, x_dim, y_dim, latents=100):
    """Deterministic parameter init mimicking PyTorch's U(-1/sqrt(fan_in), ...)."""
    def linear(key, in_f, out_f):
        k1, k2 = jax.random.split(key)
        bound = 1.0 / np.sqrt(in_f)
        w = jax.random.uniform(k1, (out_f, in_f), jnp.float32, -bound, bound)
        b = jax.random.uniform(k2, (out_f,), jnp.float32, -bound, bound)
        return w, b

    keys = jax.random.split(key, 10)
    p = {}
    p['w_mu1'], p['b_mu1'] = linear(keys[0], x_dim, 100)
    p['w_mu2'], p['b_mu2'] = linear(keys[1], 100, latents)
    p['w_sig1'], p['b_sig1'] = linear(keys[2], x_dim, 100)        # unused (eval mode)
    p['w_sig2'], p['b_sig2'] = linear(keys[3], 100, latents)      # unused (eval mode)
    # GRUCell(2*y_dim, latents): weight_ih (3L, 2Y), weight_hh (3L, L)
    bound = 1.0 / np.sqrt(latents)
    k = jax.random.split(keys[4], 4)
    p['w_ih'] = jax.random.uniform(k[0], (3 * latents, 2 * y_dim), jnp.float32, -bound, bound)
    p['w_hh'] = jax.random.uniform(k[1], (3 * latents, latents), jnp.float32, -bound, bound)
    p['b_ih'] = jax.random.uniform(k[2], (3 * latents,), jnp.float32, -bound, bound)
    p['b_hh'] = jax.random.uniform(k[3], (3 * latents,), jnp.float32, -bound, bound)
    p['w_l1'], p['b_l1'] = linear(keys[5], latents, latents)
    p['w_l2'], p['b_l2'] = linear(keys[6], latents, y_dim)
    p['w_c1'], p['b_c1'] = linear(keys[7], latents, 50)
    p['w_c2'], p['b_c2'] = linear(keys[8], 50, 1)
    return p


@jax.jit
def gru_teach_forward(x, y, y_mask, params):
    """Pallas forward.  x: (B, x_dim); y, y_mask: (B, y_dim, T).

    Returns (output (B, y_dim, T), out_class (B,)) — matching the PyTorch module.
    """
    B, Y, T = y.shape
    L = params['w_hh'].shape[1]
    Lp = _round_up(L, 128)            # lane-aligned latent size (per gate)
    Bp = _round_up(B, 8)              # sublane-aligned batch
    Tc = min(T, 8)                    # time-chunk (fully unrolled inside kernel)
    n_chunks = -(-T // Tc)
    Tpad = n_chunks * Tc
    tail = T - (n_chunks - 1) * Tc    # valid steps in the last chunk

    f32 = jnp.float32
    bf16 = jnp.bfloat16

    def gate_cols(w):                 # (3L, n_in) -> (n_in, 3*Lp), per-gate blocks
        n_in = w.shape[1]
        out = jnp.zeros((n_in, 3 * Lp), f32)
        for g in range(3):
            out = out.at[:, g * Lp:g * Lp + L].set(w[g * L:(g + 1) * L, :].T)
        return out

    def gate_bias(b):                 # (3L,) -> (1, 3*Lp)
        out = jnp.zeros((1, 3 * Lp), f32)
        for g in range(3):
            out = out.at[0, g * Lp:g * Lp + L].set(b[g * L:(g + 1) * L])
        return out

    def pad2(w, rows, cols):
        return jnp.pad(w, ((0, rows - w.shape[0]), (0, cols - w.shape[1])))

    # GRUCell input interleaving stack((y, mask), dim=2).view(B, 2Y) is folded
    # into the weights: even columns act on y, odd columns act on the mask.
    w_ih_y = params['w_ih'][:, 0::2]
    w_ih_m = params['w_ih'][:, 1::2]

    wihy = gate_cols(w_ih_y).astype(bf16)                          # (Y, 3Lp)
    wihm = gate_cols(w_ih_m).astype(bf16)                          # (Y, 3Lp)
    whh = pad2(gate_cols(params['w_hh']), Lp, 3 * Lp).astype(bf16)  # (Lp, 3Lp)
    bih = gate_bias(params['b_ih'])                                # (1, 3Lp)
    bhh = gate_bias(params['b_hh'])                                # (1, 3Lp)

    wmu1 = params['w_mu1'].T.astype(bf16)                          # (x_dim, 100)
    bmu1 = params['b_mu1'].reshape(1, -1).astype(f32)
    wmu2_t = params['w_mu2'].T                                     # (100, L)
    wmu2 = pad2(wmu2_t, wmu2_t.shape[0], Lp).astype(bf16)          # (100, Lp)
    bmu2 = pad2(params['b_mu2'].reshape(1, -1), 1, Lp)
    wl1 = pad2(params['w_l1'].T, Lp, Lp).astype(bf16)              # (Lp, Lp)
    bl1 = pad2(params['b_l1'].reshape(1, -1), 1, Lp)
    wl2 = pad2(params['w_l2'].T, Lp, Y).astype(bf16)               # (Lp, Y)
    bl2 = params['b_l2'].reshape(1, -1).astype(f32)
    wc1_t = params['w_c1'].T                                       # (L, 50)
    wc1 = pad2(wc1_t, Lp, wc1_t.shape[1]).astype(bf16)             # (Lp, 50)
    bc1 = params['b_c1'].reshape(1, -1).astype(f32)
    wc2 = params['w_c2'].reshape(1, -1).astype(f32)                # (1, 50)
    bc2 = params['b_c2'].reshape(1, 1).astype(f32)

    # Data: (B, Y, T) -> (Tpad, Bp, Y) -> row-major (Tpad*Bp, Y) slabs.
    x_p = jnp.pad(x.astype(f32), ((0, Bp - B), (0, 0)))
    y_t = jnp.pad(jnp.transpose(y.astype(f32), (2, 0, 1)),
                  ((0, Tpad - T), (0, Bp - B), (0, 0)))
    m_t = jnp.pad(jnp.transpose(y_mask.astype(f32), (2, 0, 1)),
                  ((0, Tpad - T), (0, Bp - B), (0, 0)))
    y2 = y_t.reshape(Tpad * Bp, Y)
    m2 = m_t.reshape(Tpad * Bp, Y)

    chunk_spec = pl.BlockSpec((Tc * Bp, Y), lambda i: (i, 0))
    full = lambda a: pl.BlockSpec(a.shape, lambda i: (0, 0))

    const_inputs = [x_p, wmu1, bmu1, wmu2, bmu2, wihy, wihm, bih, whh, bhh,
                    wl1, bl1, wl2, bl2, wc1, bc1, wc2, bc2]

    out2, cls = pl.pallas_call(
        functools.partial(gru_teach_kernel, tc=Tc, tail=tail),
        grid=(n_chunks,),
        out_shape=(jax.ShapeDtypeStruct((Tpad * Bp, Y), f32),
                   jax.ShapeDtypeStruct((Bp, 1), f32)),
        in_specs=[chunk_spec, chunk_spec] + [full(a) for a in const_inputs],
        out_specs=(chunk_spec, pl.BlockSpec((Bp, 1), lambda i: (0, 0))),
        scratch_shapes=[pltpu.VMEM((Bp, Lp), f32),          # h carried over chunks
                        pltpu.VMEM((Bp, Y), f32),           # previous prediction
                        pltpu.VMEM((Tc * Bp, 3 * Lp), f32)],  # per-chunk gi_pre
        compiler_params=pltpu.CompilerParams(
            dimension_semantics=("arbitrary",)),
    )(y2, m2, *const_inputs)

    output = jnp.transpose(out2.reshape(Tpad, Bp, Y)[:T, :B, :], (1, 2, 0))
    out_class = cls[:B, 0]
    return output, out_class


def gru_teach_reference(x, y, y_mask, p):
    """Pure-JAX f32 reference with the exact PyTorch interleaving (verification)."""
    x = x.astype(jnp.float32)
    h = (jnp.tanh(x @ p['w_mu1'].T + p['b_mu1']) @ p['w_mu2'].T + p['b_mu2'])
    B, Y, T = y.shape
    L = h.shape[1]
    y_in = jnp.zeros((B, Y), jnp.float32)
    outs = []
    for t in range(T):
        m_t = y_mask[:, :, t]
        y_in = jnp.where(m_t, y[:, :, t], y_in)
        inter = jnp.stack([y_in, m_t.astype(jnp.float32)], axis=2).reshape(B, 2 * Y)
        gi = inter @ p['w_ih'].T + p['b_ih']
        gh = h @ p['w_hh'].T + p['b_hh']
        r = jax.nn.sigmoid(gi[:, :L] + gh[:, :L])
        z = jax.nn.sigmoid(gi[:, L:2 * L] + gh[:, L:2 * L])
        n = jnp.tanh(gi[:, 2 * L:] + r * gh[:, 2 * L:])
        h = (1.0 - z) * n + z * h
        pred = jnp.tanh(h @ p['w_l1'].T + p['b_l1']) @ p['w_l2'].T + p['b_l2']
        outs.append(pred)
        y_in = pred
    output = jnp.stack(outs, axis=2)
    cls = jax.nn.relu(h @ p['w_c1'].T + p['b_c1']) @ p['w_c2'].T + p['b_c2']
    return output, cls[:, 0]


if __name__ == "__main__":
    B, X_DIM, Y_DIM, T, LATENTS = 4, 16, 8, 6, 32

    key = jax.random.PRNGKey(0)
    kx, ky, km, kp = jax.random.split(key, 4)

    x = jax.random.normal(kx, (B, X_DIM), jnp.float32)
    y = jax.random.normal(ky, (B, Y_DIM, T), jnp.float32)
    y_mask = jax.random.bernoulli(km, 0.6, (B, Y_DIM, T))   # bool, like PyTorch mask

    params = init_params(kp, X_DIM, Y_DIM, latents=LATENTS)

    output, out_class = gru_teach_forward(x, y, y_mask, params)
    jax.block_until_ready((output, out_class))

    ref_out, ref_cls = gru_teach_reference(x, y, y_mask, params)
    # bf16 MXU operands (f32 accumulation) -> slightly looser tolerance than f32.
    np.testing.assert_allclose(np.asarray(output), np.asarray(ref_out),
                               rtol=2e-2, atol=2e-2)
    np.testing.assert_allclose(np.asarray(out_class), np.asarray(ref_cls),
                               rtol=2e-2, atol=2e-2)

    assert output.shape == (B, Y_DIM, T)
    assert out_class.shape == (B,)
    print("KERNEL_OK")
</pallas_src>

<mosaic_0001>
module attributes {stable_mosaic.version = 11 : i64} {
  func.func @gru_teach_kernel(%arg0: i32, %arg1: memref<48x8xf32, #tpu.memory_space<vmem>>, %arg2: memref<48x8xf32, #tpu.memory_space<vmem>>, %arg3: memref<8x16xf32, #tpu.memory_space<vmem>>, %arg4: memref<16x100xbf16, #tpu.memory_space<vmem>>, %arg5: memref<1x100xf32, #tpu.memory_space<vmem>>, %arg6: memref<100x128xbf16, #tpu.memory_space<vmem>>, %arg7: memref<1x128xf32, #tpu.memory_space<vmem>>, %arg8: memref<8x384xbf16, #tpu.memory_space<vmem>>, %arg9: memref<8x384xbf16, #tpu.memory_space<vmem>>, %arg10: memref<1x384xf32, #tpu.memory_space<vmem>>, %arg11: memref<128x384xbf16, #tpu.memory_space<vmem>>, %arg12: memref<1x384xf32, #tpu.memory_space<vmem>>, %arg13: memref<128x128xbf16, #tpu.memory_space<vmem>>, %arg14: memref<1x128xf32, #tpu.memory_space<vmem>>, %arg15: memref<128x8xbf16, #tpu.memory_space<vmem>>, %arg16: memref<1x8xf32, #tpu.memory_space<vmem>>, %arg17: memref<128x50xbf16, #tpu.memory_space<vmem>>, %arg18: memref<1x50xf32, #tpu.memory_space<vmem>>, %arg19: memref<1x50xf32, #tpu.memory_space<vmem>>, %arg20: memref<1x1xf32, #tpu.memory_space<vmem>>, %arg21: memref<48x8xf32, #tpu.memory_space<vmem>>, %arg22: memref<8x1xf32, #tpu.memory_space<vmem>>, %arg23: memref<8x128xf32, #tpu.memory_space<vmem>>, %arg24: memref<8x8xf32, #tpu.memory_space<vmem>>, %arg25: memref<48x384xf32, #tpu.memory_space<vmem>>) attributes {dimension_semantics = [#tpu.dimension_semantics<arbitrary>], iteration_bounds = array<i64: 1>, scalar_prefetch = 0 : i64, scratch_operands = 3 : i64, tpu.core_type = #tpu.core_type<tc>, window_params = [{transform_indices = @transform_0, window_bounds = array<i64: 48, 8>}, {transform_indices = @transform_1, window_bounds = array<i64: 48, 8>}, {pipeline_mode = #tpu.pipeline_mode<synchronous>, transform_indices = @transform_2, window_bounds = array<i64: 8, 16>}, {pipeline_mode = #tpu.pipeline_mode<synchronous>, transform_indices = @transform_3, window_bounds = array<i64: 16, 100>}, {pipeline_mode = #tpu.pipeline_mode<synchronous>, transform_indices = @transform_4, window_bounds = array<i64: 1, 100>}, {pipeline_mode = #tpu.pipeline_mode<synchronous>, transform_indices = @transform_5, window_bounds = array<i64: 100, 128>}, {pipeline_mode = #tpu.pipeline_mode<synchronous>, transform_indices = @transform_6, window_bounds = array<i64: 1, 128>}, {pipeline_mode = #tpu.pipeline_mode<synchronous>, transform_indices = @transform_7, window_bounds = array<i64: 8, 384>}, {pipeline_mode = #tpu.pipeline_mode<synchronous>, transform_indices = @transform_8, window_bounds = array<i64: 8, 384>}, {pipeline_mode = #tpu.pipeline_mode<synchronous>, transform_indices = @transform_9, window_bounds = array<i64: 1, 384>}, {pipeline_mode = #tpu.pipeline_mode<synchronous>, transform_indices = @transform_10, window_bounds = array<i64: 128, 384>}, {pipeline_mode = #tpu.pipeline_mode<synchronous>, transform_indices = @transform_11, window_bounds = array<i64: 1, 384>}, {pipeline_mode = #tpu.pipeline_mode<synchronous>, transform_indices = @transform_12, window_bounds = array<i64: 128, 128>}, {pipeline_mode = #tpu.pipeline_mode<synchronous>, transform_indices = @transform_13, window_bounds = array<i64: 1, 128>}, {pipeline_mode = #tpu.pipeline_mode<synchronous>, transform_indices = @transform_14, window_bounds = array<i64: 128, 8>}, {pipeline_mode = #tpu.pipeline_mode<synchronous>, transform_indices = @transform_15, window_bounds = array<i64: 1, 8>}, {pipeline_mode = #tpu.pipeline_mode<synchronous>, transform_indices = @transform_16, window_bounds = array<i64: 128, 50>}, {pipeline_mode = #tpu.pipeline_mode<synchronous>, transform_indices = @transform_17, window_bounds = array<i64: 1, 50>}, {pipeline_mode = #tpu.pipeline_mode<synchronous>, transform_indices = @transform_18, window_bounds = array<i64: 1, 50>}, {pipeline_mode = #tpu.pipeline_mode<synchronous>, transform_indices = @transform_19, window_bounds = array<i64: 1, 1>}, {transform_indices = @transform_20, window_bounds = array<i64: 48, 8>}, {pipeline_mode = #tpu.pipeline_mode<synchronous>, transform_indices = @transform_21, window_bounds = array<i64: 8, 1>}]} {
    %c0_i32 = arith.constant 0 : i32
    %0 = arith.cmpi eq, %arg0, %c0_i32 : i32
    %1 = arith.extui %0 : i1 to i32
    %c0_i32_0 = arith.constant 0 : i32
    %2 = arith.cmpi ne, %1, %c0_i32_0 : i32
    scf.if %2 {
      %c0_156 = arith.constant 0 : index
      %c0_157 = arith.constant 0 : index
      %327 = vector.load %arg3[%c0_156, %c0_157] : memref<8x16xf32, #tpu.memory_space<vmem>>, vector<8x16xf32>
      %328 = arith.truncf %327 : vector<8x16xf32> to vector<8x16xbf16>
      %c0_158 = arith.constant 0 : index
      %c0_159 = arith.constant 0 : index
      %329 = vector.load %arg4[%c0_158, %c0_159] : memref<16x100xbf16, #tpu.memory_space<vmem>>, vector<16x100xbf16>
      %cst_160 = arith.constant dense<0.000000e+00> : vector<8x100xf32>
      %330 = tpu.matmul %328, %329, %cst_160 {dimension_numbers = #tpu.dot_dimension_numbers<[1], [0], [0], [1], [0, 0, 1, 1], [], []>} : vector<8x16xbf16>, vector<16x100xbf16>, vector<8x100xf32> -> vector<8x100xf32>
      %c0_161 = arith.constant 0 : index
      %c0_162 = arith.constant 0 : index
      %331 = vector.load %arg5[%c0_161, %c0_162] : memref<1x100xf32, #tpu.memory_space<vmem>>, vector<1x100xf32>
      %332 = vector.broadcast %331 : vector<1x100xf32> to vector<8x100xf32>
      %333 = arith.addf %330, %332 : vector<8x100xf32>
      %334 = math.tanh %333 : vector<8x100xf32>
      %335 = arith.truncf %334 : vector<8x100xf32> to vector<8x100xbf16>
      %c0_163 = arith.constant 0 : index
      %c0_164 = arith.constant 0 : index
      %336 = vector.load %arg6[%c0_163, %c0_164] : memref<100x128xbf16, #tpu.memory_space<vmem>>, vector<100x128xbf16>
      %cst_165 = arith.constant dense<0.000000e+00> : vector<8x128xf32>
      %337 = tpu.matmul %335, %336, %cst_165 {dimension_numbers = #tpu.dot_dimension_numbers<[1], [0], [0], [1], [0, 0, 1, 1], [], []>} : vector<8x100xbf16>, vector<100x128xbf16>, vector<8x128xf32> -> vector<8x128xf32>
      %c0_166 = arith.constant 0 : index
      %c0_167 = arith.constant 0 : index
      %338 = vector.load %arg7[%c0_166, %c0_167] : memref<1x128xf32, #tpu.memory_space<vmem>>, vector<1x128xf32>
      %339 = vector.broadcast %338 : vector<1x128xf32> to vector<8x128xf32>
      %340 = arith.addf %337, %339 : vector<8x128xf32>
      %c0_168 = arith.constant 0 : index
      %c0_169 = arith.constant 0 : index
      %341 = vector.load %arg23[%c0_168, %c0_169] : memref<8x128xf32, #tpu.memory_space<vmem>>, vector<8x128xf32>
      tpu.vector_store %arg23[%c0_168, %c0_169], %340 {strides = array<i32>} : memref<8x128xf32, #tpu.memory_space<vmem>>, vector<8x128xf32>,
      %cst_170 = arith.constant 0.000000e+00 : f32
      %342 = vector.broadcast %cst_170 : f32 to vector<8x8xf32>
      %c0_171 = arith.constant 0 : index
      %c0_172 = arith.constant 0 : index
      %343 = vector.load %arg24[%c0_171, %c0_172] : memref<8x8xf32, #tpu.memory_space<vmem>>, vector<8x8xf32>
      tpu.vector_store %arg24[%c0_171, %c0_172], %342 {strides = array<i32>} : memref<8x8xf32, #tpu.memory_space<vmem>>, vector<8x8xf32>,
    } else {
    }
    %c0 = arith.constant 0 : index
    %c0_1 = arith.constant 0 : index
    %3 = vector.load %arg1[%c0, %c0_1] : memref<48x8xf32, #tpu.memory_space<vmem>>, vector<48x8xf32>
    %c0_2 = arith.constant 0 : index
    %c0_3 = arith.constant 0 : index
    %4 = vector.load %arg2[%c0_2, %c0_3] : memref<48x8xf32, #tpu.memory_space<vmem>>, vector<48x8xf32>
    %5 = arith.mulf %4, %3 : vector<48x8xf32>
    %6 = arith.truncf %5 : vector<48x8xf32> to vector<48x8xbf16>
    %c0_4 = arith.constant 0 : index
    %c0_5 = arith.constant 0 : index
    %7 = vector.load %arg8[%c0_4, %c0_5] : memref<8x384xbf16, #tpu.memory_space<vmem>>, vector<8x384xbf16>
    %cst = arith.constant dense<0.000000e+00> : vector<48x384xf32>
    %8 = tpu.matmul %6, %7, %cst {dimension_numbers = #tpu.dot_dimension_numbers<[1], [0], [0], [1], [0, 0, 1, 1], [], []>} : vector<48x8xbf16>, vector<8x384xbf16>, vector<48x384xf32> -> vector<48x384xf32>
    %9 = arith.truncf %4 : vector<48x8xf32> to vector<48x8xbf16>
    %c0_6 = arith.constant 0 : index
    %c0_7 = arith.constant 0 : index
    %10 = vector.load %arg9[%c0_6, %c0_7] : memref<8x384xbf16, #tpu.memory_space<vmem>>, vector<8x384xbf16>
    %cst_8 = arith.constant dense<0.000000e+00> : vector<48x384xf32>
    %11 = tpu.matmul %9, %10, %cst_8 {dimension_numbers = #tpu.dot_dimension_numbers<[1], [0], [0], [1], [0, 0, 1, 1], [], []>} : vector<48x8xbf16>, vector<8x384xbf16>, vector<48x384xf32> -> vector<48x384xf32>
    %12 = arith.addf %8, %11 : vector<48x384xf32>
    %c0_9 = arith.constant 0 : index
    %c0_10 = arith.constant 0 : index
    %13 = vector.load %arg10[%c0_9, %c0_10] : memref<1x384xf32, #tpu.memory_space<vmem>>, vector<1x384xf32>
    %14 = vector.broadcast %13 : vector<1x384xf32> to vector<48x384xf32>
    %15 = arith.addf %12, %14 : vector<48x384xf32>
    %c0_11 = arith.constant 0 : index
    %c0_12 = arith.constant 0 : index
    %16 = vector.load %arg25[%c0_11, %c0_12] : memref<48x384xf32, #tpu.memory_space<vmem>>, vector<48x384xf32>
    tpu.vector_store %arg25[%c0_11, %c0_12], %15 {strides = array<i32>} : memref<48x384xf32, #tpu.memory_space<vmem>>, vector<48x384xf32>,
    %c0_13 = arith.constant 0 : index
    %c0_14 = arith.constant 0 : index
    %17 = vector.load %arg12[%c0_13, %c0_14] : memref<1x384xf32, #tpu.memory_space<vmem>>, vector<1x384xf32>
    %18 = vector.shape_cast %17 : vector<1x384xf32> to vector<1x384xf32>
    %19 = vector.broadcast %18 : vector<1x384xf32> to vector<8x384xf32>
    %c0_15 = arith.constant 0 : index
    %c0_16 = arith.constant 0 : index
    %20 = vector.load %arg14[%c0_15, %c0_16] : memref<1x128xf32, #tpu.memory_space<vmem>>, vector<1x128xf32>
    %21 = vector.shape_cast %20 : vector<1x128xf32> to vector<1x128xf32>
    %22 = vector.broadcast %21 : vector<1x128xf32> to vector<8x128xf32>
    %c0_17 = arith.constant 0 : index
    %c0_18 = arith.constant 0 : index
    %23 = vector.load %arg16[%c0_17, %c0_18] : memref<1x8xf32, #tpu.memory_space<vmem>>, vector<1x8xf32>
    %24 = vector.shape_cast %23 : vector<1x8xf32> to vector<1x8xf32>
    %25 = vector.broadcast %24 : vector<1x8xf32> to vector<8x8xf32>
    %c0_19 = arith.constant 0 : index
    %c0_20 = arith.constant 0 : index
    %26 = vector.load %arg23[%c0_19, %c0_20] : memref<8x128xf32, #tpu.memory_space<vmem>>, vector<8x128xf32>
    %c0_21 = arith.constant 0 : index
    %c0_22 = arith.constant 0 : index
    %27 = vector.load %arg24[%c0_21, %c0_22] : memref<8x8xf32, #tpu.memory_space<vmem>>, vector<8x8xf32>
    %c0_23 = arith.constant 0 : index
    %c0_24 = arith.constant 0 : index
    %28 = vector.load %arg2[%c0_23, %c0_24] : memref<48x8xf32, #tpu.memory_space<vmem>>, vector<8x8xf32>
    %cst_25 = arith.constant 1.000000e+00 : f32
    %29 = vector.broadcast %cst_25 : f32 to vector<8x8xf32>
    %30 = arith.subf %29, %28 : vector<8x8xf32>
    %31 = arith.mulf %30, %27 : vector<8x8xf32>
    %c0_26 = arith.constant 0 : index
    %c0_27 = arith.constant 0 : index
    %32 = vector.load %arg25[%c0_26, %c0_27] : memref<48x384xf32, #tpu.memory_space<vmem>>, vector<8x384xf32>
    %33 = arith.truncf %31 : vector<8x8xf32> to vector<8x8xbf16>
    %c0_28 = arith.constant 0 : index
    %c0_29 = arith.constant 0 : index
    %34 = vector.load %arg8[%c0_28, %c0_29] : memref<8x384xbf16, #tpu.memory_space<vmem>>, vector<8x384xbf16>
    %cst_30 = arith.constant dense<0.000000e+00> : vector<8x384xf32>
    %35 = tpu.matmul %33, %34, %cst_30 {dimension_numbers = #tpu.dot_dimension_numbers<[1], [0], [0], [1], [0, 0, 1, 1], [], []>} : vector<8x8xbf16>, vector<8x384xbf16>, vector<8x384xf32> -> vector<8x384xf32>
    %36 = arith.addf %32, %35 : vector<8x384xf32>
    %37 = arith.truncf %26 : vector<8x128xf32> to vector<8x128xbf16>
    %c0_31 = arith.constant 0 : index
    %c0_32 = arith.constant 0 : index
    %38 = vector.load %arg11[%c0_31, %c0_32] : memref<128x384xbf16, #tpu.memory_space<vmem>>, vector<128x384xbf16>
    %cst_33 = arith.constant dense<0.000000e+00> : vector<8x384xf32>
    %39 = tpu.matmul %37, %38, %cst_33 {dimension_numbers = #tpu.dot_dimension_numbers<[1], [0], [0], [1], [0, 0, 1, 1], [], []>} : vector<8x128xbf16>, vector<128x384xbf16>, vector<8x384xf32> -> vector<8x384xf32>
    %40 = arith.addf %39, %19 : vector<8x384xf32>
    %41 = vector.extract_strided_slice %36 {offsets = [0, 0], sizes = [8, 128], strides = [1, 1]} : vector<8x384xf32> to vector<8x128xf32>
    %42 = vector.extract_strided_slice %40 {offsets = [0, 0], sizes = [8, 128], strides = [1, 1]} : vector<8x384xf32> to vector<8x128xf32>
    %43 = arith.addf %41, %42 : vector<8x128xf32>
    %44 = arith.negf %43 : vector<8x128xf32>
    %45 = math.exp %44 : vector<8x128xf32>
    %cst_34 = arith.constant 1.000000e+00 : f32
    %46 = vector.broadcast %cst_34 : f32 to vector<8x128xf32>
    %47 = arith.addf %46, %45 : vector<8x128xf32>
    %48 = arith.divf %46, %47 : vector<8x128xf32>
    %49 = vector.extract_strided_slice %36 {offsets = [0, 128], sizes = [8, 128], strides = [1, 1]} : vector<8x384xf32> to vector<8x128xf32>
    %50 = vector.extract_strided_slice %40 {offsets = [0, 128], sizes = [8, 128], strides = [1, 1]} : vector<8x384xf32> to vector<8x128xf32>
    %51 = arith.addf %49, %50 : vector<8x128xf32>
    %52 = arith.negf %51 : vector<8x128xf32>
    %53 = math.exp %52 : vector<8x128xf32>
    %cst_35 = arith.constant 1.000000e+00 : f32
    %54 = vector.broadcast %cst_35 : f32 to vector<8x128xf32>
    %55 = arith.addf %54, %53 : vector<8x128xf32>
    %56 = arith.divf %54, %55 : vector<8x128xf32>
    %57 = vector.extract_strided_slice %36 {offsets = [0, 256], sizes = [8, 128], strides = [1, 1]} : vector<8x384xf32> to vector<8x128xf32>
    %58 = vector.extract_strided_slice %40 {offsets = [0, 256], sizes = [8, 128], strides = [1, 1]} : vector<8x384xf32> to vector<8x128xf32>
    %59 = arith.mulf %48, %58 : vector<8x128xf32>
    %60 = arith.addf %57, %59 : vector<8x128xf32>
    %61 = math.tanh %60 : vector<8x128xf32>
    %cst_36 = arith.constant 1.000000e+00 : f32
    %62 = vector.broadcast %cst_36 : f32 to vector<8x128xf32>
    %63 = arith.subf %62, %56 : vector<8x128xf32>
    %64 = arith.mulf %63, %61 : vector<8x128xf32>
    %65 = arith.mulf %56, %26 : vector<8x128xf32>
    %66 = arith.addf %64, %65 : vector<8x128xf32>
    %67 = arith.truncf %66 : vector<8x128xf32> to vector<8x128xbf16>
    %c0_37 = arith.constant 0 : index
    %c0_38 = arith.constant 0 : index
    %68 = vector.load %arg13[%c0_37, %c0_38] : memref<128x128xbf16, #tpu.memory_space<vmem>>, vector<128x128xbf16>
    %cst_39 = arith.constant dense<0.000000e+00> : vector<8x128xf32>
    %69 = tpu.matmul %67, %68, %cst_39 {dimension_numbers = #tpu.dot_dimension_numbers<[1], [0], [0], [1], [0, 0, 1, 1], [], []>} : vector<8x128xbf16>, vector<128x128xbf16>, vector<8x128xf32> -> vector<8x128xf32>
    %70 = arith.addf %69, %22 : vector<8x128xf32>
    %71 = math.tanh %70 : vector<8x128xf32>
    %72 = arith.truncf %71 : vector<8x128xf32> to vector<8x128xbf16>
    %c0_40 = arith.constant 0 : index
    %c0_41 = arith.constant 0 : index
    %73 = vector.load %arg15[%c0_40, %c0_41] : memref<128x8xbf16, #tpu.memory_space<vmem>>, vector<128x8xbf16>
    %cst_42 = arith.constant dense<0.000000e+00> : vector<8x8xf32>
    %74 = tpu.matmul %72, %73, %cst_42 {dimension_numbers = #tpu.dot_dimension_numbers<[1], [0], [0], [1], [0, 0, 1, 1], [], []>} : vector<8x128xbf16>, vector<128x8xbf16>, vector<8x8xf32> -> vector<8x8xf32>
    %75 = arith.addf %74, %25 : vector<8x8xf32>
    %c0_43 = arith.constant 0 : index
    %c0_44 = arith.constant 0 : index
    %76 = vector.load %arg21[%c0_43, %c0_44] : memref<48x8xf32, #tpu.memory_space<vmem>>, vector<8x8xf32>
    tpu.vector_store %arg21[%c0_43, %c0_44], %75 {strides = array<i32>} : memref<48x8xf32, #tpu.memory_space<vmem>>, vector<8x8xf32>,
    %c8 = arith.constant 8 : index
    %c0_45 = arith.constant 0 : index
    %77 = vector.load %arg2[%c8, %c0_45] : memref<48x8xf32, #tpu.memory_space<vmem>>, vector<8x8xf32>
    %cst_46 = arith.constant 1.000000e+00 : f32
    %78 = vector.broadcast %cst_46 : f32 to vector<8x8xf32>
    %79 = arith.subf %78, %77 : vector<8x8xf32>
    %80 = arith.mulf %79, %75 : vector<8x8xf32>
    %c8_47 = arith.constant 8 : index
    %c0_48 = arith.constant 0 : index
    %81 = vector.load %arg25[%c8_47, %c0_48] : memref<48x384xf32, #tpu.memory_space<vmem>>, vector<8x384xf32>
    %82 = arith.truncf %80 : vector<8x8xf32> to vector<8x8xbf16>
    %c0_49 = arith.constant 0 : index
    %c0_50 = arith.constant 0 : index
    %83 = vector.load %arg8[%c0_49, %c0_50] : memref<8x384xbf16, #tpu.memory_space<vmem>>, vector<8x384xbf16>
    %cst_51 = arith.constant dense<0.000000e+00> : vector<8x384xf32>
    %84 = tpu.matmul %82, %83, %cst_51 {dimension_numbers = #tpu.dot_dimension_numbers<[1], [0], [0], [1], [0, 0, 1, 1], [], []>} : vector<8x8xbf16>, vector<8x384xbf16>, vector<8x384xf32> -> vector<8x384xf32>
    %85 = arith.addf %81, %84 : vector<8x384xf32>
    %86 = arith.truncf %66 : vector<8x128xf32> to vector<8x128xbf16>
    %c0_52 = arith.constant 0 : index
    %c0_53 = arith.constant 0 : index
    %87 = vector.load %arg11[%c0_52, %c0_53] : memref<128x384xbf16, #tpu.memory_space<vmem>>, vector<128x384xbf16>
    %cst_54 = arith.constant dense<0.000000e+00> : vector<8x384xf32>
    %88 = tpu.matmul %86, %87, %cst_54 {dimension_numbers = #tpu.dot_dimension_numbers<[1], [0], [0], [1], [0, 0, 1, 1], [], []>} : vector<8x128xbf16>, vector<128x384xbf16>, vector<8x384xf32> -> vector<8x384xf32>
    %89 = arith.addf %88, %19 : vector<8x384xf32>
    %90 = vector.extract_strided_slice %85 {offsets = [0, 0], sizes = [8, 128], strides = [1, 1]} : vector<8x384xf32> to vector<8x128xf32>
    %91 = vector.extract_strided_slice %89 {offsets = [0, 0], sizes = [8, 128], strides = [1, 1]} : vector<8x384xf32> to vector<8x128xf32>
    %92 = arith.addf %90, %91 : vector<8x128xf32>
    %93 = arith.negf %92 : vector<8x128xf32>
    %94 = math.exp %93 : vector<8x128xf32>
    %cst_55 = arith.constant 1.000000e+00 : f32
    %95 = vector.broadcast %cst_55 : f32 to vector<8x128xf32>
    %96 = arith.addf %95, %94 : vector<8x128xf32>
    %97 = arith.divf %95, %96 : vector<8x128xf32>
    %98 = vector.extract_strided_slice %85 {offsets = [0, 128], sizes = [8, 128], strides = [1, 1]} : vector<8x384xf32> to vector<8x128xf32>
    %99 = vector.extract_strided_slice %89 {offsets = [0, 128], sizes = [8, 128], strides = [1, 1]} : vector<8x384xf32> to vector<8x128xf32>
    %100 = arith.addf %98, %99 : vector<8x128xf32>
    %101 = arith.negf %100 : vector<8x128xf32>
    %102 = math.exp %101 : vector<8x128xf32>
    %cst_56 = arith.constant 1.000000e+00 : f32
    %103 = vector.broadcast %cst_56 : f32 to vector<8x128xf32>
    %104 = arith.addf %103, %102 : vector<8x128xf32>
    %105 = arith.divf %103, %104 : vector<8x128xf32>
    %106 = vector.extract_strided_slice %85 {offsets = [0, 256], sizes = [8, 128], strides = [1, 1]} : vector<8x384xf32> to vector<8x128xf32>
    %107 = vector.extract_strided_slice %89 {offsets = [0, 256], sizes = [8, 128], strides = [1, 1]} : vector<8x384xf32> to vector<8x128xf32>
    %108 = arith.mulf %97, %107 : vector<8x128xf32>
    %109 = arith.addf %106, %108 : vector<8x128xf32>
    %110 = math.tanh %109 : vector<8x128xf32>
    %cst_57 = arith.constant 1.000000e+00 : f32
    %111 = vector.broadcast %cst_57 : f32 to vector<8x128xf32>
    %112 = arith.subf %111, %105 : vector<8x128xf32>
    %113 = arith.mulf %112, %110 : vector<8x128xf32>
    %114 = arith.mulf %105, %66 : vector<8x128xf32>
    %115 = arith.addf %113, %114 : vector<8x128xf32>
    %116 = arith.truncf %115 : vector<8x128xf32> to vector<8x128xbf16>
    %c0_58 = arith.constant 0 : index
    %c0_59 = arith.constant 0 : index
    %117 = vector.load %arg13[%c0_58, %c0_59] : memref<128x128xbf16, #tpu.memory_space<vmem>>, vector<128x128xbf16>
    %cst_60 = arith.constant dense<0.000000e+00> : vector<8x128xf32>
    %118 = tpu.matmul %116, %117, %cst_60 {dimension_numbers = #tpu.dot_dimension_numbers<[1], [0], [0], [1], [0, 0, 1, 1], [], []>} : vector<8x128xbf16>, vector<128x128xbf16>, vector<8x128xf32> -> vector<8x128xf32>
    %119 = arith.addf %118, %22 : vector<8x128xf32>
    %120 = math.tanh %119 : vector<8x128xf32>
    %121 = arith.truncf %120 : vector<8x128xf32> to vector<8x128xbf16>
    %c0_61 = arith.constant 0 : index
    %c0_62 = arith.constant 0 : index
    %122 = vector.load %arg15[%c0_61, %c0_62] : memref<128x8xbf16, #tpu.memory_space<vmem>>, vector<128x8xbf16>
    %cst_63 = arith.constant dense<0.000000e+00> : vector<8x8xf32>
    %123 = tpu.matmul %121, %122, %cst_63 {dimension_numbers = #tpu.dot_dimension_numbers<[1], [0], [0], [1], [0, 0, 1, 1], [], []>} : vector<8x128xbf16>, vector<128x8xbf16>, vector<8x8xf32> -> vector<8x8xf32>
    %124 = arith.addf %123, %25 : vector<8x8xf32>
    %c8_64 = arith.constant 8 : index
    %c0_65 = arith.constant 0 : index
    %125 = vector.load %arg21[%c8_64, %c0_65] : memref<48x8xf32, #tpu.memory_space<vmem>>, vector<8x8xf32>
    tpu.vector_store %arg21[%c8_64, %c0_65], %124 {strides = array<i32>} : memref<48x8xf32, #tpu.memory_space<vmem>>, vector<8x8xf32>,
    %c16 = arith.constant 16 : index
    %c0_66 = arith.constant 0 : index
    %126 = vector.load %arg2[%c16, %c0_66] : memref<48x8xf32, #tpu.memory_space<vmem>>, vector<8x8xf32>
    %cst_67 = arith.constant 1.000000e+00 : f32
    %127 = vector.broadcast %cst_67 : f32 to vector<8x8xf32>
    %128 = arith.subf %127, %126 : vector<8x8xf32>
    %129 = arith.mulf %128, %124 : vector<8x8xf32>
    %c16_68 = arith.constant 16 : index
    %c0_69 = arith.constant 0 : index
    %130 = vector.load %arg25[%c16_68, %c0_69] : memref<48x384xf32, #tpu.memory_space<vmem>>, vector<8x384xf32>
    %131 = arith.truncf %129 : vector<8x8xf32> to vector<8x8xbf16>
    %c0_70 = arith.constant 0 : index
    %c0_71 = arith.constant 0 : index
    %132 = vector.load %arg8[%c0_70, %c0_71] : memref<8x384xbf16, #tpu.memory_space<vmem>>, vector<8x384xbf16>
    %cst_72 = arith.constant dense<0.000000e+00> : vector<8x384xf32>
    %133 = tpu.matmul %131, %132, %cst_72 {dimension_numbers = #tpu.dot_dimension_numbers<[1], [0], [0], [1], [0, 0, 1, 1], [], []>} : vector<8x8xbf16>, vector<8x384xbf16>, vector<8x384xf32> -> vector<8x384xf32>
    %134 = arith.addf %130, %133 : vector<8x384xf32>
    %135 = arith.truncf %115 : vector<8x128xf32> to vector<8x128xbf16>
    %c0_73 = arith.constant 0 : index
    %c0_74 = arith.constant 0 : index
    %136 = vector.load %arg11[%c0_73, %c0_74] : memref<128x384xbf16, #tpu.memory_space<vmem>>, vector<128x384xbf16>
    %cst_75 = arith.constant dense<0.000000e+00> : vector<8x384xf32>
    %137 = tpu.matmul %135, %136, %cst_75 {dimension_numbers = #tpu.dot_dimension_numbers<[1], [0], [0], [1], [0, 0, 1, 1], [], []>} : vector<8x128xbf16>, vector<128x384xbf16>, vector<8x384xf32> -> vector<8x384xf32>
    %138 = arith.addf %137, %19 : vector<8x384xf32>
    %139 = vector.extract_strided_slice %134 {offsets = [0, 0], sizes = [8, 128], strides = [1, 1]} : vector<8x384xf32> to vector<8x128xf32>
    %140 = vector.extract_strided_slice %138 {offsets = [0, 0], sizes = [8, 128], strides = [1, 1]} : vector<8x384xf32> to vector<8x128xf32>
    %141 = arith.addf %139, %140 : vector<8x128xf32>
    %142 = arith.negf %141 : vector<8x128xf32>
    %143 = math.exp %142 : vector<8x128xf32>
    %cst_76 = arith.constant 1.000000e+00 : f32
    %144 = vector.broadcast %cst_76 : f32 to vector<8x128xf32>
    %145 = arith.addf %144, %143 : vector<8x128xf32>
    %146 = arith.divf %144, %145 : vector<8x128xf32>
    %147 = vector.extract_strided_slice %134 {offsets = [0, 128], sizes = [8, 128], strides = [1, 1]} : vector<8x384xf32> to vector<8x128xf32>
    %148 = vector.extract_strided_slice %138 {offsets = [0, 128], sizes = [8, 128], strides = [1, 1]} : vector<8x384xf32> to vector<8x128xf32>
    %149 = arith.addf %147, %148 : vector<8x128xf32>
    %150 = arith.negf %149 : vector<8x128xf32>
    %151 = math.exp %150 : vector<8x128xf32>
    %cst_77 = arith.constant 1.000000e+00 : f32
    %152 = vector.broadcast %cst_77 : f32 to vector<8x128xf32>
    %153 = arith.addf %152, %151 : vector<8x128xf32>
    %154 = arith.divf %152, %153 : vector<8x128xf32>
    %155 = vector.extract_strided_slice %134 {offsets = [0, 256], sizes = [8, 128], strides = [1, 1]} : vector<8x384xf32> to vector<8x128xf32>
    %156 = vector.extract_strided_slice %138 {offsets = [0, 256], sizes = [8, 128], strides = [1, 1]} : vector<8x384xf32> to vector<8x128xf32>
    %157 = arith.mulf %146, %156 : vector<8x128xf32>
    %158 = arith.addf %155, %157 : vector<8x128xf32>
    %159 = math.tanh %158 : vector<8x128xf32>
    %cst_78 = arith.constant 1.000000e+00 : f32
    %160 = vector.broadcast %cst_78 : f32 to vector<8x128xf32>
    %161 = arith.subf %160, %154 : vector<8x128xf32>
    %162 = arith.mulf %161, %159 : vector<8x128xf32>
    %163 = arith.mulf %154, %115 : vector<8x128xf32>
    %164 = arith.addf %162, %163 : vector<8x128xf32>
    %165 = arith.truncf %164 : vector<8x128xf32> to vector<8x128xbf16>
    %c0_79 = arith.constant 0 : index
    %c0_80 = arith.constant 0 : index
    %166 = vector.load %arg13[%c0_79, %c0_80] : memref<128x128xbf16, #tpu.memory_space<vmem>>, vector<128x128xbf16>
    %cst_81 = arith.constant dense<0.000000e+00> : vector<8x128xf32>
    %167 = tpu.matmul %165, %166, %cst_81 {dimension_numbers = #tpu.dot_dimension_numbers<[1], [0], [0], [1], [0, 0, 1, 1], [], []>} : vector<8x128xbf16>, vector<128x128xbf16>, vector<8x128xf32> -> vector<8x128xf32>
    %168 = arith.addf %167, %22 : vector<8x128xf32>
    %169 = math.tanh %168 : vector<8x128xf32>
    %170 = arith.truncf %169 : vector<8x128xf32> to vector<8x128xbf16>
    %c0_82 = arith.constant 0 : index
    %c0_83 = arith.constant 0 : index
    %171 = vector.load %arg15[%c0_82, %c0_83] : memref<128x8xbf16, #tpu.memory_space<vmem>>, vector<128x8xbf16>
    %cst_84 = arith.constant dense<0.000000e+00> : vector<8x8xf32>
    %172 = tpu.matmul %170, %171, %cst_84 {dimension_numbers = #tpu.dot_dimension_numbers<[1], [0], [0], [1], [0, 0, 1, 1], [], []>} : vector<8x128xbf16>, vector<128x8xbf16>, vector<8x8xf32> -> vector<8x8xf32>
    %173 = arith.addf %172, %25 : vector<8x8xf32>
    %c16_85 = arith.constant 16 : index
    %c0_86 = arith.constant 0 : index
    %174 = vector.load %arg21[%c16_85, %c0_86] : memref<48x8xf32, #tpu.memory_space<vmem>>, vector<8x8xf32>
    tpu.vector_store %arg21[%c16_85, %c0_86], %173 {strides = array<i32>} : memref<48x8xf32, #tpu.memory_space<vmem>>, vector<8x8xf32>,
    %c24 = arith.constant 24 : index
    %c0_87 = arith.constant 0 : index
    %175 = vector.load %arg2[%c24, %c0_87] : memref<48x8xf32, #tpu.memory_space<vmem>>, vector<8x8xf32>
    %cst_88 = arith.constant 1.000000e+00 : f32
    %176 = vector.broadcast %cst_88 : f32 to vector<8x8xf32>
    %177 = arith.subf %176, %175 : vector<8x8xf32>
    %178 = arith.mulf %177, %173 : vector<8x8xf32>
    %c24_89 = arith.constant 24 : index
    %c0_90 = arith.constant 0 : index
    %179 = vector.load %arg25[%c24_89, %c0_90] : memref<48x384xf32, #tpu.memory_space<vmem>>, vector<8x384xf32>
    %180 = arith.truncf %178 : vector<8x8xf32> to vector<8x8xbf16>
    %c0_91 = arith.constant 0 : index
    %c0_92 = arith.constant 0 : index
    %181 = vector.load %arg8[%c0_91, %c0_92] : memref<8x384xbf16, #tpu.memory_space<vmem>>, vector<8x384xbf16>
    %cst_93 = arith.constant dense<0.000000e+00> : vector<8x384xf32>
    %182 = tpu.matmul %180, %181, %cst_93 {dimension_numbers = #tpu.dot_dimension_numbers<[1], [0], [0], [1], [0, 0, 1, 1], [], []>} : vector<8x8xbf16>, vector<8x384xbf16>, vector<8x384xf32> -> vector<8x384xf32>
    %183 = arith.addf %179, %182 : vector<8x384xf32>
    %184 = arith.truncf %164 : vector<8x128xf32> to vector<8x128xbf16>
    %c0_94 = arith.constant 0 : index
    %c0_95 = arith.constant 0 : index
    %185 = vector.load %arg11[%c0_94, %c0_95] : memref<128x384xbf16, #tpu.memory_space<vmem>>, vector<128x384xbf16>
    %cst_96 = arith.constant dense<0.000000e+00> : vector<8x384xf32>
    %186 = tpu.matmul %184, %185, %cst_96 {dimension_numbers = #tpu.dot_dimension_numbers<[1], [0], [0], [1], [0, 0, 1, 1], [], []>} : vector<8x128xbf16>, vector<128x384xbf16>, vector<8x384xf32> -> vector<8x384xf32>
    %187 = arith.addf %186, %19 : vector<8x384xf32>
    %188 = vector.extract_strided_slice %183 {offsets = [0, 0], sizes = [8, 128], strides = [1, 1]} : vector<8x384xf32> to vector<8x128xf32>
    %189 = vector.extract_strided_slice %187 {offsets = [0, 0], sizes = [8, 128], strides = [1, 1]} : vector<8x384xf32> to vector<8x128xf32>
    %190 = arith.addf %188, %189 : vector<8x128xf32>
    %191 = arith.negf %190 : vector<8x128xf32>
    %192 = math.exp %191 : vector<8x128xf32>
    %cst_97 = arith.constant 1.000000e+00 : f32
    %193 = vector.broadcast %cst_97 : f32 to vector<8x128xf32>
    %194 = arith.addf %193, %192 : vector<8x128xf32>
    %195 = arith.divf %193, %194 : vector<8x128xf32>
    %196 = vector.extract_strided_slice %183 {offsets = [0, 128], sizes = [8, 128], strides = [1, 1]} : vector<8x384xf32> to vector<8x128xf32>
    %197 = vector.extract_strided_slice %187 {offsets = [0, 128], sizes = [8, 128], strides = [1, 1]} : vector<8x384xf32> to vector<8x128xf32>
    %198 = arith.addf %196, %197 : vector<8x128xf32>
    %199 = arith.negf %198 : vector<8x128xf32>
    %200 = math.exp %199 : vector<8x128xf32>
    %cst_98 = arith.constant 1.000000e+00 : f32
    %201 = vector.broadcast %cst_98 : f32 to vector<8x128xf32>
    %202 = arith.addf %201, %200 : vector<8x128xf32>
    %203 = arith.divf %201, %202 : vector<8x128xf32>
    %204 = vector.extract_strided_slice %183 {offsets = [0, 256], sizes = [8, 128], strides = [1, 1]} : vector<8x384xf32> to vector<8x128xf32>
    %205 = vector.extract_strided_slice %187 {offsets = [0, 256], sizes = [8, 128], strides = [1, 1]} : vector<8x384xf32> to vector<8x128xf32>
    %206 = arith.mulf %195, %205 : vector<8x128xf32>
    %207 = arith.addf %204, %206 : vector<8x128xf32>
    %208 = math.tanh %207 : vector<8x128xf32>
    %cst_99 = arith.constant 1.000000e+00 : f32
    %209 = vector.broadcast %cst_99 : f32 to vector<8x128xf32>
    %210 = arith.subf %209, %203 : vector<8x128xf32>
    %211 = arith.mulf %210, %208 : vector<8x128xf32>
    %212 = arith.mulf %203, %164 : vector<8x128xf32>
    %213 = arith.addf %211, %212 : vector<8x128xf32>
    %214 = arith.truncf %213 : vector<8x128xf32> to vector<8x128xbf16>
    %c0_100 = arith.constant 0 : index
    %c0_101 = arith.constant 0 : index
    %215 = vector.load %arg13[%c0_100, %c0_101] : memref<128x128xbf16, #tpu.memory_space<vmem>>, vector<128x128xbf16>
    %cst_102 = arith.constant dense<0.000000e+00> : vector<8x128xf32>
    %216 = tpu.matmul %214, %215, %cst_102 {dimension_numbers = #tpu.dot_dimension_numbers<[1], [0], [0], [1], [0, 0, 1, 1], [], []>} : vector<8x128xbf16>, vector<128x128xbf16>, vector<8x128xf32> -> vector<8x128xf32>
    %217 = arith.addf %216, %22 : vector<8x128xf32>
    %218 = math.tanh %217 : vector<8x128xf32>
    %219 = arith.truncf %218 : vector<8x128xf32> to vector<8x128xbf16>
    %c0_103 = arith.constant 0 : index
    %c0_104 = arith.constant 0 : index
    %220 = vector.load %arg15[%c0_103, %c0_104] : memref<128x8xbf16, #tpu.memory_space<vmem>>, vector<128x8xbf16>
    %cst_105 = arith.constant dense<0.000000e+00> : vector<8x8xf32>
    %221 = tpu.matmul %219, %220, %cst_105 {dimension_numbers = #tpu.dot_dimension_numbers<[1], [0], [0], [1], [0, 0, 1, 1], [], []>} : vector<8x128xbf16>, vector<128x8xbf16>, vector<8x8xf32> -> vector<8x8xf32>
    %222 = arith.addf %221, %25 : vector<8x8xf32>
    %c24_106 = arith.constant 24 : index
    %c0_107 = arith.constant 0 : index
    %223 = vector.load %arg21[%c24_106, %c0_107] : memref<48x8xf32, #tpu.memory_space<vmem>>, vector<8x8xf32>
    tpu.vector_store %arg21[%c24_106, %c0_107], %222 {strides = array<i32>} : memref<48x8xf32, #tpu.memory_space<vmem>>, vector<8x8xf32>,
    %c32 = arith.constant 32 : index
    %c0_108 = arith.constant 0 : index
    %224 = vector.load %arg2[%c32, %c0_108] : memref<48x8xf32, #tpu.memory_space<vmem>>, vector<8x8xf32>
    %cst_109 = arith.constant 1.000000e+00 : f32
    %225 = vector.broadcast %cst_109 : f32 to vector<8x8xf32>
    %226 = arith.subf %225, %224 : vector<8x8xf32>
    %227 = arith.mulf %226, %222 : vector<8x8xf32>
    %c32_110 = arith.constant 32 : index
    %c0_111 = arith.constant 0 : index
    %228 = vector.load %arg25[%c32_110, %c0_111] : memref<48x384xf32, #tpu.memory_space<vmem>>, vector<8x384xf32>
    %229 = arith.truncf %227 : vector<8x8xf32> to vector<8x8xbf16>
    %c0_112 = arith.constant 0 : index
    %c0_113 = arith.constant 0 : index
    %230 = vector.load %arg8[%c0_112, %c0_113] : memref<8x384xbf16, #tpu.memory_space<vmem>>, vector<8x384xbf16>
    %cst_114 = arith.constant dense<0.000000e+00> : vector<8x384xf32>
    %231 = tpu.matmul %229, %230, %cst_114 {dimension_numbers = #tpu.dot_dimension_numbers<[1], [0], [0], [1], [0, 0, 1, 1], [], []>} : vector<8x8xbf16>, vector<8x384xbf16>, vector<8x384xf32> -> vector<8x384xf32>
    %232 = arith.addf %228, %231 : vector<8x384xf32>
    %233 = arith.truncf %213 : vector<8x128xf32> to vector<8x128xbf16>
    %c0_115 = arith.constant 0 : index
    %c0_116 = arith.constant 0 : index
    %234 = vector.load %arg11[%c0_115, %c0_116] : memref<128x384xbf16, #tpu.memory_space<vmem>>, vector<128x384xbf16>
    %cst_117 = arith.constant dense<0.000000e+00> : vector<8x384xf32>
    %235 = tpu.matmul %233, %234, %cst_117 {dimension_numbers = #tpu.dot_dimension_numbers<[1], [0], [0], [1], [0, 0, 1, 1], [], []>} : vector<8x128xbf16>, vector<128x384xbf16>, vector<8x384xf32> -> vector<8x384xf32>
    %236 = arith.addf %235, %19 : vector<8x384xf32>
    %237 = vector.extract_strided_slice %232 {offsets = [0, 0], sizes = [8, 128], strides = [1, 1]} : vector<8x384xf32> to vector<8x128xf32>
    %238 = vector.extract_strided_slice %236 {offsets = [0, 0], sizes = [8, 128], strides = [1, 1]} : vector<8x384xf32> to vector<8x128xf32>
    %239 = arith.addf %237, %238 : vector<8x128xf32>
    %240 = arith.negf %239 : vector<8x128xf32>
    %241 = math.exp %240 : vector<8x128xf32>
    %cst_118 = arith.constant 1.000000e+00 : f32
    %242 = vector.broadcast %cst_118 : f32 to vector<8x128xf32>
    %243 = arith.addf %242, %241 : vector<8x128xf32>
    %244 = arith.divf %242, %243 : vector<8x128xf32>
    %245 = vector.extract_strided_slice %232 {offsets = [0, 128], sizes = [8, 128], strides = [1, 1]} : vector<8x384xf32> to vector<8x128xf32>
    %246 = vector.extract_strided_slice %236 {offsets = [0, 128], sizes = [8, 128], strides = [1, 1]} : vector<8x384xf32> to vector<8x128xf32>
    %247 = arith.addf %245, %246 : vector<8x128xf32>
    %248 = arith.negf %247 : vector<8x128xf32>
    %249 = math.exp %248 : vector<8x128xf32>
    %cst_119 = arith.constant 1.000000e+00 : f32
    %250 = vector.broadcast %cst_119 : f32 to vector<8x128xf32>
    %251 = arith.addf %250, %249 : vector<8x128xf32>
    %252 = arith.divf %250, %251 : vector<8x128xf32>
    %253 = vector.extract_strided_slice %232 {offsets = [0, 256], sizes = [8, 128], strides = [1, 1]} : vector<8x384xf32> to vector<8x128xf32>
    %254 = vector.extract_strided_slice %236 {offsets = [0, 256], sizes = [8, 128], strides = [1, 1]} : vector<8x384xf32> to vector<8x128xf32>
    %255 = arith.mulf %244, %254 : vector<8x128xf32>
    %256 = arith.addf %253, %255 : vector<8x128xf32>
    %257 = math.tanh %256 : vector<8x128xf32>
    %cst_120 = arith.constant 1.000000e+00 : f32
    %258 = vector.broadcast %cst_120 : f32 to vector<8x128xf32>
    %259 = arith.subf %258, %252 : vector<8x128xf32>
    %260 = arith.mulf %259, %257 : vector<8x128xf32>
    %261 = arith.mulf %252, %213 : vector<8x128xf32>
    %262 = arith.addf %260, %261 : vector<8x128xf32>
    %263 = arith.truncf %262 : vector<8x128xf32> to vector<8x128xbf16>
    %c0_121 = arith.constant 0 : index
    %c0_122 = arith.constant 0 : index
    %264 = vector.load %arg13[%c0_121, %c0_122] : memref<128x128xbf16, #tpu.memory_space<vmem>>, vector<128x128xbf16>
    %cst_123 = arith.constant dense<0.000000e+00> : vector<8x128xf32>
    %265 = tpu.matmul %263, %264, %cst_123 {dimension_numbers = #tpu.dot_dimension_numbers<[1], [0], [0], [1], [0, 0, 1, 1], [], []>} : vector<8x128xbf16>, vector<128x128xbf16>, vector<8x128xf32> -> vector<8x128xf32>
    %266 = arith.addf %265, %22 : vector<8x128xf32>
    %267 = math.tanh %266 : vector<8x128xf32>
    %268 = arith.truncf %267 : vector<8x128xf32> to vector<8x128xbf16>
    %c0_124 = arith.constant 0 : index
    %c0_125 = arith.constant 0 : index
    %269 = vector.load %arg15[%c0_124, %c0_125] : memref<128x8xbf16, #tpu.memory_space<vmem>>, vector<128x8xbf16>
    %cst_126 = arith.constant dense<0.000000e+00> : vector<8x8xf32>
    %270 = tpu.matmul %268, %269, %cst_126 {dimension_numbers = #tpu.dot_dimension_numbers<[1], [0], [0], [1], [0, 0, 1, 1], [], []>} : vector<8x128xbf16>, vector<128x8xbf16>, vector<8x8xf32> -> vector<8x8xf32>
    %271 = arith.addf %270, %25 : vector<8x8xf32>
    %c32_127 = arith.constant 32 : index
    %c0_128 = arith.constant 0 : index
    %272 = vector.load %arg21[%c32_127, %c0_128] : memref<48x8xf32, #tpu.memory_space<vmem>>, vector<8x8xf32>
    tpu.vector_store %arg21[%c32_127, %c0_128], %271 {strides = array<i32>} : memref<48x8xf32, #tpu.memory_space<vmem>>, vector<8x8xf32>,
    %c40 = arith.constant 40 : index
    %c0_129 = arith.constant 0 : index
    %273 = vector.load %arg2[%c40, %c0_129] : memref<48x8xf32, #tpu.memory_space<vmem>>, vector<8x8xf32>
    %cst_130 = arith.constant 1.000000e+00 : f32
    %274 = vector.broadcast %cst_130 : f32 to vector<8x8xf32>
    %275 = arith.subf %274, %273 : vector<8x8xf32>
    %276 = arith.mulf %275, %271 : vector<8x8xf32>
    %c40_131 = arith.constant 40 : index
    %c0_132 = arith.constant 0 : index
    %277 = vector.load %arg25[%c40_131, %c0_132] : memref<48x384xf32, #tpu.memory_space<vmem>>, vector<8x384xf32>
    %278 = arith.truncf %276 : vector<8x8xf32> to vector<8x8xbf16>
    %c0_133 = arith.constant 0 : index
    %c0_134 = arith.constant 0 : index
    %279 = vector.load %arg8[%c0_133, %c0_134] : memref<8x384xbf16, #tpu.memory_space<vmem>>, vector<8x384xbf16>
    %cst_135 = arith.constant dense<0.000000e+00> : vector<8x384xf32>
    %280 = tpu.matmul %278, %279, %cst_135 {dimension_numbers = #tpu.dot_dimension_numbers<[1], [0], [0], [1], [0, 0, 1, 1], [], []>} : vector<8x8xbf16>, vector<8x384xbf16>, vector<8x384xf32> -> vector<8x384xf32>
    %281 = arith.addf %277, %280 : vector<8x384xf32>
    %282 = arith.truncf %262 : vector<8x128xf32> to vector<8x128xbf16>
    %c0_136 = arith.constant 0 : index
    %c0_137 = arith.constant 0 : index
    %283 = vector.load %arg11[%c0_136, %c0_137] : memref<128x384xbf16, #tpu.memory_space<vmem>>, vector<128x384xbf16>
    %cst_138 = arith.constant dense<0.000000e+00> : vector<8x384xf32>
    %284 = tpu.matmul %282, %283, %cst_138 {dimension_numbers = #tpu.dot_dimension_numbers<[1], [0], [0], [1], [0, 0, 1, 1], [], []>} : vector<8x128xbf16>, vector<128x384xbf16>, vector<8x384xf32> -> vector<8x384xf32>
    %285 = arith.addf %284, %19 : vector<8x384xf32>
    %286 = vector.extract_strided_slice %281 {offsets = [0, 0], sizes = [8, 128], strides = [1, 1]} : vector<8x384xf32> to vector<8x128xf32>
    %287 = vector.extract_strided_slice %285 {offsets = [0, 0], sizes = [8, 128], strides = [1, 1]} : vector<8x384xf32> to vector<8x128xf32>
    %288 = arith.addf %286, %287 : vector<8x128xf32>
    %289 = arith.negf %288 : vector<8x128xf32>
    %290 = math.exp %289 : vector<8x128xf32>
    %cst_139 = arith.constant 1.000000e+00 : f32
    %291 = vector.broadcast %cst_139 : f32 to vector<8x128xf32>
    %292 = arith.addf %291, %290 : vector<8x128xf32>
    %293 = arith.divf %291, %292 : vector<8x128xf32>
    %294 = vector.extract_strided_slice %281 {offsets = [0, 128], sizes = [8, 128], strides = [1, 1]} : vector<8x384xf32> to vector<8x128xf32>
    %295 = vector.extract_strided_slice %285 {offsets = [0, 128], sizes = [8, 128], strides = [1, 1]} : vector<8x384xf32> to vector<8x128xf32>
    %296 = arith.addf %294, %295 : vector<8x128xf32>
    %297 = arith.negf %296 : vector<8x128xf32>
    %298 = math.exp %297 : vector<8x128xf32>
    %cst_140 = arith.constant 1.000000e+00 : f32
    %299 = vector.broadcast %cst_140 : f32 to vector<8x128xf32>
    %300 = arith.addf %299, %298 : vector<8x128xf32>
    %301 = arith.divf %299, %300 : vector<8x128xf32>
    %302 = vector.extract_strided_slice %281 {offsets = [0, 256], sizes = [8, 128], strides = [1, 1]} : vector<8x384xf32> to vector<8x128xf32>
    %303 = vector.extract_strided_slice %285 {offsets = [0, 256], sizes = [8, 128], strides = [1, 1]} : vector<8x384xf32> to vector<8x128xf32>
    %304 = arith.mulf %293, %303 : vector<8x128xf32>
    %305 = arith.addf %302, %304 : vector<8x128xf32>
    %306 = math.tanh %305 : vector<8x128xf32>
    %cst_141 = arith.constant 1.000000e+00 : f32
    %307 = vector.broadcast %cst_141 : f32 to vector<8x128xf32>
    %308 = arith.subf %307, %301 : vector<8x128xf32>
    %309 = arith.mulf %308, %306 : vector<8x128xf32>
    %310 = arith.mulf %301, %262 : vector<8x128xf32>
    %311 = arith.addf %309, %310 : vector<8x128xf32>
    %312 = arith.truncf %311 : vector<8x128xf32> to vector<8x128xbf16>
    %c0_142 = arith.constant 0 : index
    %c0_143 = arith.constant 0 : index
    %313 = vector.load %arg13[%c0_142, %c0_143] : memref<128x128xbf16, #tpu.memory_space<vmem>>, vector<128x128xbf16>
    %cst_144 = arith.constant dense<0.000000e+00> : vector<8x128xf32>
    %314 = tpu.matmul %312, %313, %cst_144 {dimension_numbers = #tpu.dot_dimension_numbers<[1], [0], [0], [1], [0, 0, 1, 1], [], []>} : vector<8x128xbf16>, vector<128x128xbf16>, vector<8x128xf32> -> vector<8x128xf32>
    %315 = arith.addf %314, %22 : vector<8x128xf32>
    %316 = math.tanh %315 : vector<8x128xf32>
    %317 = arith.truncf %316 : vector<8x128xf32> to vector<8x128xbf16>
    %c0_145 = arith.constant 0 : index
    %c0_146 = arith.constant 0 : index
    %318 = vector.load %arg15[%c0_145, %c0_146] : memref<128x8xbf16, #tpu.memory_space<vmem>>, vector<128x8xbf16>
    %cst_147 = arith.constant dense<0.000000e+00> : vector<8x8xf32>
    %319 = tpu.matmul %317, %318, %cst_147 {dimension_numbers = #tpu.dot_dimension_numbers<[1], [0], [0], [1], [0, 0, 1, 1], [], []>} : vector<8x128xbf16>, vector<128x8xbf16>, vector<8x8xf32> -> vector<8x8xf32>
    %320 = arith.addf %319, %25 : vector<8x8xf32>
    %c40_148 = arith.constant 40 : index
    %c0_149 = arith.constant 0 : index
    %321 = vector.load %arg21[%c40_148, %c0_149] : memref<48x8xf32, #tpu.memory_space<vmem>>, vector<8x8xf32>
    tpu.vector_store %arg21[%c40_148, %c0_149], %320 {strides = array<i32>} : memref<48x8xf32, #tpu.memory_space<vmem>>, vector<8x8xf32>,
    %c0_150 = arith.constant 0 : index
    %c0_151 = arith.constant 0 : index
    %322 = vector.load %arg23[%c0_150, %c0_151] : memref<8x128xf32, #tpu.memory_space<vmem>>, vector<8x128xf32>
    tpu.vector_store %arg23[%c0_150, %c0_151], %311 {strides = array<i32>} : memref<8x128xf32, #tpu.memory_space<vmem>>, vector<8x128xf32>,
    %c0_152 = arith.constant 0 : index
    %c0_153 = arith.constant 0 : index
    %323 = vector.load %arg24[%c0_152, %c0_153] : memref<8x8xf32, #tpu.memory_space<vmem>>, vector<8x8xf32>
    tpu.vector_store %arg24[%c0_152, %c0_153], %320 {strides = array<i32>} : memref<8x8xf32, #tpu.memory_space<vmem>>, vector<8x8xf32>,
    %c0_i32_154 = arith.constant 0 : i32
    %324 = arith.cmpi eq, %arg0, %c0_i32_154 : i32
    %325 = arith.extui %324 : i1 to i32
    %c0_i32_155 = arith.constant 0 : i32
    %326 = arith.cmpi ne, %325, %c0_i32_155 : i32
    scf.if %326 {
      %327 = arith.truncf %311 : vector<8x128xf32> to vector<8x128xbf16>
      %c0_156 = arith.constant 0 : index
      %c0_157 = arith.constant 0 : index
      %328 = vector.load %arg17[%c0_156, %c0_157] : memref<128x50xbf16, #tpu.memory_space<vmem>>, vector<128x50xbf16>
      %cst_158 = arith.constant dense<0.000000e+00> : vector<8x50xf32>
      %329 = tpu.matmul %327, %328, %cst_158 {dimension_numbers = #tpu.dot_dimension_numbers<[1], [0], [0], [1], [0, 0, 1, 1], [], []>} : vector<8x128xbf16>, vector<128x50xbf16>, vector<8x50xf32> -> vector<8x50xf32>
      %c0_159 = arith.constant 0 : index
      %c0_160 = arith.constant 0 : index
      %330 = vector.load %arg18[%c0_159, %c0_160] : memref<1x50xf32, #tpu.memory_space<vmem>>, vector<1x50xf32>
      %331 = vector.broadcast %330 : vector<1x50xf32> to vector<8x50xf32>
      %332 = arith.addf %329, %331 : vector<8x50xf32>
      %cst_161 = arith.constant 0.000000e+00 : f32
      %333 = vector.broadcast %cst_161 : f32 to vector<8x50xf32>
      %334 = arith.maximumf %332, %333 : vector<8x50xf32>
      %c0_162 = arith.constant 0 : index
      %c0_163 = arith.constant 0 : index
      %335 = vector.load %arg19[%c0_162, %c0_163] : memref<1x50xf32, #tpu.memory_space<vmem>>, vector<1x50xf32>
      %336 = vector.broadcast %335 : vector<1x50xf32> to vector<8x50xf32>
      %337 = arith.mulf %334, %336 : vector<8x50xf32>
      %cst_164 = arith.constant dense<0.000000e+00> : vector<8xf32>
      %338 = vector.multi_reduction <add>, %337, %cst_164 [1] : vector<8x50xf32> to vector<8xf32>
      %339 = vector.shape_cast %338 : vector<8xf32> to vector<8x1xf32>
      %c0_165 = arith.constant 0 : index
      %c0_166 = arith.constant 0 : index
      %340 = vector.load %arg20[%c0_165, %c0_166] : memref<1x1xf32, #tpu.memory_space<vmem>>, vector<1x1xf32>
      %341 = vector.broadcast %340 : vector<1x1xf32> to vector<8x1xf32>
      %342 = arith.addf %339, %341 : vector<8x1xf32>
      %c0_167 = arith.constant 0 : index
      %c0_168 = arith.constant 0 : index
      %343 = vector.load %arg22[%c0_167, %c0_168] : memref<8x1xf32, #tpu.memory_space<vmem>>, vector<8x1xf32>
      tpu.vector_store %arg22[%c0_167, %c0_168], %342 {strides = array<i32>} : memref<8x1xf32, #tpu.memory_space<vmem>>, vector<8x1xf32>,
    } else {
    }
    return
  }
  func.func @transform_0(%arg0: i32) -> (i32, i32) {
    %c0_i32 = arith.constant 0 : i32
    %c0_i32_0 = arith.constant 0 : i32
    return %arg0, %c0_i32 : i32, i32
  }
  func.func @transform_1(%arg0: i32) -> (i32, i32) {
    %c0_i32 = arith.constant 0 : i32
    %c0_i32_0 = arith.constant 0 : i32
    return %arg0, %c0_i32 : i32, i32
  }
  func.func @transform_2(%arg0: i32) -> (i32, i32) {
    %c0_i32 = arith.constant 0 : i32
    %c0_i32_0 = arith.constant 0 : i32
    %c0_i32_1 = arith.constant 0 : i32
    return %c0_i32, %c0_i32_0 : i32, i32
  }
  func.func @transform_3(%arg0: i32) -> (i32, i32) {
    %c0_i32 = arith.constant 0 : i32
    %c0_i32_0 = arith.constant 0 : i32
    %c0_i32_1 = arith.constant 0 : i32
    return %c0_i32, %c0_i32_0 : i32, i32
  }
  func.func @transform_4(%arg0: i32) -> (i32, i32) {
    %c0_i32 = arith.constant 0 : i32
    %c0_i32_0 = arith.constant 0 : i32
    %c0_i32_1 = arith.constant 0 : i32
    return %c0_i32, %c0_i32_0 : i32, i32
  }
  func.func @transform_5(%arg0: i32) -> (i32, i32) {
    %c0_i32 = arith.constant 0 : i32
    %c0_i32_0 = arith.constant 0 : i32
    %c0_i32_1 = arith.constant 0 : i32
    return %c0_i32, %c0_i32_0 : i32, i32
  }
  func.func @transform_6(%arg0: i32) -> (i32, i32) {
    %c0_i32 = arith.constant 0 : i32
    %c0_i32_0 = arith.constant 0 : i32
    %c0_i32_1 = arith.constant 0 : i32
    return %c0_i32, %c0_i32_0 : i32, i32
  }
  func.func @transform_7(%arg0: i32) -> (i32, i32) {
    %c0_i32 = arith.constant 0 : i32
    %c0_i32_0 = arith.constant 0 : i32
    %c0_i32_1 = arith.constant 0 : i32
    return %c0_i32, %c0_i32_0 : i32, i32
  }
  func.func @transform_8(%arg0: i32) -> (i32, i32) {
    %c0_i32 = arith.constant 0 : i32
    %c0_i32_0 = arith.constant 0 : i32
    %c0_i32_1 = arith.constant 0 : i32
    return %c0_i32, %c0_i32_0 : i32, i32
  }
  func.func @transform_9(%arg0: i32) -> (i32, i32) {
    %c0_i32 = arith.constant 0 : i32
    %c0_i32_0 = arith.constant 0 : i32
    %c0_i32_1 = arith.constant 0 : i32
    return %c0_i32, %c0_i32_0 : i32, i32
  }
  func.func @transform_10(%arg0: i32) -> (i32, i32) {
    %c0_i32 = arith.constant 0 : i32
    %c0_i32_0 = arith.constant 0 : i32
    %c0_i32_1 = arith.constant 0 : i32
    return %c0_i32, %c0_i32_0 : i32, i32
  }
  func.func @transform_11(%arg0: i32) -> (i32, i32) {
    %c0_i32 = arith.constant 0 : i32
    %c0_i32_0 = arith.constant 0 : i32
    %c0_i32_1 = arith.constant 0 : i32
    return %c0_i32, %c0_i32_0 : i32, i32
  }
  func.func @transform_12(%arg0: i32) -> (i32, i32) {
    %c0_i32 = arith.constant 0 : i32
    %c0_i32_0 = arith.constant 0 : i32
    %c0_i32_1 = arith.constant 0 : i32
    return %c0_i32, %c0_i32_0 : i32, i32
  }
  func.func @transform_13(%arg0: i32) -> (i32, i32) {
    %c0_i32 = arith.constant 0 : i32
    %c0_i32_0 = arith.constant 0 : i32
    %c0_i32_1 = arith.constant 0 : i32
    return %c0_i32, %c0_i32_0 : i32, i32
  }
  func.func @transform_14(%arg0: i32) -> (i32, i32) {
    %c0_i32 = arith.constant 0 : i32
    %c0_i32_0 = arith.constant 0 : i32
    %c0_i32_1 = arith.constant 0 : i32
    return %c0_i32, %c0_i32_0 : i32, i32
  }
  func.func @transform_15(%arg0: i32) -> (i32, i32) {
    %c0_i32 = arith.constant 0 : i32
    %c0_i32_0 = arith.constant 0 : i32
    %c0_i32_1 = arith.constant 0 : i32
    return %c0_i32, %c0_i32_0 : i32, i32
  }
  func.func @transform_16(%arg0: i32) -> (i32, i32) {
    %c0_i32 = arith.constant 0 : i32
    %c0_i32_0 = arith.constant 0 : i32
    %c0_i32_1 = arith.constant 0 : i32
    return %c0_i32, %c0_i32_0 : i32, i32
  }
  func.func @transform_17(%arg0: i32) -> (i32, i32) {
    %c0_i32 = arith.constant 0 : i32
    %c0_i32_0 = arith.constant 0 : i32
    %c0_i32_1 = arith.constant 0 : i32
    return %c0_i32, %c0_i32_0 : i32, i32
  }
  func.func @transform_18(%arg0: i32) -> (i32, i32) {
    %c0_i32 = arith.constant 0 : i32
    %c0_i32_0 = arith.constant 0 : i32
    %c0_i32_1 = arith.constant 0 : i32
    return %c0_i32, %c0_i32_0 : i32, i32
  }
  func.func @transform_19(%arg0: i32) -> (i32, i32) {
    %c0_i32 = arith.constant 0 : i32
    %c0_i32_0 = arith.constant 0 : i32
    %c0_i32_1 = arith.constant 0 : i32
    return %c0_i32, %c0_i32_0 : i32, i32
  }
  func.func @transform_20(%arg0: i32) -> (i32, i32) {
    %c0_i32 = arith.constant 0 : i32
    %c0_i32_0 = arith.constant 0 : i32
    return %arg0, %c0_i32 : i32, i32
  }
  func.func @transform_21(%arg0: i32) -> (i32, i32) {
    %c0_i32 = arith.constant 0 : i32
    %c0_i32_0 = arith.constant 0 : i32
    %c0_i32_1 = arith.constant 0 : i32
    return %c0_i32, %c0_i32_0 : i32, i32
  }
}

</mosaic_0001>

<llo_original>
// kernel: gru_teach_forward.1
$region0: #{gru_teach_forward.1}
  #allocation0 [shape = 'u32[]', space=smem, size = 0x4, offset = 0x4, fixed_abs, tag = 'smem constant byte address 0x4 - core index']
  #allocation1 [shape = 'u32[144,128]{1,0:T(1,128)}', space=vmem, size = 0x12000, scoped, tag = 'internal scratch']
  #allocation2 [shape = 'f32[8,128]{1,0:T(8,128)}', space=vmem, size = 0x1000, scoped, tag = 'scratch operand']
  #allocation3 [shape = 'f32[8,8]{1,0:T(8,128)}', space=vmem, size = 0x1000, scoped, tag = 'scratch operand']
  #allocation4 [shape = 'f32[48,384]{1,0:T(8,128)}', space=vmem, size = 0x12000, scoped, tag = 'scratch operand']
  #allocation5 [shape = 'f32[1,1]{1,0:T(1,128)S(1)}', space=vmem, size = 0x200, scoped, tag = 'scoped memory for gru_teach_forward.1']
  %s0 = inlined_call_operand.vmem [shape: f32[48,8], index: 0, kind: input, shape index: {}]
  %s1 = inlined_call_operand.vmem [shape: f32[48,8], index: 1, kind: input, shape index: {}]
  %s2 = inlined_call_operand.vmem [shape: f32[8,16], index: 2, kind: input, shape index: {}]
  %s3 = inlined_call_operand.vmem [shape: bf16[16,100], index: 3, kind: input, shape index: {}]
  %s4 = inlined_call_operand.vmem [shape: f32[1,100], index: 4, kind: input, shape index: {}]
  %s5 = inlined_call_operand.vmem [shape: bf16[100,128], index: 5, kind: input, shape index: {}]
  %s6 = inlined_call_operand.vmem [shape: f32[1,128], index: 6, kind: input, shape index: {}]
  %s7 = inlined_call_operand.vmem [shape: bf16[8,384], index: 7, kind: input, shape index: {}]
  %s8 = inlined_call_operand.vmem [shape: bf16[8,384], index: 8, kind: input, shape index: {}]
  %s9 = inlined_call_operand.vmem [shape: f32[1,384], index: 9, kind: input, shape index: {}]
  %s10 = inlined_call_operand.vmem [shape: bf16[128,384], index: 10, kind: input, shape index: {}]
  %s11 = inlined_call_operand.vmem [shape: f32[1,384], index: 11, kind: input, shape index: {}]
  %s12 = inlined_call_operand.vmem [shape: bf16[128,128], index: 12, kind: input, shape index: {}]
  %s13 = inlined_call_operand.vmem [shape: f32[1,128], index: 13, kind: input, shape index: {}]
  %s14 = inlined_call_operand.vmem [shape: bf16[128,8], index: 14, kind: input, shape index: {}]
  %s15 = inlined_call_operand.vmem [shape: f32[1,8], index: 15, kind: input, shape index: {}]
  %s16 = inlined_call_operand.vmem [shape: bf16[128,50], index: 16, kind: input, shape index: {}]
  %s17 = inlined_call_operand.vmem [shape: f32[1,50], index: 17, kind: input, shape index: {}]
  %s18 = inlined_call_operand.vmem [shape: f32[1,50], index: 18, kind: input, shape index: {}]
  %s19 = inlined_call_operand.<no memory space> [shape: f32[1,1], index: 19, kind: input, shape index: {}]
  %s20 = inlined_call_operand.vmem [shape: f32[48,8], index: 20, kind: output, shape index: {0}]
  %s21 = inlined_call_operand.vmem [shape: f32[8,1], index: 21, kind: output, shape index: {1}]
  %22 = xla_tuple %s20, %s21
  %s23 = sld [smem:[#allocation0]]
  $region106: #{gru_teach_forward.1} parent=0
    _
  %s25 = ssub.s32 1, %s23
  %s26 = scalar_select 0, %s25, %s23
  %v27 = vstv %s19
  %28 = vst [vmem:[#allocation5] sm:$0x1] %v27
  // Predicated region
  $region2: #{gru_teach_forward.1} parent=0 // pred_check
    _
  $region3: #{gru_teach_forward.1} parent=0 // pred_check_branch
    %30 = sbr.rel (0) target = $region5
  $region4: #{gru_teach_forward.1} parent=0 // pred_region
    _
  $region5: #{gru_teach_forward.1} parent=0 // pred_fallthru
    _
  // Predicated region
  $region6: #{gru_teach_forward.1} parent=0 // pred_check
    _
  $region7: #{gru_teach_forward.1} parent=0 // pred_check_branch
    %32 = sbr.rel (0) target = $region9
  $region8: #{gru_teach_forward.1} parent=0 // pred_region
    _
  $region9: #{gru_teach_forward.1} parent=0 // pred_fallthru
    _
  // Predicated region
  $region10: #{gru_teach_forward.1} parent=0 // pred_check
    _
  $region11: #{gru_teach_forward.1} parent=0 // pred_check_branch
    %34 = sbr.rel (0) target = $region13
  $region12: #{gru_teach_forward.1} parent=0 // pred_region
    _
  $region13: #{gru_teach_forward.1} parent=0 // pred_fallthru
    _
  // Predicated region
  $region14: #{gru_teach_forward.1} parent=0 // pred_check
    _
  $region15: #{gru_teach_forward.1} parent=0 // pred_check_branch
    %36 = sbr.rel (0) target = $region17
  $region16: #{gru_teach_forward.1} parent=0 // pred_region
    _
  $region17: #{gru_teach_forward.1} parent=0 // pred_fallthru
    _
  // Predicated region
  $region18: #{gru_teach_forward.1} parent=0 // pred_check
    _
  $region19: #{gru_teach_forward.1} parent=0 // pred_check_branch
    %38 = sbr.rel (0) target = $region21
  $region20: #{gru_teach_forward.1} parent=0 // pred_region
    _
  $region21: #{gru_teach_forward.1} parent=0 // pred_fallthru
    _
  // Predicated region
  $region22: #{gru_teach_forward.1} parent=0 // pred_check
    _
  $region23: #{gru_teach_forward.1} parent=0 // pred_check_branch
    %40 = sbr.rel (0) target = $region25
  $region24: #{gru_teach_forward.1} parent=0 // pred_region
    _
  $region25: #{gru_teach_forward.1} parent=0 // pred_fallthru
    _
  // Predicated region
  $region26: #{gru_teach_forward.1} parent=0 // pred_check
    _
  $region27: #{gru_teach_forward.1} parent=0 // pred_check_branch
    %42 = sbr.rel (0) target = $region29
  $region28: #{gru_teach_forward.1} parent=0 // pred_region
    _
  $region29: #{gru_teach_forward.1} parent=0 // pred_fallthru
    _
  // Predicated region
  $region30: #{gru_teach_forward.1} parent=0 // pred_check
    _
  $region31: #{gru_teach_forward.1} parent=0 // pred_check_branch
    %44 = sbr.rel (0) target = $region33
  $region32: #{gru_teach_forward.1} parent=0 // pred_region
    _
  $region33: #{gru_teach_forward.1} parent=0 // pred_fallthru
    _
  // Predicated region
  $region34: #{gru_teach_forward.1} parent=0 // pred_check
    _
  $region35: #{gru_teach_forward.1} parent=0 // pred_check_branch
    %46 = sbr.rel (0) target = $region37
  $region36: #{gru_teach_forward.1} parent=0 // pred_region
    _
  $region37: #{gru_teach_forward.1} parent=0 // pred_fallthru
    _
  // Predicated region
  $region38: #{gru_teach_forward.1} parent=0 // pred_check
    _
  $region39: #{gru_teach_forward.1} parent=0 // pred_check_branch
    %48 = sbr.rel (0) target = $region41
  $region40: #{gru_teach_forward.1} parent=0 // pred_region
    _
  $region41: #{gru_teach_forward.1} parent=0 // pred_fallthru
    _
  // Predicated region
  $region42: #{gru_teach_forward.1} parent=0 // pred_check
    _
  $region43: #{gru_teach_forward.1} parent=0 // pred_check_branch
    %50 = sbr.rel (0) target = $region45
  $region44: #{gru_teach_forward.1} parent=0 // pred_region
    _
  $region45: #{gru_teach_forward.1} parent=0 // pred_fallthru
    _
  // Predicated region
  $region46: #{gru_teach_forward.1} parent=0 // pred_check
    _
  $region47: #{gru_teach_forward.1} parent=0 // pred_check_branch
    %52 = sbr.rel (0) target = $region49
  $region48: #{gru_teach_forward.1} parent=0 // pred_region
    _
  $region49: #{gru_teach_forward.1} parent=0 // pred_fallthru
    _
  // Predicated region
  $region50: #{gru_teach_forward.1} parent=0 // pred_check
    _
  $region51: #{gru_teach_forward.1} parent=0 // pred_check_branch
    %54 = sbr.rel (0) target = $region53
  $region52: #{gru_teach_forward.1} parent=0 // pred_region
    _
  $region53: #{gru_teach_forward.1} parent=0 // pred_fallthru
    _
  // Predicated region
  $region54: #{gru_teach_forward.1} parent=0 // pred_check
    _
  $region55: #{gru_teach_forward.1} parent=0 // pred_check_branch
    %56 = sbr.rel (0) target = $region57
  $region56: #{gru_teach_forward.1} parent=0 // pred_region
    _
  $region57: #{gru_teach_forward.1} parent=0 // pred_fallthru
    _
  // Predicated region
  $region58: #{gru_teach_forward.1} parent=0 // pred_check
    _
  $region59: #{gru_teach_forward.1} parent=0 // pred_check_branch
    %58 = sbr.rel (0) target = $region61
  $region60: #{gru_teach_forward.1} parent=0 // pred_region
    _
  $region61: #{gru_teach_forward.1} parent=0 // pred_fallthru
    _
  // Predicated region
  $region62: #{gru_teach_forward.1} parent=0 // pred_check
    _
  $region63: #{gru_teach_forward.1} parent=0 // pred_check_branch
    %60 = sbr.rel (0) target = $region65
  $region64: #{gru_teach_forward.1} parent=0 // pred_region
    _
  $region65: #{gru_teach_forward.1} parent=0 // pred_fallthru
    _
  // Predicated region
  $region66: #{gru_teach_forward.1} parent=0 // pred_check
    _
  $region67: #{gru_teach_forward.1} parent=0 // pred_check_branch
    %62 = sbr.rel (0) target = $region69
  $region68: #{gru_teach_forward.1} parent=0 // pred_region
    _
  $region69: #{gru_teach_forward.1} parent=0 // pred_fallthru
    _
  // Predicated region
  $region70: #{gru_teach_forward.1} parent=0 // pred_check
    _
  $region71: #{gru_teach_forward.1} parent=0 // pred_check_branch
    %64 = sbr.rel (0) target = $region73
  $region72: #{gru_teach_forward.1} parent=0 // pred_region
    _
  $region73: #{gru_teach_forward.1} parent=0 // pred_fallthru
    _
  // Predicated region
  $region74: #{gru_teach_forward.1} parent=0 // pred_check
    _
  $region75: #{gru_teach_forward.1} parent=0 // pred_check_branch
    %66 = sbr.rel (0) target = $region77
  $region76: #{gru_teach_forward.1} parent=0 // pred_region
    _
  $region77: #{gru_teach_forward.1} parent=0 // pred_fallthru
    _
  // Predicated region
  $region78: #{gru_teach_forward.1} parent=0 // pred_check
    _
  $region79: #{gru_teach_forward.1} parent=0 // pred_check_branch
    %68 = sbr.rel (0) target = $region81
  $region80: #{gru_teach_forward.1} parent=0 // pred_region
    _
  $region81: #{gru_teach_forward.1} parent=0 // pred_fallthru
    _
  %p70 = scmp.eq.s32.totalorder 0, 0
  // Predicated region
  $region82: #{gru_teach_forward.1} parent=0 // pred_check
    %p71 = pneg %p70
  $region83: #{gru_teach_forward.1} parent=0 // pred_check_branch
    %73 = sbr.rel (%p71) target = $region85
  $region84: #{gru_teach_forward.1} parent=0 // pred_region
    %v74 = vld [vmem:[%s2] sm:$0xff]
    %v75 = vpack.c.bf16 %v74, %v74
    %v76 = vld [vmem:[%s3] sm:$0xf]
    %v77 = vld [vmem:[%s3 + $0x4] sm:$0xf]
    %v78 = vld [vmem:[%s4] sm:$0x1]
    %v80 = vlaneseq
    %v81 = vshrl.u32 %v80, 7
    %v82 = vsub.s32 0, %v81
    %v83 = vrot.slane %v78, %v82
    %v87 = vunpack.c.l.b16 %v76
    %v88 = vunpack.c.l.b16 %v77
    %v89 = vpack.c.b16 %v88, %v87
    %vm91 = vcmask 130048
    %v93 = vsel %vm91, %v75, 0
    %95 = vmatprep.subr.bf16.mxu0 0
    %96 = vmatpush1.bf16.msra.mxu0 %v89
    %97 = vmatprep.subr.bf16.mxu0 0
    %98 = vmatpush1.bf16.msra.mxu0 0
    %99 = vmatprep.subr.bf16.mxu0 0
    %100 = vmatpush1.bf16.msra.mxu0 0
    %101 = vmatprep.subr.bf16.mxu0 0
    %102 = vmatpush1.bf16.msra.mxu0 0
    %103 = vmatprep.subr.bf16.mxu0 0
    %104 = vmatpush1.bf16.msra.mxu0 0
    %105 = vmatprep.subr.bf16.mxu0 0
    %106 = vmatpush1.bf16.msra.mxu0 0
    %107 = vmatprep.subr.bf16.mxu0 0
    %108 = vmatpush1.bf16.msra.mxu0 0
    %109 = vmatprep.subr.bf16.mxu0 0
    %110 = vmatpush1.bf16.msra.mxu0 0
    %111 = vmatprep.subr.bf16.mxu0 0
    %112 = vmatpush1.bf16.msra.mxu0 0
    %113 = vmatprep.subr.bf16.mxu0 0
    %114 = vmatpush1.bf16.msra.mxu0 0
    %115 = vmatprep.subr.bf16.mxu0 0
    %116 = vmatpush1.bf16.msra.mxu0 0
    %117 = vmatprep.subr.bf16.mxu0 0
    %118 = vmatpush1.bf16.msra.mxu0 0
    %119 = vmatprep.subr.bf16.mxu0 0
    %120 = vmatpush1.bf16.msra.mxu0 0
    %121 = vmatprep.subr.bf16.mxu0 0
    %122 = vmatpush1.bf16.msra.mxu0 0
    %123 = vmatprep.subr.bf16.mxu0 0
    %124 = vmatpush1.bf16.msra.mxu0 0
    %125 = vmatprep.subr.bf16.mxu0 0
    %126 = vmatpush1.bf16.msra.mxu0 0
    %127 = vmatprep.mubr.bf16.mxu0 0
    %128 = vmatmul.mubr.bf16.gmra.mrb[0].mxu0 %v93
    %v129 = vpop.f32.mrb[0].mxu0
    %v130 = vadd.f32 %v83, %v129
    %v131 = vpop.f32.mrb[0].mxu0
    %v132 = vpop.f32.mrb[0].mxu0
    %v133 = vpop.f32.mrb[0].mxu0
    %134 = vdwg.mxu0
    %v135 = vtanh.pop %v130
    %v136 = vpack.c.bf16 %v135, %v135
    %v137 = vld [vmem:[%s5] sm:$0xf]
    %v138 = vld [vmem:[%s5 + $0x4] sm:$0xf]
    %v139 = vld [vmem:[%s5 + $0x8] sm:$0xf]
    %v140 = vld [vmem:[%s5 + $0xc] sm:$0xf]
    %v141 = vld [vmem:[%s5 + $0x10] sm:$0xf]
    %v142 = vld [vmem:[%s5 + $0x14] sm:$0xf]
    %v143 = vld [vmem:[%s5 + $0x18] sm:$0xf]
    %v144 = vld [vmem:[%s5 + $0x1c] sm:$0xf]
    %v145 = vld [vmem:[%s5 + $0x20] sm:$0xf]
    %v146 = vld [vmem:[%s5 + $0x24] sm:$0xf]
    %v147 = vld [vmem:[%s5 + $0x28] sm:$0xf]
    %v148 = vld [vmem:[%s5 + $0x2c] sm:$0xf]
    %v149 = vld [vmem:[%s5 + $0x30] sm:$0x3]
    %v150 = vld [vmem:[%s6] sm:$0x1]
    %v152 = vlaneseq
    %v153 = vshrl.u32 %v152, 7
    %v154 = vsub.s32 0, %v153
    %v155 = vrot.slane %v150, %v154
    %v170 = vunpack.c.l.b16 %v137
    %v171 = vunpack.c.l.b16 %v138
    %v172 = vunpack.c.l.b16 %v139
    %v173 = vunpack.c.l.b16 %v140
    %v174 = vunpack.c.l.b16 %v141
    %v175 = vunpack.c.l.b16 %v142
    %v176 = vunpack.c.l.b16 %v143
    %v177 = vunpack.c.l.b16 %v144
    %v178 = vunpack.c.l.b16 %v145
    %v179 = vunpack.c.l.b16 %v146
    %v180 = vunpack.c.l.b16 %v147
    %v181 = vunpack.c.l.b16 %v148
    %v182 = vunpack.c.l.b16 %v149
    %v183 = vpack.c.b16 %v171, %v170
    %v184 = vpack.c.b16 %v173, %v172
    %v185 = vpack.c.b16 %v175, %v174
    %v186 = vpack.c.b16 %v177, %v176
    %v187 = vpack.c.b16 %v179, %v178
    %v188 = vpack.c.b16 %v181, %v180
    %v189 = vpack.c.b16 %v182, %v182
    %vm196 = vcmask 818176
    %v198 = vsel %vm196, %v136, 0
    %vm200 = vcmask 1041408
    %v202 = vsel %vm200, %v189, 0
    %204 = vmatprep.subr.bf16.mxu0 0
    %205 = vmatpush1.bf16.msra.mxu0 %v183
    %206 = vmatprep.subr.bf16.mxu0 0
    %207 = vmatpush1.bf16.msra.mxu0 %v184
    %208 = vmatprep.subr.bf16.mxu0 0
    %209 = vmatpush1.bf16.msra.mxu0 %v185
    %210 = vmatprep.subr.bf16.mxu0 0
    %211 = vmatpush1.bf16.msra.mxu0 %v186
    %212 = vmatprep.subr.bf16.mxu0 0
    %213 = vmatpush1.bf16.msra.mxu0 %v187
    %214 = vmatprep.subr.bf16.mxu0 0
    %215 = vmatpush1.bf16.msra.mxu0 %v188
    %216 = vmatprep.subr.bf16.mxu0 0
    %217 = vmatpush1.bf16.msra.mxu0 %v202
    %218 = vmatprep.subr.bf16.mxu0 0
    %219 = vmatpush1.bf16.msra.mxu0 0
    %220 = vmatprep.subr.bf16.mxu0 0
    %221 = vmatpush1.bf16.msra.mxu0 0
    %222 = vmatprep.subr.bf16.mxu0 0
    %223 = vmatpush1.bf16.msra.mxu0 0
    %224 = vmatprep.subr.bf16.mxu0 0
    %225 = vmatpush1.bf16.msra.mxu0 0
    %226 = vmatprep.subr.bf16.mxu0 0
    %227 = vmatpush1.bf16.msra.mxu0 0
    %228 = vmatprep.subr.bf16.mxu0 0
    %229 = vmatpush1.bf16.msra.mxu0 0
    %230 = vmatprep.subr.bf16.mxu0 0
    %231 = vmatpush1.bf16.msra.mxu0 0
    %232 = vmatprep.subr.bf16.mxu0 0
    %233 = vmatpush1.bf16.msra.mxu0 0
    %234 = vmatprep.subr.bf16.mxu0 0
    %235 = vmatpush1.bf16.msra.mxu0 0
    %236 = vmatprep.mubr.bf16.mxu0 0
    %237 = vmatmul.mubr.bf16.gmra.mrb[0].mxu0 %v198
    %v238 = vpop.f32.mrb[0].mxu0
    %v239 = vadd.f32 %v155, %v238
    %v240 = vpop.f32.mrb[0].mxu0
    %v241 = vpop.f32.mrb[0].mxu0
    %v242 = vpop.f32.mrb[0].mxu0
    %243 = vdwg.mxu0
    %244 = vst [vmem:[#allocation2] sm:$0xff] %v239
    %vm245 = vcmask 64512
    %246 = vst.msk [vmem:[#allocation3] sm:$0xff] %vm245, 0.0
  $region85: #{gru_teach_forward.1} parent=0 // pred_fallthru
    _
  %v247 = vld [vmem:[%s0] sm:$0xff]
  %v248 = vld [vmem:[%s0 + $0x8] sm:$0xff]
  %v249 = vld [vmem:[%s0 + $0x10] sm:$0xff]
  %v250 = vld [vmem:[%s0 + $0x18] sm:$0xff]
  %v251 = vld [vmem:[%s0 + $0x20] sm:$0xff]
  %v252 = vld [vmem:[%s0 + $0x28] sm:$0xff]
  %v253 = vld [vmem:[%s1] sm:$0xff]
  %v254 = vld [vmem:[%s1 + $0x8] sm:$0xff]
  %v255 = vld [vmem:[%s1 + $0x10] sm:$0xff]
  %v256 = vld [vmem:[%s1 + $0x18] sm:$0xff]
  %v257 = vld [vmem:[%s1 + $0x20] sm:$0xff]
  %v258 = vld [vmem:[%s1 + $0x28] sm:$0xff]
  %v259 = vmul.f32 %v253, %v247
  %v260 = vmul.f32 %v254, %v248
  %v261 = vmul.f32 %v255, %v249
  %v262 = vmul.f32 %v256, %v250
  %v263 = vmul.f32 %v257, %v251
  %v264 = vmul.f32 %v258, %v252
  %v265 = vpack.c.bf16 %v260, %v259
  %v266 = vpack.c.bf16 %v262, %v261
  %v267 = vpack.c.bf16 %v264, %v263
  %v268 = vld [vmem:[%s7] sm:$0xff]
  %v269 = vld [vmem:[%s7 + $0x8] sm:$0xf]
  %v270 = vpack.c.bf16 %v254, %v253
  %v271 = vpack.c.bf16 %v256, %v255
  %v272 = vpack.c.bf16 %v258, %v257
  %v273 = vld [vmem:[%s8] sm:$0xff]
  %v274 = vld [vmem:[%s8 + $0x8] sm:$0xf]
  %v277 = vunpack.c.l.b16 %v273
  %v278 = vunpack.c.h.b16 %v273
  %v279 = vunpack.c.l.b16 %v274
  %v280 = vpack.c.b16 %v277, %v277
  %v281 = vpack.c.b16 %v278, %v278
  %v282 = vpack.c.b16 %v279, %v279
  %vm283 = vcmask 64512
  %v285 = vsel %vm283, %v270, 0
  %v288 = vsel %vm283, %v271, 0
  %v291 = vsel %vm283, %v272, 0
  %vm293 = vcmask 1043456
  %v295 = vsel %vm293, %v280, 0
  %v298 = vsel %vm293, %v281, 0
  %v301 = vsel %vm293, %v282, 0
  %303 = vmatprep.subr.bf16.mxu0 %v298
  %304 = vmatpush1.bf16.msra.mxu0 %v295
  %305 = vmatprep.subr.bf16.mxu0 0
  %306 = vmatpush1.bf16.msra.mxu0 0
  %307 = vmatprep.subr.bf16.mxu0 0
  %308 = vmatpush1.bf16.msra.mxu0 0
  %309 = vmatprep.subr.bf16.mxu0 0
  %310 = vmatpush1.bf16.msra.mxu0 0
  %311 = vmatprep.subr.bf16.mxu0 0
  %312 = vmatpush1.bf16.msra.mxu0 0
  %313 = vmatprep.subr.bf16.mxu0 0
  %314 = vmatpush1.bf16.msra.mxu0 0
  %315 = vmatprep.subr.bf16.mxu0 0
  %316 = vmatpush1.bf16.msra.mxu0 0
  %317 = vmatprep.subr.bf16.mxu0 0
  %318 = vmatpush1.bf16.msra.mxu0 0
  %319 = vmatprep.subr.bf16.mxu0 0
  %320 = vmatpush1.bf16.msra.mxu0 0
  %321 = vmatprep.subr.bf16.mxu0 0
  %322 = vmatpush1.bf16.msra.mxu0 0
  %323 = vmatprep.subr.bf16.mxu0 0
  %324 = vmatpush1.bf16.msra.mxu0 0
  %325 = vmatprep.subr.bf16.mxu0 0
  %326 = vmatpush1.bf16.msra.mxu0 0
  %327 = vmatprep.subr.bf16.mxu0 0
  %328 = vmatpush1.bf16.msra.mxu0 0
  %329 = vmatprep.subr.bf16.mxu0 0
  %330 = vmatpush1.bf16.msra.mxu0 0
  %331 = vmatprep.subr.bf16.mxu0 0
  %332 = vmatpush1.bf16.msra.mxu0 0
  %333 = vmatprep.subr.bf16.mxu0 0
  %334 = vmatpush1.bf16.msra.mxu0 0
  %335 = vmatprep.mubr.bf16.mxu0 0
  %336 = vmatmul.mubr.bf16.gmra.mrb[0].mxu0 %v285
  %v337 = vpop.f32.mrb[0].mxu0
  %v338 = vadd.f32 0.0, %v337
  %v339 = vpop.f32.mrb[0].mxu0
  %v340 = vadd.f32 0.0, %v339
  %v341 = vpop.f32.mrb[0].mxu0
  %v342 = vadd.f32 0.0, %v341
  %v343 = vpop.f32.mrb[0].mxu0
  %v344 = vadd.f32 0.0, %v343
  %345 = vmatprep.mubr.bf16.mxu0 0
  %346 = vmatmul.mubr.bf16.gmra.mrb[0].mxu0 %v288
  %v347 = vpop.f32.mrb[0].mxu0
  %v348 = vadd.f32 0.0, %v347
  %v349 = vpop.f32.mrb[0].mxu0
  %v350 = vadd.f32 0.0, %v349
  %v351 = vpop.f32.mrb[0].mxu0
  %v352 = vadd.f32 0.0, %v351
  %v353 = vpop.f32.mrb[0].mxu0
  %v354 = vadd.f32 0.0, %v353
  %355 = vmatprep.mubr.bf16.mxu0 0
  %356 = vmatmul.mubr.bf16.gmra.mrb[0].mxu0 %v291
  %v357 = vpop.f32.mrb[0].mxu0
  %v358 = vadd.f32 0.0, %v357
  %v359 = vpop.f32.mrb[0].mxu0
  %v360 = vadd.f32 0.0, %v359
  %v361 = vpop.f32.mrb[0].mxu0
  %v362 = vadd.f32 0.0, %v361
  %v363 = vpop.f32.mrb[0].mxu0
  %v364 = vadd.f32 0.0, %v363
  %365 = vdwg.mxu0
  %366 = vmatprep.subr.bf16.mxu0 0
  %367 = vmatpush1.bf16.msra.mxu0 %v301
  %368 = vmatprep.subr.bf16.mxu0 0
  %369 = vmatpush1.bf16.msra.mxu0 0
  %370 = vmatprep.subr.bf16.mxu0 0
  %371 = vmatpush1.bf16.msra.mxu0 0
  %372 = vmatprep.subr.bf16.mxu0 0
  %373 = vmatpush1.bf16.msra.mxu0 0
  %374 = vmatprep.subr.bf16.mxu0 0
  %375 = vmatpush1.bf16.msra.mxu0 0
  %376 = vmatprep.subr.bf16.mxu0 0
  %377 = vmatpush1.bf16.msra.mxu0 0
  %378 = vmatprep.subr.bf16.mxu0 0
  %379 = vmatpush1.bf16.msra.mxu0 0
  %380 = vmatprep.subr.bf16.mxu0 0
  %381 = vmatpush1.bf16.msra.mxu0 0
  %382 = vmatprep.subr.bf16.mxu0 0
  %383 = vmatpush1.bf16.msra.mxu0 0
  %384 = vmatprep.subr.bf16.mxu0 0
  %385 = vmatpush1.bf16.msra.mxu0 0
  %386 = vmatprep.subr.bf16.mxu0 0
  %387 = vmatpush1.bf16.msra.mxu0 0
  %388 = vmatprep.subr.bf16.mxu0 0
  %389 = vmatpush1.bf16.msra.mxu0 0
  %390 = vmatprep.subr.bf16.mxu0 0
  %391 = vmatpush1.bf16.msra.mxu0 0
  %392 = vmatprep.subr.bf16.mxu0 0
  %393 = vmatpush1.bf16.msra.mxu0 0
  %394 = vmatprep.subr.bf16.mxu0 0
  %395 = vmatpush1.bf16.msra.mxu0 0
  %396 = vmatprep.subr.bf16.mxu0 0
  %397 = vmatpush1.bf16.msra.mxu0 0
  %398 = vmatprep.mubr.bf16.mxu0 0
  %399 = vmatmul.mubr.bf16.gmra.mrb[0].mxu0 %v285
  %v400 = vpop.f32.mrb[0].mxu0
  %v401 = vadd.f32 0.0, %v400
  %v402 = vpop.f32.mrb[0].mxu0
  %v403 = vpop.f32.mrb[0].mxu0
  %v404 = vadd.f32 0.0, %v403
  %v405 = vpop.f32.mrb[0].mxu0
  %406 = vmatprep.mubr.bf16.mxu0 0
  %407 = vmatmul.mubr.bf16.gmra.mrb[0].mxu0 %v288
  %v408 = vpop.f32.mrb[0].mxu0
  %v409 = vadd.f32 0.0, %v408
  %v410 = vpop.f32.mrb[0].mxu0
  %v411 = vpop.f32.mrb[0].mxu0
  %v412 = vadd.f32 0.0, %v411
  %v413 = vpop.f32.mrb[0].mxu0
  %414 = vmatprep.mubr.bf16.mxu0 0
  %415 = vmatmul.mubr.bf16.gmra.mrb[0].mxu0 %v291
  %v416 = vpop.f32.mrb[0].mxu0
  %v417 = vadd.f32 0.0, %v416
  %v418 = vpop.f32.mrb[0].mxu0
  %v419 = vpop.f32.mrb[0].mxu0
  %v420 = vadd.f32 0.0, %v419
  %v421 = vpop.f32.mrb[0].mxu0
  %422 = vdwg.mxu0
  %v425 = vunpack.c.l.b16 %v268
  %v426 = vunpack.c.h.b16 %v268
  %v427 = vunpack.c.l.b16 %v269
  %v428 = vpack.c.b16 %v425, %v425
  %v429 = vpack.c.b16 %v426, %v426
  %v430 = vpack.c.b16 %v427, %v427
  %v432 = vsel %vm283, %v265, 0
  %v435 = vsel %vm283, %v266, 0
  %v438 = vsel %vm283, %v267, 0
  %v441 = vsel %vm293, %v428, 0
  %v444 = vsel %vm293, %v429, 0
  %v447 = vsel %vm293, %v430, 0
  %449 = vmatprep.subr.bf16.mxu0 %v444
  %450 = vmatpush1.bf16.msra.mxu0 %v441
  %451 = vmatprep.subr.bf16.mxu0 0
  %452 = vmatpush1.bf16.msra.mxu0 0
  %453 = vmatprep.subr.bf16.mxu0 0
  %454 = vmatpush1.bf16.msra.mxu0 0
  %455 = vmatprep.subr.bf16.mxu0 0
  %456 = vmatpush1.bf16.msra.mxu0 0
  %457 = vmatprep.subr.bf16.mxu0 0
  %458 = vmatpush1.bf16.msra.mxu0 0
  %459 = vmatprep.subr.bf16.mxu0 0
  %460 = vmatpush1.bf16.msra.mxu0 0
  %461 = vmatprep.subr.bf16.mxu0 0
  %462 = vmatpush1.bf16.msra.mxu0 0
  %463 = vmatprep.subr.bf16.mxu0 0
  %464 = vmatpush1.bf16.msra.mxu0 0
  %465 = vmatprep.subr.bf16.mxu0 0
  %466 = vmatpush1.bf16.msra.mxu0 0
  %467 = vmatprep.subr.bf16.mxu0 0
  %468 = vmatpush1.bf16.msra.mxu0 0
  %469 = vmatprep.subr.bf16.mxu0 0
  %470 = vmatpush1.bf16.msra.mxu0 0
  %471 = vmatprep.subr.bf16.mxu0 0
  %472 = vmatpush1.bf16.msra.mxu0 0
  %473 = vmatprep.subr.bf16.mxu0 0
  %474 = vmatpush1.bf16.msra.mxu0 0
  %475 = vmatprep.subr.bf16.mxu0 0
  %476 = vmatpush1.bf16.msra.mxu0 0
  %477 = vmatprep.subr.bf16.mxu0 0
  %478 = vmatpush1.bf16.msra.mxu0 0
  %479 = vmatprep.subr.bf16.mxu0 0
  %480 = vmatpush1.bf16.msra.mxu0 0
  %481 = vmatprep.mubr.bf16.mxu0 0
  %482 = vmatmul.mubr.bf16.gmra.mrb[0].mxu0 %v432
  %v483 = vpop.f32.mrb[0].mxu0
  %v484 = vadd.f32 %v338, %v483
  %v485 = vpop.f32.mrb[0].mxu0
  %v486 = vadd.f32 %v340, %v485
  %v487 = vpop.f32.mrb[0].mxu0
  %v488 = vadd.f32 %v342, %v487
  %v489 = vpop.f32.mrb[0].mxu0
  %v490 = vadd.f32 %v344, %v489
  %491 = vmatprep.mubr.bf16.mxu0 0
  %492 = vmatmul.mubr.bf16.gmra.mrb[0].mxu0 %v435
  %v493 = vpop.f32.mrb[0].mxu0
  %v494 = vadd.f32 %v348, %v493
  %v495 = vpop.f32.mrb[0].mxu0
  %v496 = vadd.f32 %v350, %v495
  %v497 = vpop.f32.mrb[0].mxu0
  %v498 = vadd.f32 %v352, %v497
  %v499 = vpop.f32.mrb[0].mxu0
  %v500 = vadd.f32 %v354, %v499
  %501 = vmatprep.mubr.bf16.mxu0 0
  %502 = vmatmul.mubr.bf16.gmra.mrb[0].mxu0 %v438
  %v503 = vpop.f32.mrb[0].mxu0
  %v504 = vadd.f32 %v358, %v503
  %v505 = vpop.f32.mrb[0].mxu0
  %v506 = vadd.f32 %v360, %v505
  %v507 = vpop.f32.mrb[0].mxu0
  %v508 = vadd.f32 %v362, %v507
  %v509 = vpop.f32.mrb[0].mxu0
  %v510 = vadd.f32 %v364, %v509
  %511 = vdwg.mxu0
  %512 = vmatprep.subr.bf16.mxu0 0
  %513 = vmatpush1.bf16.msra.mxu0 %v447
  %514 = vmatprep.subr.bf16.mxu0 0
  %515 = vmatpush1.bf16.msra.mxu0 0
  %516 = vmatprep.subr.bf16.mxu0 0
  %517 = vmatpush1.bf16.msra.mxu0 0
  %518 = vmatprep.subr.bf16.mxu0 0
  %519 = vmatpush1.bf16.msra.mxu0 0
  %520 = vmatprep.subr.bf16.mxu0 0
  %521 = vmatpush1.bf16.msra.mxu0 0
  %522 = vmatprep.subr.bf16.mxu0 0
  %523 = vmatpush1.bf16.msra.mxu0 0
  %524 = vmatprep.subr.bf16.mxu0 0
  %525 = vmatpush1.bf16.msra.mxu0 0
  %526 = vmatprep.subr.bf16.mxu0 0
  %527 = vmatpush1.bf16.msra.mxu0 0
  %528 = vmatprep.subr.bf16.mxu0 0
  %529 = vmatpush1.bf16.msra.mxu0 0
  %530 = vmatprep.subr.bf16.mxu0 0
  %531 = vmatpush1.bf16.msra.mxu0 0
  %532 = vmatprep.subr.bf16.mxu0 0
  %533 = vmatpush1.bf16.msra.mxu0 0
  %534 = vmatprep.subr.bf16.mxu0 0
  %535 = vmatpush1.bf16.msra.mxu0 0
  %536 = vmatprep.subr.bf16.mxu0 0
  %537 = vmatpush1.bf16.msra.mxu0 0
  %538 = vmatprep.subr.bf16.mxu0 0
  %539 = vmatpush1.bf16.msra.mxu0 0
  %540 = vmatprep.subr.bf16.mxu0 0
  %541 = vmatpush1.bf16.msra.mxu0 0
  %542 = vmatprep.subr.bf16.mxu0 0
  %543 = vmatpush1.bf16.msra.mxu0 0
  %544 = vmatprep.mubr.bf16.mxu0 0
  %545 = vmatmul.mubr.bf16.gmra.mrb[0].mxu0 %v432
  %v546 = vpop.f32.mrb[0].mxu0
  %v547 = vadd.f32 %v401, %v546
  %v548 = vpop.f32.mrb[0].mxu0
  %v549 = vpop.f32.mrb[0].mxu0
  %v550 = vadd.f32 %v404, %v549
  %v551 = vpop.f32.mrb[0].mxu0
  %552 = vmatprep.mubr.bf16.mxu0 0
  %553 = vmatmul.mubr.bf16.gmra.mrb[0].mxu0 %v435
  %v554 = vpop.f32.mrb[0].mxu0
  %v555 = vadd.f32 %v409, %v554
  %v556 = vpop.f32.mrb[0].mxu0
  %v557 = vpop.f32.mrb[0].mxu0
  %v558 = vadd.f32 %v412, %v557
  %v559 = vpop.f32.mrb[0].mxu0
  %560 = vmatprep.mubr.bf16.mxu0 0
  %561 = vmatmul.mubr.bf16.gmra.mrb[0].mxu0 %v438
  %v562 = vpop.f32.mrb[0].mxu0
  %v563 = vadd.f32 %v417, %v562
  %v564 = vpop.f32.mrb[0].mxu0
  %v565 = vpop.f32.mrb[0].mxu0
  %v566 = vadd.f32 %v420, %v565
  %v567 = vpop.f32.mrb[0].mxu0
  %568 = vdwg.mxu0
  %v569 = vld [vmem:[%s9] sm:$0x7]
  %v571 = vlaneseq
  %v572 = vshrl.u32 %v571, 7
  %v573 = vsub.s32 0, %v572
  %v574 = vrot.slane %v569, %v573
  %v575 = vlaneseq
  %v576 = vshrl.u32 %v575, 7
  %v577 = vsub.s32 1, %v576
  %v578 = vrot.slane %v569, %v577
  %v579 = vlaneseq
  %v580 = vshrl.u32 %v579, 7
  %v581 = vsub.s32 2, %v580
  %v582 = vrot.slane %v569, %v581
  %v586 = vadd.f32 %v484, %v574
  %v587 = vadd.f32 %v486, %v578
  %v588 = vadd.f32 %v547, %v582
  %v589 = vadd.f32 %v488, %v574
  %v590 = vadd.f32 %v490, %v578
  %v591 = vadd.f32 %v550, %v582
  %v592 = vadd.f32 %v494, %v574
  %v593 = vadd.f32 %v496, %v578
  %v594 = vadd.f32 %v555, %v582
  %v595 = vadd.f32 %v498, %v574
  %v596 = vadd.f32 %v500, %v578
  %v597 = vadd.f32 %v558, %v582
  %v598 = vadd.f32 %v504, %v574
  %v599 = vadd.f32 %v506, %v578
  %v600 = vadd.f32 %v563, %v582
  %v601 = vadd.f32 %v508, %v574
  %v602 = vadd.f32 %v510, %v578
  %v603 = vadd.f32 %v566, %v582
  %604 = vst [vmem:[#allocation4] sm:$0xff] %v586
  %605 = vst [vmem:[#allocation4 + $0x8] sm:$0xff] %v587
  %606 = vst [vmem:[#allocation4 + $0x10] sm:$0xff] %v588
  %607 = vst [vmem:[#allocation4 + $0x18] sm:$0xff] %v589
  %608 = vst [vmem:[#allocation4 + $0x20] sm:$0xff] %v590
  %609 = vst [vmem:[#allocation4 + $0x28] sm:$0xff] %v591
  %610 = vst [vmem:[#allocation4 + $0x30] sm:$0xff] %v592
  %611 = vst [vmem:[#allocation4 + $0x38] sm:$0xff] %v593
  %612 = vst [vmem:[#allocation4 + $0x40] sm:$0xff] %v594
  %613 = vst [vmem:[#allocation4 + $0x48] sm:$0xff] %v595
  %614 = vst [vmem:[#allocation4 + $0x50] sm:$0xff] %v596
  %615 = vst [vmem:[#allocation4 + $0x58] sm:$0xff] %v597
  %616 = vst [vmem:[#allocation4 + $0x60] sm:$0xff] %v598
  %617 = vst [vmem:[#allocation4 + $0x68] sm:$0xff] %v599
  %618 = vst [vmem:[#allocation4 + $0x70] sm:$0xff] %v600
  %619 = vst [vmem:[#allocation4 + $0x78] sm:$0xff] %v601
  %620 = vst [vmem:[#allocation4 + $0x80] sm:$0xff] %v602
  %621 = vst [vmem:[#allocation4 + $0x88] sm:$0xff] %v603
  %v622 = vld [vmem:[%s11] sm:$0x7]
  %v624 = vlaneseq
  %v625 = vshrl.u32 %v624, 7
  %v626 = vsub.s32 0, %v625
  %v627 = vrot.slane %v622, %v626
  %v628 = vlaneseq
  %v629 = vshrl.u32 %v628, 7
  %v630 = vsub.s32 1, %v629
  %v631 = vrot.slane %v622, %v630
  %v632 = vlaneseq
  %v633 = vshrl.u32 %v632, 7
  %v634 = vsub.s32 2, %v633
  %v635 = vrot.slane %v622, %v634
  %v639 = vld [vmem:[%s13] sm:$0x1]
  %v641 = vlaneseq
  %v642 = vshrl.u32 %v641, 7
  %v643 = vsub.s32 0, %v642
  %v644 = vrot.slane %v639, %v643
  %v646 = vld [vmem:[%s15] sm:$0x1]
  %v648 = vlaneseq
  %v649 = vshrl.u32 %v648, 7
  %v650 = vsub.s32 0, %v649
  %v651 = vrot.slane %v646, %v650
  %v653 = vld [vmem:[#allocation2] sm:$0xff]
  %v654 = vld [vmem:[#allocation3] sm:$0xff]
  %v655 = vld [vmem:[%s1] sm:$0xff]
  %v656 = vsub.f32 1.0, %v655
  %v657 = vmul.f32 %v656, %v654
  %v658 = vld [vmem:[#allocation4] sm:$0xff]
  %v659 = vld [vmem:[#allocation4 + $0x8] sm:$0xff]
  %v660 = vld [vmem:[#allocation4 + $0x10] sm:$0xff]
  %v661 = vpack.c.bf16 %v657, %v657
  %v662 = vld [vmem:[%s7] sm:$0xff]
  %v663 = vld [vmem:[%s7 + $0x8] sm:$0xf]
  %v666 = vunpack.c.l.b16 %v662
  %v667 = vunpack.c.h.b16 %v662
  %v668 = vunpack.c.l.b16 %v663
  %v669 = vpack.c.b16 %v666, %v666
  %v670 = vpack.c.b16 %v667, %v667
  %v671 = vpack.c.b16 %v668, %v668
  %v673 = vsel %vm283, %v661, 0
  %v676 = vsel %vm293, %v669, 0
  %v679 = vsel %vm293, %v670, 0
  %v682 = vsel %vm293, %v671, 0
  %684 = vmatprep.subr.bf16.mxu0 %v679
  %685 = vmatpush1.bf16.msra.mxu0 %v676
  %686 = vmatprep.subr.bf16.mxu0 0
  %687 = vmatpush1.bf16.msra.mxu0 0
  %688 = vmatprep.subr.bf16.mxu0 0
  %689 = vmatpush1.bf16.msra.mxu0 0
  %690 = vmatprep.subr.bf16.mxu0 0
  %691 = vmatpush1.bf16.msra.mxu0 0
  %692 = vmatprep.subr.bf16.mxu0 0
  %693 = vmatpush1.bf16.msra.mxu0 0
  %694 = vmatprep.subr.bf16.mxu0 0
  %695 = vmatpush1.bf16.msra.mxu0 0
  %696 = vmatprep.subr.bf16.mxu0 0
  %697 = vmatpush1.bf16.msra.mxu0 0
  %698 = vmatprep.subr.bf16.mxu0 0
  %699 = vmatpush1.bf16.msra.mxu0 0
  %700 = vmatprep.subr.bf16.mxu0 0
  %701 = vmatpush1.bf16.msra.mxu0 0
  %702 = vmatprep.subr.bf16.mxu0 0
  %703 = vmatpush1.bf16.msra.mxu0 0
  %704 = vmatprep.subr.bf16.mxu0 0
  %705 = vmatpush1.bf16.msra.mxu0 0
  %706 = vmatprep.subr.bf16.mxu0 0
  %707 = vmatpush1.bf16.msra.mxu0 0
  %708 = vmatprep.subr.bf16.mxu0 0
  %709 = vmatpush1.bf16.msra.mxu0 0
  %710 = vmatprep.subr.bf16.mxu0 0
  %711 = vmatpush1.bf16.msra.mxu0 0
  %712 = vmatprep.subr.bf16.mxu0 0
  %713 = vmatpush1.bf16.msra.mxu0 0
  %714 = vmatprep.subr.bf16.mxu0 0
  %715 = vmatpush1.bf16.msra.mxu0 0
  %716 = vmatprep.mubr.bf16.mxu0 0
  %717 = vmatmul.mubr.bf16.gmra.mrb[0].mxu0 %v673
  %v718 = vpop.f32.mrb[0].mxu0
  %v719 = vadd.f32 0.0, %v718
  %v720 = vpop.f32.mrb[0].mxu0
  %v721 = vadd.f32 0.0, %v720
  %v722 = vpop.f32.mrb[0].mxu0
  %v723 = vpop.f32.mrb[0].mxu0
  %724 = vdwg.mxu0
  %725 = vmatprep.subr.bf16.mxu0 0
  %726 = vmatpush1.bf16.msra.mxu0 %v682
  %727 = vmatprep.subr.bf16.mxu0 0
  %728 = vmatpush1.bf16.msra.mxu0 0
  %729 = vmatprep.subr.bf16.mxu0 0
  %730 = vmatpush1.bf16.msra.mxu0 0
  %731 = vmatprep.subr.bf16.mxu0 0
  %732 = vmatpush1.bf16.msra.mxu0 0
  %733 = vmatprep.subr.bf16.mxu0 0
  %734 = vmatpush1.bf16.msra.mxu0 0
  %735 = vmatprep.subr.bf16.mxu0 0
  %736 = vmatpush1.bf16.msra.mxu0 0
  %737 = vmatprep.subr.bf16.mxu0 0
  %738 = vmatpush1.bf16.msra.mxu0 0
  %739 = vmatprep.subr.bf16.mxu0 0
  %740 = vmatpush1.bf16.msra.mxu0 0
  %741 = vmatprep.subr.bf16.mxu0 0
  %742 = vmatpush1.bf16.msra.mxu0 0
  %743 = vmatprep.subr.bf16.mxu0 0
  %744 = vmatpush1.bf16.msra.mxu0 0
  %745 = vmatprep.subr.bf16.mxu0 0
  %746 = vmatpush1.bf16.msra.mxu0 0
  %747 = vmatprep.subr.bf16.mxu0 0
  %748 = vmatpush1.bf16.msra.mxu0 0
  %749 = vmatprep.subr.bf16.mxu0 0
  %750 = vmatpush1.bf16.msra.mxu0 0
  %751 = vmatprep.subr.bf16.mxu0 0
  %752 = vmatpush1.bf16.msra.mxu0 0
  %753 = vmatprep.subr.bf16.mxu0 0
  %754 = vmatpush1.bf16.msra.mxu0 0
  %755 = vmatprep.subr.bf16.mxu0 0
  %756 = vmatpush1.bf16.msra.mxu0 0
  %757 = vmatprep.mubr.bf16.mxu0 0
  %758 = vmatmul.mubr.bf16.gmra.mrb[0].mxu0 %v673
  %v759 = vpop.f32.mrb[0].mxu0
  %v760 = vadd.f32 0.0, %v759
  %v761 = vpop.f32.mrb[0].mxu0
  %v762 = vpop.f32.mrb[0].mxu0
  %v763 = vpop.f32.mrb[0].mxu0
  %764 = vdwg.mxu0
  %v765 = vadd.f32 %v658, %v719
  %v766 = vadd.f32 %v659, %v721
  %v767 = vadd.f32 %v660, %v760
  %v768 = vpack.c.bf16 %v653, %v653
  %v769 = vld [vmem:[%s10] sm:$0xff]
  %v770 = vld [vmem:[%s10 + $0x8] sm:$0xf]
  %v771 = vld [vmem:[%s10 + $0xc] sm:$0xff]
  %v772 = vld [vmem:[%s10 + $0x14] sm:$0xf]
  %v773 = vld [vmem:[%s10 + $0x18] sm:$0xff]
  %v774 = vld [vmem:[%s10 + $0x20] sm:$0xf]
  %v775 = vld [vmem:[%s10 + $0x24] sm:$0xff]
  %v776 = vld [vmem:[%s10 + $0x2c] sm:$0xf]
  %v777 = vld [vmem:[%s10 + $0x30] sm:$0xff]
  %v778 = vld [vmem:[%s10 + $0x38] sm:$0xf]
  %v779 = vld [vmem:[%s10 + $0x3c] sm:$0xff]
  %v780 = vld [vmem:[%s10 + $0x44] sm:$0xf]
  %v781 = vld [vmem:[%s10 + $0x48] sm:$0xff]
  %v782 = vld [vmem:[%s10 + $0x50] sm:$0xf]
  %v783 = vld [vmem:[%s10 + $0x54] sm:$0xff]
  %v784 = vld [vmem:[%s10 + $0x5c] sm:$0xf]
  %v785 = vld [vmem:[%s10 + $0x60] sm:$0xff]
  %v786 = vld [vmem:[%s10 + $0x68] sm:$0xf]
  %v787 = vld [vmem:[%s10 + $0x6c] sm:$0xff]
  %v788 = vld [vmem:[%s10 + $0x74] sm:$0xf]
  %v789 = vld [vmem:[%s10 + $0x78] sm:$0xff]
  %v790 = vld [vmem:[%s10 + $0x80] sm:$0xf]
  %v791 = vld [vmem:[%s10 + $0x84] sm:$0xff]
  %v792 = vld [vmem:[%s10 + $0x8c] sm:$0xf]
  %v793 = vld [vmem:[%s10 + $0x90] sm:$0xff]
  %v794 = vld [vmem:[%s10 + $0x98] sm:$0xf]
  %v795 = vld [vmem:[%s10 + $0x9c] sm:$0xff]
  %v796 = vld [vmem:[%s10 + $0xa4] sm:$0xf]
  %v797 = vld [vmem:[%s10 + $0xa8] sm:$0xff]
  %v798 = vld [vmem:[%s10 + $0xb0] sm:$0xf]
  %v799 = vld [vmem:[%s10 + $0xb4] sm:$0xff]
  %v800 = vld [vmem:[%s10 + $0xbc] sm:$0xf]
  %v833 = vunpack.c.l.b16 %v769
  %v834 = vunpack.c.h.b16 %v769
  %v835 = vunpack.c.l.b16 %v770
  %v836 = vunpack.c.l.b16 %v771
  %v837 = vunpack.c.h.b16 %v771
  %v838 = vunpack.c.l.b16 %v772
  %v839 = vunpack.c.l.b16 %v773
  %v840 = vunpack.c.h.b16 %v773
  %v841 = vunpack.c.l.b16 %v774
  %v842 = vunpack.c.l.b16 %v775
  %v843 = vunpack.c.h.b16 %v775
  %v844 = vunpack.c.l.b16 %v776
  %v845 = vunpack.c.l.b16 %v777
  %v846 = vunpack.c.h.b16 %v777
  %v847 = vunpack.c.l.b16 %v778
  %v848 = vunpack.c.l.b16 %v779
  %v849 = vunpack.c.h.b16 %v779
  %v850 = vunpack.c.l.b16 %v780
  %v851 = vunpack.c.l.b16 %v781
  %v852 = vunpack.c.h.b16 %v781
  %v853 = vunpack.c.l.b16 %v782
  %v854 = vunpack.c.l.b16 %v783
  %v855 = vunpack.c.h.b16 %v783
  %v856 = vunpack.c.l.b16 %v784
  %v857 = vunpack.c.l.b16 %v785
  %v858 = vunpack.c.h.b16 %v785
  %v859 = vunpack.c.l.b16 %v786
  %v860 = vunpack.c.l.b16 %v787
  %v861 = vunpack.c.h.b16 %v787
  %v862 = vunpack.c.l.b16 %v788
  %v863 = vunpack.c.l.b16 %v789
  %v864 = vunpack.c.h.b16 %v789
  %v865 = vunpack.c.l.b16 %v790
  %v866 = vunpack.c.l.b16 %v791
  %v867 = vunpack.c.h.b16 %v791
  %v868 = vunpack.c.l.b16 %v792
  %v869 = vunpack.c.l.b16 %v793
  %v870 = vunpack.c.h.b16 %v793
  %v871 = vunpack.c.l.b16 %v794
  %v872 = vunpack.c.l.b16 %v795
  %v873 = vunpack.c.h.b16 %v795
  %v874 = vunpack.c.l.b16 %v796
  %v875 = vunpack.c.l.b16 %v797
  %v876 = vunpack.c.h.b16 %v797
  %v877 = vunpack.c.l.b16 %v798
  %v878 = vunpack.c.l.b16 %v799
  %v879 = vunpack.c.h.b16 %v799
  %v880 = vunpack.c.l.b16 %v800
  %v881 = vpack.c.b16 %v836, %v833
  %v882 = vpack.c.b16 %v837, %v834
  %v883 = vpack.c.b16 %v838, %v835
  %v884 = vpack.c.b16 %v842, %v839
  %v885 = vpack.c.b16 %v843, %v840
  %v886 = vpack.c.b16 %v844, %v841
  %v887 = vpack.c.b16 %v848, %v845
  %v888 = vpack.c.b16 %v849, %v846
  %v889 = vpack.c.b16 %v850, %v847
  %v890 = vpack.c.b16 %v854, %v851
  %v891 = vpack.c.b16 %v855, %v852
  %v892 = vpack.c.b16 %v856, %v853
  %v893 = vpack.c.b16 %v860, %v857
  %v894 = vpack.c.b16 %v861, %v858
  %v895 = vpack.c.b16 %v862, %v859
  %v896 = vpack.c.b16 %v866, %v863
  %v897 = vpack.c.b16 %v867, %v864
  %v898 = vpack.c.b16 %v868, %v865
  %v899 = vpack.c.b16 %v872, %v869
  %v900 = vpack.c.b16 %v873, %v870
  %v901 = vpack.c.b16 %v874, %v871
  %v902 = vpack.c.b16 %v878, %v875
  %v903 = vpack.c.b16 %v879, %v876
  %v904 = vpack.c.b16 %v880, %v877
  %929 = vmatprep.subr.bf16.mxu0 %v882
  %930 = vmatpush1.bf16.msra.mxu0 %v881
  %931 = vmatprep.subr.bf16.mxu0 %v885
  %932 = vmatpush1.bf16.msra.mxu0 %v884
  %933 = vmatprep.subr.bf16.mxu0 %v888
  %934 = vmatpush1.bf16.msra.mxu0 %v887
  %935 = vmatprep.subr.bf16.mxu0 %v891
  %936 = vmatpush1.bf16.msra.mxu0 %v890
  %937 = vmatprep.subr.bf16.mxu0 %v894
  %938 = vmatpush1.bf16.msra.mxu0 %v893
  %939 = vmatprep.subr.bf16.mxu0 %v897
  %940 = vmatpush1.bf16.msra.mxu0 %v896
  %941 = vmatprep.subr.bf16.mxu0 %v900
  %942 = vmatpush1.bf16.msra.mxu0 %v899
  %943 = vmatprep.subr.bf16.mxu0 %v903
  %944 = vmatpush1.bf16.msra.mxu0 %v902
  %945 = vmatprep.subr.bf16.mxu0 0
  %946 = vmatpush1.bf16.msra.mxu0 0
  %947 = vmatprep.subr.bf16.mxu0 0
  %948 = vmatpush1.bf16.msra.mxu0 0
  %949 = vmatprep.subr.bf16.mxu0 0
  %950 = vmatpush1.bf16.msra.mxu0 0
  %951 = vmatprep.subr.bf16.mxu0 0
  %952 = vmatpush1.bf16.msra.mxu0 0
  %953 = vmatprep.subr.bf16.mxu0 0
  %954 = vmatpush1.bf16.msra.mxu0 0
  %955 = vmatprep.subr.bf16.mxu0 0
  %956 = vmatpush1.bf16.msra.mxu0 0
  %957 = vmatprep.subr.bf16.mxu0 0
  %958 = vmatpush1.bf16.msra.mxu0 0
  %959 = vmatprep.subr.bf16.mxu0 0
  %960 = vmatpush1.bf16.msra.mxu0 0
  %961 = vmatprep.mubr.bf16.mxu0 0
  %962 = vmatmul.mubr.bf16.gmra.mrb[0].mxu0 %v768
  %v963 = vpop.f32.mrb[0].mxu0
  %v964 = vadd.f32 %v627, %v963
  %v965 = vpop.f32.mrb[0].mxu0
  %v966 = vadd.f32 %v631, %v965
  %v967 = vpop.f32.mrb[0].mxu0
  %v968 = vpop.f32.mrb[0].mxu0
  %969 = vdwg.mxu0
  %970 = vmatprep.subr.bf16.mxu0 0
  %971 = vmatpush1.bf16.msra.mxu0 %v883
  %972 = vmatprep.subr.bf16.mxu0 0
  %973 = vmatpush1.bf16.msra.mxu0 %v886
  %974 = vmatprep.subr.bf16.mxu0 0
  %975 = vmatpush1.bf16.msra.mxu0 %v889
  %976 = vmatprep.subr.bf16.mxu0 0
  %977 = vmatpush1.bf16.msra.mxu0 %v892
  %978 = vmatprep.subr.bf16.mxu0 0
  %979 = vmatpush1.bf16.msra.mxu0 %v895
  %980 = vmatprep.subr.bf16.mxu0 0
  %981 = vmatpush1.bf16.msra.mxu0 %v898
  %982 = vmatprep.subr.bf16.mxu0 0
  %983 = vmatpush1.bf16.msra.mxu0 %v901
  %984 = vmatprep.subr.bf16.mxu0 0
  %985 = vmatpush1.bf16.msra.mxu0 %v904
  %986 = vmatprep.subr.bf16.mxu0 0
  %987 = vmatpush1.bf16.msra.mxu0 0
  %988 = vmatprep.subr.bf16.mxu0 0
  %989 = vmatpush1.bf16.msra.mxu0 0
  %990 = vmatprep.subr.bf16.mxu0 0
  %991 = vmatpush1.bf16.msra.mxu0 0
  %992 = vmatprep.subr.bf16.mxu0 0
  %993 = vmatpush1.bf16.msra.mxu0 0
  %994 = vmatprep.subr.bf16.mxu0 0
  %995 = vmatpush1.bf16.msra.mxu0 0
  %996 = vmatprep.subr.bf16.mxu0 0
  %997 = vmatpush1.bf16.msra.mxu0 0
  %998 = vmatprep.subr.bf16.mxu0 0
  %999 = vmatpush1.bf16.msra.mxu0 0
  %1000 = vmatprep.subr.bf16.mxu0 0
  %1001 = vmatpush1.bf16.msra.mxu0 0
  %1002 = vmatprep.mubr.bf16.mxu0 0
  %1003 = vmatmul.mubr.bf16.gmra.mrb[0].mxu0 %v768
  %v1004 = vpop.f32.mrb[0].mxu0
  %v1005 = vadd.f32 %v635, %v1004
  %v1006 = vpop.f32.mrb[0].mxu0
  %v1007 = vpop.f32.mrb[0].mxu0
  %v1008 = vpop.f32.mrb[0].mxu0
  %1009 = vdwg.mxu0
  %v1010 = vadd.f32 %v765, %v964
  %v1011 = vxor.u32 %v1010, 2147483648
  %v1012 = vmul.f32 %v1011, 1.442695
  %v1013 = vpow.pop %v1012
  %v1014 = vadd.f32 %v1013, 1.0
  %v1015 = vrcp.pop %v1014
  %v1016 = vmul.f32 1.0, %v1015
  %v1017 = vadd.f32 %v766, %v966
  %v1018 = vxor.u32 %v1017, 2147483648
  %v1019 = vmul.f32 %v1018, 1.442695
  %v1020 = vpow.pop %v1019
  %v1021 = vadd.f32 %v1020, 1.0
  %v1022 = vrcp.pop %v1021
  %v1023 = vmul.f32 1.0, %v1022
  %v1024 = vmul.f32 %v1016, %v1005
  %v1025 = vadd.f32 %v767, %v1024
  %v1026 = vtanh.pop %v1025
  %v1027 = vsub.f32 1.0, %v1023
  %v1028 = vmul.f32 %v1027, %v1026
  %v1029 = vmul.f32 %v1023, %v653
  %v1030 = vadd.f32 %v1028, %v1029
  %v1031 = vpack.c.bf16 %v1030, %v1030
  %v1032 = vld [vmem:[%s12] sm:$0xf]
  %v1033 = vld [vmem:[%s12 + $0x4] sm:$0xf]
  %v1034 = vld [vmem:[%s12 + $0x8] sm:$0xf]
  %v1035 = vld [vmem:[%s12 + $0xc] sm:$0xf]
  %v1036 = vld [vmem:[%s12 + $0x10] sm:$0xf]
  %v1037 = vld [vmem:[%s12 + $0x14] sm:$0xf]
  %v1038 = vld [vmem:[%s12 + $0x18] sm:$0xf]
  %v1039 = vld [vmem:[%s12 + $0x1c] sm:$0xf]
  %v1040 = vld [vmem:[%s12 + $0x20] sm:$0xf]
  %v1041 = vld [vmem:[%s12 + $0x24] sm:$0xf]
  %v1042 = vld [vmem:[%s12 + $0x28] sm:$0xf]
  %v1043 = vld [vmem:[%s12 + $0x2c] sm:$0xf]
  %v1044 = vld [vmem:[%s12 + $0x30] sm:$0xf]
  %v1045 = vld [vmem:[%s12 + $0x34] sm:$0xf]
  %v1046 = vld [vmem:[%s12 + $0x38] sm:$0xf]
  %v1047 = vld [vmem:[%s12 + $0x3c] sm:$0xf]
  %v1064 = vunpack.c.l.b16 %v1032
  %v1065 = vunpack.c.l.b16 %v1033
  %v1066 = vunpack.c.l.b16 %v1034
  %v1067 = vunpack.c.l.b16 %v1035
  %v1068 = vunpack.c.l.b16 %v1036
  %v1069 = vunpack.c.l.b16 %v1037
  %v1070 = vunpack.c.l.b16 %v1038
  %v1071 = vunpack.c.l.b16 %v1039
  %v1072 = vunpack.c.l.b16 %v1040
  %v1073 = vunpack.c.l.b16 %v1041
  %v1074 = vunpack.c.l.b16 %v1042
  %v1075 = vunpack.c.l.b16 %v1043
  %v1076 = vunpack.c.l.b16 %v1044
  %v1077 = vunpack.c.l.b16 %v1045
  %v1078 = vunpack.c.l.b16 %v1046
  %v1079 = vunpack.c.l.b16 %v1047
  %v1080 = vpack.c.b16 %v1065, %v1064
  %v1081 = vpack.c.b16 %v1067, %v1066
  %v1082 = vpack.c.b16 %v1069, %v1068
  %v1083 = vpack.c.b16 %v1071, %v1070
  %v1084 = vpack.c.b16 %v1073, %v1072
  %v1085 = vpack.c.b16 %v1075, %v1074
  %v1086 = vpack.c.b16 %v1077, %v1076
  %v1087 = vpack.c.b16 %v1079, %v1078
  %1096 = vmatprep.subr.bf16.mxu0 0
  %1097 = vmatpush1.bf16.msra.mxu0 %v1080
  %1098 = vmatprep.subr.bf16.mxu0 0
  %1099 = vmatpush1.bf16.msra.mxu0 %v1081
  %1100 = vmatprep.subr.bf16.mxu0 0
  %1101 = vmatpush1.bf16.msra.mxu0 %v1082
  %1102 = vmatprep.subr.bf16.mxu0 0
  %1103 = vmatpush1.bf16.msra.mxu0 %v1083
  %1104 = vmatprep.subr.bf16.mxu0 0
  %1105 = vmatpush1.bf16.msra.mxu0 %v1084
  %1106 = vmatprep.subr.bf16.mxu0 0
  %1107 = vmatpush1.bf16.msra.mxu0 %v1085
  %1108 = vmatprep.subr.bf16.mxu0 0
  %1109 = vmatpush1.bf16.msra.mxu0 %v1086
  %1110 = vmatprep.subr.bf16.mxu0 0
  %1111 = vmatpush1.bf16.msra.mxu0 %v1087
  %1112 = vmatprep.subr.bf16.mxu0 0
  %1113 = vmatpush1.bf16.msra.mxu0 0
  %1114 = vmatprep.subr.bf16.mxu0 0
  %1115 = vmatpush1.bf16.msra.mxu0 0
  %1116 = vmatprep.subr.bf16.mxu0 0
  %1117 = vmatpush1.bf16.msra.mxu0 0
  %1118 = vmatprep.subr.bf16.mxu0 0
  %1119 = vmatpush1.bf16.msra.mxu0 0
  %1120 = vmatprep.subr.bf16.mxu0 0
  %1121 = vmatpush1.bf16.msra.mxu0 0
  %1122 = vmatprep.subr.bf16.mxu0 0
  %1123 = vmatpush1.bf16.msra.mxu0 0
  %1124 = vmatprep.subr.bf16.mxu0 0
  %1125 = vmatpush1.bf16.msra.mxu0 0
  %1126 = vmatprep.subr.bf16.mxu0 0
  %1127 = vmatpush1.bf16.msra.mxu0 0
  %1128 = vmatprep.mubr.bf16.mxu0 0
  %1129 = vmatmul.mubr.bf16.gmra.mrb[0].mxu0 %v1031
  %v1130 = vpop.f32.mrb[0].mxu0
  %v1131 = vadd.f32 %v644, %v1130
  %v1132 = vpop.f32.mrb[0].mxu0
  %v1133 = vpop.f32.mrb[0].mxu0
  %v1134 = vpop.f32.mrb[0].mxu0
  %1135 = vdwg.mxu0
  %v1136 = vtanh.pop %v1131
  %v1137 = vpack.c.bf16 %v1136, %v1136
  %v1138 = vld [vmem:[%s14] sm:$0xf]
  %v1139 = vld [vmem:[%s14 + $0x4] sm:$0xf]
  %v1140 = vld [vmem:[%s14 + $0x8] sm:$0xf]
  %v1141 = vld [vmem:[%s14 + $0xc] sm:$0xf]
  %v1142 = vld [vmem:[%s14 + $0x10] sm:$0xf]
  %v1143 = vld [vmem:[%s14 + $0x14] sm:$0xf]
  %v1144 = vld [vmem:[%s14 + $0x18] sm:$0xf]
  %v1145 = vld [vmem:[%s14 + $0x1c] sm:$0xf]
  %v1146 = vld [vmem:[%s14 + $0x20] sm:$0xf]
  %v1147 = vld [vmem:[%s14 + $0x24] sm:$0xf]
  %v1148 = vld [vmem:[%s14 + $0x28] sm:$0xf]
  %v1149 = vld [vmem:[%s14 + $0x2c] sm:$0xf]
  %v1150 = vld [vmem:[%s14 + $0x30] sm:$0xf]
  %v1151 = vld [vmem:[%s14 + $0x34] sm:$0xf]
  %v1152 = vld [vmem:[%s14 + $0x38] sm:$0xf]
  %v1153 = vld [vmem:[%s14 + $0x3c] sm:$0xf]
  %v1170 = vunpack.c.l.b16 %v1138
  %v1171 = vunpack.c.l.b16 %v1139
  %v1172 = vunpack.c.l.b16 %v1140
  %v1173 = vunpack.c.l.b16 %v1141
  %v1174 = vunpack.c.l.b16 %v1142
  %v1175 = vunpack.c.l.b16 %v1143
  %v1176 = vunpack.c.l.b16 %v1144
  %v1177 = vunpack.c.l.b16 %v1145
  %v1178 = vunpack.c.l.b16 %v1146
  %v1179 = vunpack.c.l.b16 %v1147
  %v1180 = vunpack.c.l.b16 %v1148
  %v1181 = vunpack.c.l.b16 %v1149
  %v1182 = vunpack.c.l.b16 %v1150
  %v1183 = vunpack.c.l.b16 %v1151
  %v1184 = vunpack.c.l.b16 %v1152
  %v1185 = vunpack.c.l.b16 %v1153
  %v1186 = vpack.c.b16 %v1171, %v1170
  %v1187 = vpack.c.b16 %v1173, %v1172
  %v1188 = vpack.c.b16 %v1175, %v1174
  %v1189 = vpack.c.b16 %v1177, %v1176
  %v1190 = vpack.c.b16 %v1179, %v1178
  %v1191 = vpack.c.b16 %v1181, %v1180
  %v1192 = vpack.c.b16 %v1183, %v1182
  %v1193 = vpack.c.b16 %v1185, %v1184
  %1202 = vmatprep.subr.bf16.mxu0 0
  %1203 = vmatpush1.bf16.msra.mxu0 %v1186
  %1204 = vmatprep.subr.bf16.mxu0 0
  %1205 = vmatpush1.bf16.msra.mxu0 %v1187
  %1206 = vmatprep.subr.bf16.mxu0 0
  %1207 = vmatpush1.bf16.msra.mxu0 %v1188
  %1208 = vmatprep.subr.bf16.mxu0 0
  %1209 = vmatpush1.bf16.msra.mxu0 %v1189
  %1210 = vmatprep.subr.bf16.mxu0 0
  %1211 = vmatpush1.bf16.msra.mxu0 %v1190
  %1212 = vmatprep.subr.bf16.mxu0 0
  %1213 = vmatpush1.bf16.msra.mxu0 %v1191
  %1214 = vmatprep.subr.bf16.mxu0 0
  %1215 = vmatpush1.bf16.msra.mxu0 %v1192
  %1216 = vmatprep.subr.bf16.mxu0 0
  %1217 = vmatpush1.bf16.msra.mxu0 %v1193
  %1218 = vmatprep.subr.bf16.mxu0 0
  %1219 = vmatpush1.bf16.msra.mxu0 0
  %1220 = vmatprep.subr.bf16.mxu0 0
  %1221 = vmatpush1.bf16.msra.mxu0 0
  %1222 = vmatprep.subr.bf16.mxu0 0
  %1223 = vmatpush1.bf16.msra.mxu0 0
  %1224 = vmatprep.subr.bf16.mxu0 0
  %1225 = vmatpush1.bf16.msra.mxu0 0
  %1226 = vmatprep.subr.bf16.mxu0 0
  %1227 = vmatpush1.bf16.msra.mxu0 0
  %1228 = vmatprep.subr.bf16.mxu0 0
  %1229 = vmatpush1.bf16.msra.mxu0 0
  %1230 = vmatprep.subr.bf16.mxu0 0
  %1231 = vmatpush1.bf16.msra.mxu0 0
  %1232 = vmatprep.subr.bf16.mxu0 0
  %1233 = vmatpush1.bf16.msra.mxu0 0
  %1234 = vmatprep.mubr.bf16.mxu0 0
  %1235 = vmatmul.mubr.bf16.gmra.mrb[0].mxu0 %v1137
  %v1236 = vpop.f32.mrb[0].mxu0
  %v1237 = vadd.f32 %v651, %v1236
  %v1238 = vpop.f32.mrb[0].mxu0
  %v1239 = vpop.f32.mrb[0].mxu0
  %v1240 = vpop.f32.mrb[0].mxu0
  %1241 = vdwg.mxu0
  %1242 = vst.msk [vmem:[%s20] sm:$0xff] %vm283, %v1237
  %v1243 = vld [vmem:[%s1 + $0x8] sm:$0xff]
  %v1244 = vsub.f32 1.0, %v1243
  %v1245 = vmul.f32 %v1244, %v1237
  %v1246 = vld [vmem:[#allocation4 + $0x18] sm:$0xff]
  %v1247 = vld [vmem:[#allocation4 + $0x20] sm:$0xff]
  %v1248 = vld [vmem:[#allocation4 + $0x28] sm:$0xff]
  %v1249 = vpack.c.bf16 %v1245, %v1245
  %v1250 = vld [vmem:[%s7] sm:$0xff]
  %v1251 = vld [vmem:[%s7 + $0x8] sm:$0xf]
  %v1254 = vunpack.c.l.b16 %v1250
  %v1255 = vunpack.c.h.b16 %v1250
  %v1256 = vunpack.c.l.b16 %v1251
  %v1257 = vpack.c.b16 %v1254, %v1254
  %v1258 = vpack.c.b16 %v1255, %v1255
  %v1259 = vpack.c.b16 %v1256, %v1256
  %v1261 = vsel %vm283, %v1249, 0
  %v1264 = vsel %vm293, %v1257, 0
  %v1267 = vsel %vm293, %v1258, 0
  %v1270 = vsel %vm293, %v1259, 0
  %1272 = vmatprep.subr.bf16.mxu0 %v1267
  %1273 = vmatpush1.bf16.msra.mxu0 %v1264
  %1274 = vmatprep.subr.bf16.mxu0 0
  %1275 = vmatpush1.bf16.msra.mxu0 0
  %1276 = vmatprep.subr.bf16.mxu0 0
  %1277 = vmatpush1.bf16.msra.mxu0 0
  %1278 = vmatprep.subr.bf16.mxu0 0
  %1279 = vmatpush1.bf16.msra.mxu0 0
  %1280 = vmatprep.subr.bf16.mxu0 0
  %1281 = vmatpush1.bf16.msra.mxu0 0
  %1282 = vmatprep.subr.bf16.mxu0 0
  %1283 = vmatpush1.bf16.msra.mxu0 0
  %1284 = vmatprep.subr.bf16.mxu0 0
  %1285 = vmatpush1.bf16.msra.mxu0 0
  %1286 = vmatprep.subr.bf16.mxu0 0
  %1287 = vmatpush1.bf16.msra.mxu0 0
  %1288 = vmatprep.subr.bf16.mxu0 0
  %1289 = vmatpush1.bf16.msra.mxu0 0
  %1290 = vmatprep.subr.bf16.mxu0 0
  %1291 = vmatpush1.bf16.msra.mxu0 0
  %1292 = vmatprep.subr.bf16.mxu0 0
  %1293 = vmatpush1.bf16.msra.mxu0 0
  %1294 = vmatprep.subr.bf16.mxu0 0
  %1295 = vmatpush1.bf16.msra.mxu0 0
  %1296 = vmatprep.subr.bf16.mxu0 0
  %1297 = vmatpush1.bf16.msra.mxu0 0
  %1298 = vmatprep.subr.bf16.mxu0 0
  %1299 = vmatpush1.bf16.msra.mxu0 0
  %1300 = vmatprep.subr.bf16.mxu0 0
  %1301 = vmatpush1.bf16.msra.mxu0 0
  %1302 = vmatprep.subr.bf16.mxu0 0
  %1303 = vmatpush1.bf16.msra.mxu0 0
  %1304 = vmatprep.mubr.bf16.mxu0 0
  %1305 = vmatmul.mubr.bf16.gmra.mrb[0].mxu0 %v1261
  %v1306 = vpop.f32.mrb[0].mxu0
  %v1307 = vadd.f32 0.0, %v1306
  %v1308 = vpop.f32.mrb[0].mxu0
  %v1309 = vadd.f32 0.0, %v1308
  %v1310 = vpop.f32.mrb[0].mxu0
  %v1311 = vpop.f32.mrb[0].mxu0
  %1312 = vdwg.mxu0
  %1313 = vmatprep.subr.bf16.mxu0 0
  %1314 = vmatpush1.bf16.msra.mxu0 %v1270
  %1315 = vmatprep.subr.bf16.mxu0 0
  %1316 = vmatpush1.bf16.msra.mxu0 0
  %1317 = vmatprep.subr.bf16.mxu0 0
  %1318 = vmatpush1.bf16.msra.mxu0 0
  %1319 = vmatprep.subr.bf16.mxu0 0
  %1320 = vmatpush1.bf16.msra.mxu0 0
  %1321 = vmatprep.subr.bf16.mxu0 0
  %1322 = vmatpush1.bf16.msra.mxu0 0
  %1323 = vmatprep.subr.bf16.mxu0 0
  %1324 = vmatpush1.bf16.msra.mxu0 0
  %1325 = vmatprep.subr.bf16.mxu0 0
  %1326 = vmatpush1.bf16.msra.mxu0 0
  %1327 = vmatprep.subr.bf16.mxu0 0
  %1328 = vmatpush1.bf16.msra.mxu0 0
  %1329 = vmatprep.subr.bf16.mxu0 0
  %1330 = vmatpush1.bf16.msra.mxu0 0
  %1331 = vmatprep.subr.bf16.mxu0 0
  %1332 = vmatpush1.bf16.msra.mxu0 0
  %1333 = vmatprep.subr.bf16.mxu0 0
  %1334 = vmatpush1.bf16.msra.mxu0 0
  %1335 = vmatprep.subr.bf16.mxu0 0
  %1336 = vmatpush1.bf16.msra.mxu0 0
  %1337 = vmatprep.subr.bf16.mxu0 0
  %1338 = vmatpush1.bf16.msra.mxu0 0
  %1339 = vmatprep.subr.bf16.mxu0 0
  %1340 = vmatpush1.bf16.msra.mxu0 0
  %1341 = vmatprep.subr.bf16.mxu0 0
  %1342 = vmatpush1.bf16.msra.mxu0 0
  %1343 = vmatprep.subr.bf16.mxu0 0
  %1344 = vmatpush1.bf16.msra.mxu0 0
  %1345 = vmatprep.mubr.bf16.mxu0 0
  %1346 = vmatmul.mubr.bf16.gmra.mrb[0].mxu0 %v1261
  %v1347 = vpop.f32.mrb[0].mxu0
  %v1348 = vadd.f32 0.0, %v1347
  %v1349 = vpop.f32.mrb[0].mxu0
  %v1350 = vpop.f32.mrb[0].mxu0
  %v1351 = vpop.f32.mrb[0].mxu0
  %1352 = vdwg.mxu0
  %v1353 = vadd.f32 %v1246, %v1307
  %v1354 = vadd.f32 %v1247, %v1309
  %v1355 = vadd.f32 %v1248, %v1348
  %v1356 = vld [vmem:[%s10] sm:$0xff]
  %v1357 = vld [vmem:[%s10 + $0x8] sm:$0xf]
  %v1358 = vld [vmem:[%s10 + $0xc] sm:$0xff]
  %v1359 = vld [vmem:[%s10 + $0x14] sm:$0xf]
  %v1360 = vld [vmem:[%s10 + $0x18] sm:$0xff]
  %v1361 = vld [vmem:[%s10 + $0x20] sm:$0xf]
  %v1362 = vld [vmem:[%s10 + $0x24] sm:$0xff]
  %v1363 = vld [vmem:[%s10 + $0x2c] sm:$0xf]
  %v1364 = vld [vmem:[%s10 + $0x30] sm:$0xff]
  %v1365 = vld [vmem:[%s10 + $0x38] sm:$0xf]
  %v1366 = vld [vmem:[%s10 + $0x3c] sm:$0xff]
  %v1367 = vld [vmem:[%s10 + $0x44] sm:$0xf]
  %v1368 = vld [vmem:[%s10 + $0x48] sm:$0xff]
  %v1369 = vld [vmem:[%s10 + $0x50] sm:$0xf]
  %v1370 = vld [vmem:[%s10 + $0x54] sm:$0xff]
  %v1371 = vld [vmem:[%s10 + $0x5c] sm:$0xf]
  %v1372 = vld [vmem:[%s10 + $0x60] sm:$0xff]
  %v1373 = vld [vmem:[%s10 + $0x68] sm:$0xf]
  %v1374 = vld [vmem:[%s10 + $0x6c] sm:$0xff]
  %v1375 = vld [vmem:[%s10 + $0x74] sm:$0xf]
  %v1376 = vld [vmem:[%s10 + $0x78] sm:$0xff]
  %v1377 = vld [vmem:[%s10 + $0x80] sm:$0xf]
  %v1378 = vld [vmem:[%s10 + $0x84] sm:$0xff]
  %v1379 = vld [vmem:[%s10 + $0x8c] sm:$0xf]
  %v1380 = vld [vmem:[%s10 + $0x90] sm:$0xff]
  %v1381 = vld [vmem:[%s10 + $0x98] sm:$0xf]
  %v1382 = vld [vmem:[%s10 + $0x9c] sm:$0xff]
  %v1383 = vld [vmem:[%s10 + $0xa4] sm:$0xf]
  %v1384 = vld [vmem:[%s10 + $0xa8] sm:$0xff]
  %v1385 = vld [vmem:[%s10 + $0xb0] sm:$0xf]
  %v1386 = vld [vmem:[%s10 + $0xb4] sm:$0xff]
  %v1387 = vld [vmem:[%s10 + $0xbc] sm:$0xf]
  %v1420 = vunpack.c.l.b16 %v1356
  %v1421 = vunpack.c.h.b16 %v1356
  %v1422 = vunpack.c.l.b16 %v1357
  %v1423 = vunpack.c.l.b16 %v1358
  %v1424 = vunpack.c.h.b16 %v1358
  %v1425 = vunpack.c.l.b16 %v1359
  %v1426 = vunpack.c.l.b16 %v1360
  %v1427 = vunpack.c.h.b16 %v1360
  %v1428 = vunpack.c.l.b16 %v1361
  %v1429 = vunpack.c.l.b16 %v1362
  %v1430 = vunpack.c.h.b16 %v1362
  %v1431 = vunpack.c.l.b16 %v1363
  %v1432 = vunpack.c.l.b16 %v1364
  %v1433 = vunpack.c.h.b16 %v1364
  %v1434 = vunpack.c.l.b16 %v1365
  %v1435 = vunpack.c.l.b16 %v1366
  %v1436 = vunpack.c.h.b16 %v1366
  %v1437 = vunpack.c.l.b16 %v1367
  %v1438 = vunpack.c.l.b16 %v1368
  %v1439 = vunpack.c.h.b16 %v1368
  %v1440 = vunpack.c.l.b16 %v1369
  %v1441 = vunpack.c.l.b16 %v1370
  %v1442 = vunpack.c.h.b16 %v1370
  %v1443 = vunpack.c.l.b16 %v1371
  %v1444 = vunpack.c.l.b16 %v1372
  %v1445 = vunpack.c.h.b16 %v1372
  %v1446 = vunpack.c.l.b16 %v1373
  %v1447 = vunpack.c.l.b16 %v1374
  %v1448 = vunpack.c.h.b16 %v1374
  %v1449 = vunpack.c.l.b16 %v1375
  %v1450 = vunpack.c.l.b16 %v1376
  %v1451 = vunpack.c.h.b16 %v1376
  %v1452 = vunpack.c.l.b16 %v1377
  %v1453 = vunpack.c.l.b16 %v1378
  %v1454 = vunpack.c.h.b16 %v1378
  %v1455 = vunpack.c.l.b16 %v1379
  %v1456 = vunpack.c.l.b16 %v1380
  %v1457 = vunpack.c.h.b16 %v1380
  %v1458 = vunpack.c.l.b16 %v1381
  %v1459 = vunpack.c.l.b16 %v1382
  %v1460 = vunpack.c.h.b16 %v1382
  %v1461 = vunpack.c.l.b16 %v1383
  %v1462 = vunpack.c.l.b16 %v1384
  %v1463 = vunpack.c.h.b16 %v1384
  %v1464 = vunpack.c.l.b16 %v1385
  %v1465 = vunpack.c.l.b16 %v1386
  %v1466 = vunpack.c.h.b16 %v1386
  %v1467 = vunpack.c.l.b16 %v1387
  %v1468 = vpack.c.b16 %v1423, %v1420
  %v1469 = vpack.c.b16 %v1424, %v1421
  %v1470 = vpack.c.b16 %v1425, %v1422
  %v1471 = vpack.c.b16 %v1429, %v1426
  %v1472 = vpack.c.b16 %v1430, %v1427
  %v1473 = vpack.c.b16 %v1431, %v1428
  %v1474 = vpack.c.b16 %v1435, %v1432
  %v1475 = vpack.c.b16 %v1436, %v1433
  %v1476 = vpack.c.b16 %v1437, %v1434
  %v1477 = vpack.c.b16 %v1441, %v1438
  %v1478 = vpack.c.b16 %v1442, %v1439
  %v1479 = vpack.c.b16 %v1443, %v1440
  %v1480 = vpack.c.b16 %v1447, %v1444
  %v1481 = vpack.c.b16 %v1448, %v1445
  %v1482 = vpack.c.b16 %v1449, %v1446
  %v1483 = vpack.c.b16 %v1453, %v1450
  %v1484 = vpack.c.b16 %v1454, %v1451
  %v1485 = vpack.c.b16 %v1455, %v1452
  %v1486 = vpack.c.b16 %v1459, %v1456
  %v1487 = vpack.c.b16 %v1460, %v1457
  %v1488 = vpack.c.b16 %v1461, %v1458
  %v1489 = vpack.c.b16 %v1465, %v1462
  %v1490 = vpack.c.b16 %v1466, %v1463
  %v1491 = vpack.c.b16 %v1467, %v1464
  %1516 = vmatprep.subr.bf16.mxu0 %v1469
  %1517 = vmatpush1.bf16.msra.mxu0 %v1468
  %1518 = vmatprep.subr.bf16.mxu0 %v1472
  %1519 = vmatpush1.bf16.msra.mxu0 %v1471
  %1520 = vmatprep.subr.bf16.mxu0 %v1475
  %1521 = vmatpush1.bf16.msra.mxu0 %v1474
  %1522 = vmatprep.subr.bf16.mxu0 %v1478
  %1523 = vmatpush1.bf16.msra.mxu0 %v1477
  %1524 = vmatprep.subr.bf16.mxu0 %v1481
  %1525 = vmatpush1.bf16.msra.mxu0 %v1480
  %1526 = vmatprep.subr.bf16.mxu0 %v1484
  %1527 = vmatpush1.bf16.msra.mxu0 %v1483
  %1528 = vmatprep.subr.bf16.mxu0 %v1487
  %1529 = vmatpush1.bf16.msra.mxu0 %v1486
  %1530 = vmatprep.subr.bf16.mxu0 %v1490
  %1531 = vmatpush1.bf16.msra.mxu0 %v1489
  %1532 = vmatprep.subr.bf16.mxu0 0
  %1533 = vmatpush1.bf16.msra.mxu0 0
  %1534 = vmatprep.subr.bf16.mxu0 0
  %1535 = vmatpush1.bf16.msra.mxu0 0
  %1536 = vmatprep.subr.bf16.mxu0 0
  %1537 = vmatpush1.bf16.msra.mxu0 0
  %1538 = vmatprep.subr.bf16.mxu0 0
  %1539 = vmatpush1.bf16.msra.mxu0 0
  %1540 = vmatprep.subr.bf16.mxu0 0
  %1541 = vmatpush1.bf16.msra.mxu0 0
  %1542 = vmatprep.subr.bf16.mxu0 0
  %1543 = vmatpush1.bf16.msra.mxu0 0
  %1544 = vmatprep.subr.bf16.mxu0 0
  %1545 = vmatpush1.bf16.msra.mxu0 0
  %1546 = vmatprep.subr.bf16.mxu0 0
  %1547 = vmatpush1.bf16.msra.mxu0 0
  %1548 = vmatprep.mubr.bf16.mxu0 0
  %1549 = vmatmul.mubr.bf16.gmra.mrb[0].mxu0 %v1031
  %v1550 = vpop.f32.mrb[0].mxu0
  %v1551 = vadd.f32 %v627, %v1550
  %v1552 = vpop.f32.mrb[0].mxu0
  %v1553 = vadd.f32 %v631, %v1552
  %v1554 = vpop.f32.mrb[0].mxu0
  %v1555 = vpop.f32.mrb[0].mxu0
  %1556 = vdwg.mxu0
  %1557 = vmatprep.subr.bf16.mxu0 0
  %1558 = vmatpush1.bf16.msra.mxu0 %v1470
  %1559 = vmatprep.subr.bf16.mxu0 0
  %1560 = vmatpush1.bf16.msra.mxu0 %v1473
  %1561 = vmatprep.subr.bf16.mxu0 0
  %1562 = vmatpush1.bf16.msra.mxu0 %v1476
  %1563 = vmatprep.subr.bf16.mxu0 0
  %1564 = vmatpush1.bf16.msra.mxu0 %v1479
  %1565 = vmatprep.subr.bf16.mxu0 0
  %1566 = vmatpush1.bf16.msra.mxu0 %v1482
  %1567 = vmatprep.subr.bf16.mxu0 0
  %1568 = vmatpush1.bf16.msra.mxu0 %v1485
  %1569 = vmatprep.subr.bf16.mxu0 0
  %1570 = vmatpush1.bf16.msra.mxu0 %v1488
  %1571 = vmatprep.subr.bf16.mxu0 0
  %1572 = vmatpush1.bf16.msra.mxu0 %v1491
  %1573 = vmatprep.subr.bf16.mxu0 0
  %1574 = vmatpush1.bf16.msra.mxu0 0
  %1575 = vmatprep.subr.bf16.mxu0 0
  %1576 = vmatpush1.bf16.msra.mxu0 0
  %1577 = vmatprep.subr.bf16.mxu0 0
  %1578 = vmatpush1.bf16.msra.mxu0 0
  %1579 = vmatprep.subr.bf16.mxu0 0
  %1580 = vmatpush1.bf16.msra.mxu0 0
  %1581 = vmatprep.subr.bf16.mxu0 0
  %1582 = vmatpush1.bf16.msra.mxu0 0
  %1583 = vmatprep.subr.bf16.mxu0 0
  %1584 = vmatpush1.bf16.msra.mxu0 0
  %1585 = vmatprep.subr.bf16.mxu0 0
  %1586 = vmatpush1.bf16.msra.mxu0 0
  %1587 = vmatprep.subr.bf16.mxu0 0
  %1588 = vmatpush1.bf16.msra.mxu0 0
  %1589 = vmatprep.mubr.bf16.mxu0 0
  %1590 = vmatmul.mubr.bf16.gmra.mrb[0].mxu0 %v1031
  %v1591 = vpop.f32.mrb[0].mxu0
  %v1592 = vadd.f32 %v635, %v1591
  %v1593 = vpop.f32.mrb[0].mxu0
  %v1594 = vpop.f32.mrb[0].mxu0
  %v1595 = vpop.f32.mrb[0].mxu0
  %1596 = vdwg.mxu0
  %v1597 = vadd.f32 %v1353, %v1551
  %v1598 = vxor.u32 %v1597, 2147483648
  %v1599 = vmul.f32 %v1598, 1.442695
  %v1600 = vpow.pop %v1599
  %v1601 = vadd.f32 %v1600, 1.0
  %v1602 = vrcp.pop %v1601
  %v1603 = vmul.f32 1.0, %v1602
  %v1604 = vadd.f32 %v1354, %v1553
  %v1605 = vxor.u32 %v1604, 2147483648
  %v1606 = vmul.f32 %v1605, 1.442695
  %v1607 = vpow.pop %v1606
  %v1608 = vadd.f32 %v1607, 1.0
  %v1609 = vrcp.pop %v1608
  %v1610 = vmul.f32 1.0, %v1609
  %v1611 = vmul.f32 %v1603, %v1592
  %v1612 = vadd.f32 %v1355, %v1611
  %v1613 = vtanh.pop %v1612
  %v1614 = vsub.f32 1.0, %v1610
  %v1615 = vmul.f32 %v1614, %v1613
  %v1616 = vmul.f32 %v1610, %v1030
  %v1617 = vadd.f32 %v1615, %v1616
  %v1618 = vpack.c.bf16 %v1617, %v1617
  %v1619 = vld [vmem:[%s12] sm:$0xf]
  %v1620 = vld [vmem:[%s12 + $0x4] sm:$0xf]
  %v1621 = vld [vmem:[%s12 + $0x8] sm:$0xf]
  %v1622 = vld [vmem:[%s12 + $0xc] sm:$0xf]
  %v1623 = vld [vmem:[%s12 + $0x10] sm:$0xf]
  %v1624 = vld [vmem:[%s12 + $0x14] sm:$0xf]
  %v1625 = vld [vmem:[%s12 + $0x18] sm:$0xf]
  %v1626 = vld [vmem:[%s12 + $0x1c] sm:$0xf]
  %v1627 = vld [vmem:[%s12 + $0x20] sm:$0xf]
  %v1628 = vld [vmem:[%s12 + $0x24] sm:$0xf]
  %v1629 = vld [vmem:[%s12 + $0x28] sm:$0xf]
  %v1630 = vld [vmem:[%s12 + $0x2c] sm:$0xf]
  %v1631 = vld [vmem:[%s12 + $0x30] sm:$0xf]
  %v1632 = vld [vmem:[%s12 + $0x34] sm:$0xf]
  %v1633 = vld [vmem:[%s12 + $0x38] sm:$0xf]
  %v1634 = vld [vmem:[%s12 + $0x3c] sm:$0xf]
  %v1651 = vunpack.c.l.b16 %v1619
  %v1652 = vunpack.c.l.b16 %v1620
  %v1653 = vunpack.c.l.b16 %v1621
  %v1654 = vunpack.c.l.b16 %v1622
  %v1655 = vunpack.c.l.b16 %v1623
  %v1656 = vunpack.c.l.b16 %v1624
  %v1657 = vunpack.c.l.b16 %v1625
  %v1658 = vunpack.c.l.b16 %v1626
  %v1659 = vunpack.c.l.b16 %v1627
  %v1660 = vunpack.c.l.b16 %v1628
  %v1661 = vunpack.c.l.b16 %v1629
  %v1662 = vunpack.c.l.b16 %v1630
  %v1663 = vunpack.c.l.b16 %v1631
  %v1664 = vunpack.c.l.b16 %v1632
  %v1665 = vunpack.c.l.b16 %v1633
  %v1666 = vunpack.c.l.b16 %v1634
  %v1667 = vpack.c.b16 %v1652, %v1651
  %v1668 = vpack.c.b16 %v1654, %v1653
  %v1669 = vpack.c.b16 %v1656, %v1655
  %v1670 = vpack.c.b16 %v1658, %v1657
  %v1671 = vpack.c.b16 %v1660, %v1659
  %v1672 = vpack.c.b16 %v1662, %v1661
  %v1673 = vpack.c.b16 %v1664, %v1663
  %v1674 = vpack.c.b16 %v1666, %v1665
  %1683 = vmatprep.subr.bf16.mxu0 0
  %1684 = vmatpush1.bf16.msra.mxu0 %v1667
  %1685 = vmatprep.subr.bf16.mxu0 0
  %1686 = vmatpush1.bf16.msra.mxu0 %v1668
  %1687 = vmatprep.subr.bf16.mxu0 0
  %1688 = vmatpush1.bf16.msra.mxu0 %v1669
  %1689 = vmatprep.subr.bf16.mxu0 0
  %1690 = vmatpush1.bf16.msra.mxu0 %v1670
  %1691 = vmatprep.subr.bf16.mxu0 0
  %1692 = vmatpush1.bf16.msra.mxu0 %v1671
  %1693 = vmatprep.subr.bf16.mxu0 0
  %1694 = vmatpush1.bf16.msra.mxu0 %v1672
  %1695 = vmatprep.subr.bf16.mxu0 0
  %1696 = vmatpush1.bf16.msra.mxu0 %v1673
  %1697 = vmatprep.subr.bf16.mxu0 0
  %1698 = vmatpush1.bf16.msra.mxu0 %v1674
  %1699 = vmatprep.subr.bf16.mxu0 0
  %1700 = vmatpush1.bf16.msra.mxu0 0
  %1701 = vmatprep.subr.bf16.mxu0 0
  %1702 = vmatpush1.bf16.msra.mxu0 0
  %1703 = vmatprep.subr.bf16.mxu0 0
  %1704 = vmatpush1.bf16.msra.mxu0 0
  %1705 = vmatprep.subr.bf16.mxu0 0
  %1706 = vmatpush1.bf16.msra.mxu0 0
  %1707 = vmatprep.subr.bf16.mxu0 0
  %1708 = vmatpush1.bf16.msra.mxu0 0
  %1709 = vmatprep.subr.bf16.mxu0 0
  %1710 = vmatpush1.bf16.msra.mxu0 0
  %1711 = vmatprep.subr.bf16.mxu0 0
  %1712 = vmatpush1.bf16.msra.mxu0 0
  %1713 = vmatprep.subr.bf16.mxu0 0
  %1714 = vmatpush1.bf16.msra.mxu0 0
  %1715 = vmatprep.mubr.bf16.mxu0 0
  %1716 = vmatmul.mubr.bf16.gmra.mrb[0].mxu0 %v1618
  %v1717 = vpop.f32.mrb[0].mxu0
  %v1718 = vadd.f32 %v644, %v1717
  %v1719 = vpop.f32.mrb[0].mxu0
  %v1720 = vpop.f32.mrb[0].mxu0
  %v1721 = vpop.f32.mrb[0].mxu0
  %1722 = vdwg.mxu0
  %v1723 = vtanh.pop %v1718
  %v1724 = vpack.c.bf16 %v1723, %v1723
  %v1725 = vld [vmem:[%s14] sm:$0xf]
  %v1726 = vld [vmem:[%s14 + $0x4] sm:$0xf]
  %v1727 = vld [vmem:[%s14 + $0x8] sm:$0xf]
  %v1728 = vld [vmem:[%s14 + $0xc] sm:$0xf]
  %v1729 = vld [vmem:[%s14 + $0x10] sm:$0xf]
  %v1730 = vld [vmem:[%s14 + $0x14] sm:$0xf]
  %v1731 = vld [vmem:[%s14 + $0x18] sm:$0xf]
  %v1732 = vld [vmem:[%s14 + $0x1c] sm:$0xf]
  %v1733 = vld [vmem:[%s14 + $0x20] sm:$0xf]
  %v1734 = vld [vmem:[%s14 + $0x24] sm:$0xf]
  %v1735 = vld [vmem:[%s14 + $0x28] sm:$0xf]
  %v1736 = vld [vmem:[%s14 + $0x2c] sm:$0xf]
  %v1737 = vld [vmem:[%s14 + $0x30] sm:$0xf]
  %v1738 = vld [vmem:[%s14 + $0x34] sm:$0xf]
  %v1739 = vld [vmem:[%s14 + $0x38] sm:$0xf]
  %v1740 = vld [vmem:[%s14 + $0x3c] sm:$0xf]
  %v1757 = vunpack.c.l.b16 %v1725
  %v1758 = vunpack.c.l.b16 %v1726
  %v1759 = vunpack.c.l.b16 %v1727
  %v1760 = vunpack.c.l.b16 %v1728
  %v1761 = vunpack.c.l.b16 %v1729
  %v1762 = vunpack.c.l.b16 %v1730
  %v1763 = vunpack.c.l.b16 %v1731
  %v1764 = vunpack.c.l.b16 %v1732
  %v1765 = vunpack.c.l.b16 %v1733
  %v1766 = vunpack.c.l.b16 %v1734
  %v1767 = vunpack.c.l.b16 %v1735
  %v1768 = vunpack.c.l.b16 %v1736
  %v1769 = vunpack.c.l.b16 %v1737
  %v1770 = vunpack.c.l.b16 %v1738
  %v1771 = vunpack.c.l.b16 %v1739
  %v1772 = vunpack.c.l.b16 %v1740
  %v1773 = vpack.c.b16 %v1758, %v1757
  %v1774 = vpack.c.b16 %v1760, %v1759
  %v1775 = vpack.c.b16 %v1762, %v1761
  %v1776 = vpack.c.b16 %v1764, %v1763
  %v1777 = vpack.c.b16 %v1766, %v1765
  %v1778 = vpack.c.b16 %v1768, %v1767
  %v1779 = vpack.c.b16 %v1770, %v1769
  %v1780 = vpack.c.b16 %v1772, %v1771
  %1789 = vmatprep.subr.bf16.mxu0 0
  %1790 = vmatpush1.bf16.msra.mxu0 %v1773
  %1791 = vmatprep.subr.bf16.mxu0 0
  %1792 = vmatpush1.bf16.msra.mxu0 %v1774
  %1793 = vmatprep.subr.bf16.mxu0 0
  %1794 = vmatpush1.bf16.msra.mxu0 %v1775
  %1795 = vmatprep.subr.bf16.mxu0 0
  %1796 = vmatpush1.bf16.msra.mxu0 %v1776
  %1797 = vmatprep.subr.bf16.mxu0 0
  %1798 = vmatpush1.bf16.msra.mxu0 %v1777
  %1799 = vmatprep.subr.bf16.mxu0 0
  %1800 = vmatpush1.bf16.msra.mxu0 %v1778
  %1801 = vmatprep.subr.bf16.mxu0 0
  %1802 = vmatpush1.bf16.msra.mxu0 %v1779
  %1803 = vmatprep.subr.bf16.mxu0 0
  %1804 = vmatpush1.bf16.msra.mxu0 %v1780
  %1805 = vmatprep.subr.bf16.mxu0 0
  %1806 = vmatpush1.bf16.msra.mxu0 0
  %1807 = vmatprep.subr.bf16.mxu0 0
  %1808 = vmatpush1.bf16.msra.mxu0 0
  %1809 = vmatprep.subr.bf16.mxu0 0
  %1810 = vmatpush1.bf16.msra.mxu0 0
  %1811 = vmatprep.subr.bf16.mxu0 0
  %1812 = vmatpush1.bf16.msra.mxu0 0
  %1813 = vmatprep.subr.bf16.mxu0 0
  %1814 = vmatpush1.bf16.msra.mxu0 0
  %1815 = vmatprep.subr.bf16.mxu0 0
  %1816 = vmatpush1.bf16.msra.mxu0 0
  %1817 = vmatprep.subr.bf16.mxu0 0
  %1818 = vmatpush1.bf16.msra.mxu0 0
  %1819 = vmatprep.subr.bf16.mxu0 0
  %1820 = vmatpush1.bf16.msra.mxu0 0
  %1821 = vmatprep.mubr.bf16.mxu0 0
  %1822 = vmatmul.mubr.bf16.gmra.mrb[0].mxu0 %v1724
  %v1823 = vpop.f32.mrb[0].mxu0
  %v1824 = vadd.f32 %v651, %v1823
  %v1825 = vpop.f32.mrb[0].mxu0
  %v1826 = vpop.f32.mrb[0].mxu0
  %v1827 = vpop.f32.mrb[0].mxu0
  %1828 = vdwg.mxu0
  %1829 = vst.msk [vmem:[%s20 + $0x8] sm:$0xff] %vm283, %v1824
  %v1830 = vld [vmem:[%s1 + $0x10] sm:$0xff]
  %v1831 = vsub.f32 1.0, %v1830
  %v1832 = vmul.f32 %v1831, %v1824
  %v1833 = vld [vmem:[#allocation4 + $0x30] sm:$0xff]
  %v1834 = vld [vmem:[#allocation4 + $0x38] sm:$0xff]
  %v1835 = vld [vmem:[#allocation4 + $0x40] sm:$0xff]
  %v1836 = vpack.c.bf16 %v1832, %v1832
  %v1837 = vld [vmem:[%s7] sm:$0xff]
  %v1838 = vld [vmem:[%s7 + $0x8] sm:$0xf]
  %v1841 = vunpack.c.l.b16 %v1837
  %v1842 = vunpack.c.h.b16 %v1837
  %v1843 = vunpack.c.l.b16 %v1838
  %v1844 = vpack.c.b16 %v1841, %v1841
  %v1845 = vpack.c.b16 %v1842, %v1842
  %v1846 = vpack.c.b16 %v1843, %v1843
  %v1848 = vsel %vm283, %v1836, 0
  %v1851 = vsel %vm293, %v1844, 0
  %v1854 = vsel %vm293, %v1845, 0
  %v1857 = vsel %vm293, %v1846, 0
  %1859 = vmatprep.subr.bf16.mxu0 %v1854
  %1860 = vmatpush1.bf16.msra.mxu0 %v1851
  %1861 = vmatprep.subr.bf16.mxu0 0
  %1862 = vmatpush1.bf16.msra.mxu0 0
  %1863 = vmatprep.subr.bf16.mxu0 0
  %1864 = vmatpush1.bf16.msra.mxu0 0
  %1865 = vmatprep.subr.bf16.mxu0 0
  %1866 = vmatpush1.bf16.msra.mxu0 0
  %1867 = vmatprep.subr.bf16.mxu0 0
  %1868 = vmatpush1.bf16.msra.mxu0 0
  %1869 = vmatprep.subr.bf16.mxu0 0
  %1870 = vmatpush1.bf16.msra.mxu0 0
  %1871 = vmatprep.subr.bf16.mxu0 0
  %1872 = vmatpush1.bf16.msra.mxu0 0
  %1873 = vmatprep.subr.bf16.mxu0 0
  %1874 = vmatpush1.bf16.msra.mxu0 0
  %1875 = vmatprep.subr.bf16.mxu0 0
  %1876 = vmatpush1.bf16.msra.mxu0 0
  %1877 = vmatprep.subr.bf16.mxu0 0
  %1878 = vmatpush1.bf16.msra.mxu0 0
  %1879 = vmatprep.subr.bf16.mxu0 0
  %1880 = vmatpush1.bf16.msra.mxu0 0
  %1881 = vmatprep.subr.bf16.mxu0 0
  %1882 = vmatpush1.bf16.msra.mxu0 0
  %1883 = vmatprep.subr.bf16.mxu0 0
  %1884 = vmatpush1.bf16.msra.mxu0 0
  %1885 = vmatprep.subr.bf16.mxu0 0
  %1886 = vmatpush1.bf16.msra.mxu0 0
  %1887 = vmatprep.subr.bf16.mxu0 0
  %1888 = vmatpush1.bf16.msra.mxu0 0
  %1889 = vmatprep.subr.bf16.mxu0 0
  %1890 = vmatpush1.bf16.msra.mxu0 0
  %1891 = vmatprep.mubr.bf16.mxu0 0
  %1892 = vmatmul.mubr.bf16.gmra.mrb[0].mxu0 %v1848
  %v1893 = vpop.f32.mrb[0].mxu0
  %v1894 = vadd.f32 0.0, %v1893
  %v1895 = vpop.f32.mrb[0].mxu0
  %v1896 = vadd.f32 0.0, %v1895
  %v1897 = vpop.f32.mrb[0].mxu0
  %v1898 = vpop.f32.mrb[0].mxu0
  %1899 = vdwg.mxu0
  %1900 = vmatprep.subr.bf16.mxu0 0
  %1901 = vmatpush1.bf16.msra.mxu0 %v1857
  %1902 = vmatprep.subr.bf16.mxu0 0
  %1903 = vmatpush1.bf16.msra.mxu0 0
  %1904 = vmatprep.subr.bf16.mxu0 0
  %1905 = vmatpush1.bf16.msra.mxu0 0
  %1906 = vmatprep.subr.bf16.mxu0 0
  %1907 = vmatpush1.bf16.msra.mxu0 0
  %1908 = vmatprep.subr.bf16.mxu0 0
  %1909 = vmatpush1.bf16.msra.mxu0 0
  %1910 = vmatprep.subr.bf16.mxu0 0
  %1911 = vmatpush1.bf16.msra.mxu0 0
  %1912 = vmatprep.subr.bf16.mxu0 0
  %1913 = vmatpush1.bf16.msra.mxu0 0
  %1914 = vmatprep.subr.bf16.mxu0 0
  %1915 = vmatpush1.bf16.msra.mxu0 0
  %1916 = vmatprep.subr.bf16.mxu0 0
  %1917 = vmatpush1.bf16.msra.mxu0 0
  %1918 = vmatprep.subr.bf16.mxu0 0
  %1919 = vmatpush1.bf16.msra.mxu0 0
  %1920 = vmatprep.subr.bf16.mxu0 0
  %1921 = vmatpush1.bf16.msra.mxu0 0
  %1922 = vmatprep.subr.bf16.mxu0 0
  %1923 = vmatpush1.bf16.msra.mxu0 0
  %1924 = vmatprep.subr.bf16.mxu0 0
  %1925 = vmatpush1.bf16.msra.mxu0 0
  %1926 = vmatprep.subr.bf16.mxu0 0
  %1927 = vmatpush1.bf16.msra.mxu0 0
  %1928 = vmatprep.subr.bf16.mxu0 0
  %1929 = vmatpush1.bf16.msra.mxu0 0
  %1930 = vmatprep.subr.bf16.mxu0 0
  %1931 = vmatpush1.bf16.msra.mxu0 0
  %1932 = vmatprep.mubr.bf16.mxu0 0
  %1933 = vmatmul.mubr.bf16.gmra.mrb[0].mxu0 %v1848
  %v1934 = vpop.f32.mrb[0].mxu0
  %v1935 = vadd.f32 0.0, %v1934
  %v1936 = vpop.f32.mrb[0].mxu0
  %v1937 = vpop.f32.mrb[0].mxu0
  %v1938 = vpop.f32.mrb[0].mxu0
  %1939 = vdwg.mxu0
  %v1940 = vadd.f32 %v1833, %v1894
  %v1941 = vadd.f32 %v1834, %v1896
  %v1942 = vadd.f32 %v1835, %v1935
  %v1943 = vld [vmem:[%s10] sm:$0xff]
  %v1944 = vld [vmem:[%s10 + $0x8] sm:$0xf]
  %v1945 = vld [vmem:[%s10 + $0xc] sm:$0xff]
  %v1946 = vld [vmem:[%s10 + $0x14] sm:$0xf]
  %v1947 = vld [vmem:[%s10 + $0x18] sm:$0xff]
  %v1948 = vld [vmem:[%s10 + $0x20] sm:$0xf]
  %v1949 = vld [vmem:[%s10 + $0x24] sm:$0xff]
  %v1950 = vld [vmem:[%s10 + $0x2c] sm:$0xf]
  %v1951 = vld [vmem:[%s10 + $0x30] sm:$0xff]
  %v1952 = vld [vmem:[%s10 + $0x38] sm:$0xf]
  %v1953 = vld [vmem:[%s10 + $0x3c] sm:$0xff]
  %v1954 = vld [vmem:[%s10 + $0x44] sm:$0xf]
  %v1955 = vld [vmem:[%s10 + $0x48] sm:$0xff]
  %v1956 = vld [vmem:[%s10 + $0x50] sm:$0xf]
  %v1957 = vld [vmem:[%s10 + $0x54] sm:$0xff]
  %v1958 = vld [vmem:[%s10 + $0x5c] sm:$0xf]
  %v1959 = vld [vmem:[%s10 + $0x60] sm:$0xff]
  %v1960 = vld [vmem:[%s10 + $0x68] sm:$0xf]
  %v1961 = vld [vmem:[%s10 + $0x6c] sm:$0xff]
  %v1962 = vld [vmem:[%s10 + $0x74] sm:$0xf]
  %v1963 = vld [vmem:[%s10 + $0x78] sm:$0xff]
  %v1964 = vld [vmem:[%s10 + $0x80] sm:$0xf]
  %v1965 = vld [vmem:[%s10 + $0x84] sm:$0xff]
  %v1966 = vld [vmem:[%s10 + $0x8c] sm:$0xf]
  %v1967 = vld [vmem:[%s10 + $0x90] sm:$0xff]
  %v1968 = vld [vmem:[%s10 + $0x98] sm:$0xf]
  %v1969 = vld [vmem:[%s10 + $0x9c] sm:$0xff]
  %v1970 = vld [vmem:[%s10 + $0xa4] sm:$0xf]
  %v1971 = vld [vmem:[%s10 + $0xa8] sm:$0xff]
  %v1972 = vld [vmem:[%s10 + $0xb0] sm:$0xf]
  %v1973 = vld [vmem:[%s10 + $0xb4] sm:$0xff]
  %v1974 = vld [vmem:[%s10 + $0xbc] sm:$0xf]
  %v2007 = vunpack.c.l.b16 %v1943
  %v2008 = vunpack.c.h.b16 %v1943
  %v2009 = vunpack.c.l.b16 %v1944
  %v2010 = vunpack.c.l.b16 %v1945
  %v2011 = vunpack.c.h.b16 %v1945
  %v2012 = vunpack.c.l.b16 %v1946
  %v2013 = vunpack.c.l.b16 %v1947
  %v2014 = vunpack.c.h.b16 %v1947
  %v2015 = vunpack.c.l.b16 %v1948
  %v2016 = vunpack.c.l.b16 %v1949
  %v2017 = vunpack.c.h.b16 %v1949
  %v2018 = vunpack.c.l.b16 %v1950
  %v2019 = vunpack.c.l.b16 %v1951
  %v2020 = vunpack.c.h.b16 %v1951
  %v2021 = vunpack.c.l.b16 %v1952
  %v2022 = vunpack.c.l.b16 %v1953
  %v2023 = vunpack.c.h.b16 %v1953
  %v2024 = vunpack.c.l.b16 %v1954
  %v2025 = vunpack.c.l.b16 %v1955
  %v2026 = vunpack.c.h.b16 %v1955
  %v2027 = vunpack.c.l.b16 %v1956
  %v2028 = vunpack.c.l.b16 %v1957
  %v2029 = vunpack.c.h.b16 %v1957
  %v2030 = vunpack.c.l.b16 %v1958
  %v2031 = vunpack.c.l.b16 %v1959
  %v2032 = vunpack.c.h.b16 %v1959
  %v2033 = vunpack.c.l.b16 %v1960
  %v2034 = vunpack.c.l.b16 %v1961
  %v2035 = vunpack.c.h.b16 %v1961
  %v2036 = vunpack.c.l.b16 %v1962
  %v2037 = vunpack.c.l.b16 %v1963
  %v2038 = vunpack.c.h.b16 %v1963
  %v2039 = vunpack.c.l.b16 %v1964
  %v2040 = vunpack.c.l.b16 %v1965
  %v2041 = vunpack.c.h.b16 %v1965
  %v2042 = vunpack.c.l.b16 %v1966
  %v2043 = vunpack.c.l.b16 %v1967
  %v2044 = vunpack.c.h.b16 %v1967
  %v2045 = vunpack.c.l.b16 %v1968
  %v2046 = vunpack.c.l.b16 %v1969
  %v2047 = vunpack.c.h.b16 %v1969
  %v2048 = vunpack.c.l.b16 %v1970
  %v2049 = vunpack.c.l.b16 %v1971
  %v2050 = vunpack.c.h.b16 %v1971
  %v2051 = vunpack.c.l.b16 %v1972
  %v2052 = vunpack.c.l.b16 %v1973
  %v2053 = vunpack.c.h.b16 %v1973
  %v2054 = vunpack.c.l.b16 %v1974
  %v2055 = vpack.c.b16 %v2010, %v2007
  %v2056 = vpack.c.b16 %v2011, %v2008
  %v2057 = vpack.c.b16 %v2012, %v2009
  %v2058 = vpack.c.b16 %v2016, %v2013
  %v2059 = vpack.c.b16 %v2017, %v2014
  %v2060 = vpack.c.b16 %v2018, %v2015
  %v2061 = vpack.c.b16 %v2022, %v2019
  %v2062 = vpack.c.b16 %v2023, %v2020
  %v2063 = vpack.c.b16 %v2024, %v2021
  %v2064 = vpack.c.b16 %v2028, %v2025
  %v2065 = vpack.c.b16 %v2029, %v2026
  %v2066 = vpack.c.b16 %v2030, %v2027
  %v2067 = vpack.c.b16 %v2034, %v2031
  %v2068 = vpack.c.b16 %v2035, %v2032
  %v2069 = vpack.c.b16 %v2036, %v2033
  %v2070 = vpack.c.b16 %v2040, %v2037
  %v2071 = vpack.c.b16 %v2041, %v2038
  %v2072 = vpack.c.b16 %v2042, %v2039
  %v2073 = vpack.c.b16 %v2046, %v2043
  %v2074 = vpack.c.b16 %v2047, %v2044
  %v2075 = vpack.c.b16 %v2048, %v2045
  %v2076 = vpack.c.b16 %v2052, %v2049
  %v2077 = vpack.c.b16 %v2053, %v2050
  %v2078 = vpack.c.b16 %v2054, %v2051
  %2103 = vmatprep.subr.bf16.mxu0 %v2056
  %2104 = vmatpush1.bf16.msra.mxu0 %v2055
  %2105 = vmatprep.subr.bf16.mxu0 %v2059
  %2106 = vmatpush1.bf16.msra.mxu0 %v2058
  %2107 = vmatprep.subr.bf16.mxu0 %v2062
  %2108 = vmatpush1.bf16.msra.mxu0 %v2061
  %2109 = vmatprep.subr.bf16.mxu0 %v2065
  %2110 = vmatpush1.bf16.msra.mxu0 %v2064
  %2111 = vmatprep.subr.bf16.mxu0 %v2068
  %2112 = vmatpush1.bf16.msra.mxu0 %v2067
  %2113 = vmatprep.subr.bf16.mxu0 %v2071
  %2114 = vmatpush1.bf16.msra.mxu0 %v2070
  %2115 = vmatprep.subr.bf16.mxu0 %v2074
  %2116 = vmatpush1.bf16.msra.mxu0 %v2073
  %2117 = vmatprep.subr.bf16.mxu0 %v2077
  %2118 = vmatpush1.bf16.msra.mxu0 %v2076
  %2119 = vmatprep.subr.bf16.mxu0 0
  %2120 = vmatpush1.bf16.msra.mxu0 0
  %2121 = vmatprep.subr.bf16.mxu0 0
  %2122 = vmatpush1.bf16.msra.mxu0 0
  %2123 = vmatprep.subr.bf16.mxu0 0
  %2124 = vmatpush1.bf16.msra.mxu0 0
  %2125 = vmatprep.subr.bf16.mxu0 0
  %2126 = vmatpush1.bf16.msra.mxu0 0
  %2127 = vmatprep.subr.bf16.mxu0 0
  %2128 = vmatpush1.bf16.msra.mxu0 0
  %2129 = vmatprep.subr.bf16.mxu0 0
  %2130 = vmatpush1.bf16.msra.mxu0 0
  %2131 = vmatprep.subr.bf16.mxu0 0
  %2132 = vmatpush1.bf16.msra.mxu0 0
  %2133 = vmatprep.subr.bf16.mxu0 0
  %2134 = vmatpush1.bf16.msra.mxu0 0
  %2135 = vmatprep.mubr.bf16.mxu0 0
  %2136 = vmatmul.mubr.bf16.gmra.mrb[0].mxu0 %v1618
  %v2137 = vpop.f32.mrb[0].mxu0
  %v2138 = vadd.f32 %v627, %v2137
  %v2139 = vpop.f32.mrb[0].mxu0
  %v2140 = vadd.f32 %v631, %v2139
  %v2141 = vpop.f32.mrb[0].mxu0
  %v2142 = vpop.f32.mrb[0].mxu0
  %2143 = vdwg.mxu0
  %2144 = vmatprep.subr.bf16.mxu0 0
  %2145 = vmatpush1.bf16.msra.mxu0 %v2057
  %2146 = vmatprep.subr.bf16.mxu0 0
  %2147 = vmatpush1.bf16.msra.mxu0 %v2060
  %2148 = vmatprep.subr.bf16.mxu0 0
  %2149 = vmatpush1.bf16.msra.mxu0 %v2063
  %2150 = vmatprep.subr.bf16.mxu0 0
  %2151 = vmatpush1.bf16.msra.mxu0 %v2066
  %2152 = vmatprep.subr.bf16.mxu0 0
  %2153 = vmatpush1.bf16.msra.mxu0 %v2069
  %2154 = vmatprep.subr.bf16.mxu0 0
  %2155 = vmatpush1.bf16.msra.mxu0 %v2072
  %2156 = vmatprep.subr.bf16.mxu0 0
  %2157 = vmatpush1.bf16.msra.mxu0 %v2075
  %2158 = vmatprep.subr.bf16.mxu0 0
  %2159 = vmatpush1.bf16.msra.mxu0 %v2078
  %2160 = vmatprep.subr.bf16.mxu0 0
  %2161 = vmatpush1.bf16.msra.mxu0 0
  %2162 = vmatprep.subr.bf16.mxu0 0
  %2163 = vmatpush1.bf16.msra.mxu0 0
  %2164 = vmatprep.subr.bf16.mxu0 0
  %2165 = vmatpush1.bf16.msra.mxu0 0
  %2166 = vmatprep.subr.bf16.mxu0 0
  %2167 = vmatpush1.bf16.msra.mxu0 0
  %2168 = vmatprep.subr.bf16.mxu0 0
  %2169 = vmatpush1.bf16.msra.mxu0 0
  %2170 = vmatprep.subr.bf16.mxu0 0
  %2171 = vmatpush1.bf16.msra.mxu0 0
  %2172 = vmatprep.subr.bf16.mxu0 0
  %2173 = vmatpush1.bf16.msra.mxu0 0
  %2174 = vmatprep.subr.bf16.mxu0 0
  %2175 = vmatpush1.bf16.msra.mxu0 0
  %2176 = vmatprep.mubr.bf16.mxu0 0
  %2177 = vmatmul.mubr.bf16.gmra.mrb[0].mxu0 %v1618
  %v2178 = vpop.f32.mrb[0].mxu0
  %v2179 = vadd.f32 %v635, %v2178
  %v2180 = vpop.f32.mrb[0].mxu0
  %v2181 = vpop.f32.mrb[0].mxu0
  %v2182 = vpop.f32.mrb[0].mxu0
  %2183 = vdwg.mxu0
  %v2184 = vadd.f32 %v1940, %v2138
  %v2185 = vxor.u32 %v2184, 2147483648
  %v2186 = vmul.f32 %v2185, 1.442695
  %v2187 = vpow.pop %v2186
  %v2188 = vadd.f32 %v2187, 1.0
  %v2189 = vrcp.pop %v2188
  %v2190 = vmul.f32 1.0, %v2189
  %v2191 = vadd.f32 %v1941, %v2140
  %v2192 = vxor.u32 %v2191, 2147483648
  %v2193 = vmul.f32 %v2192, 1.442695
  %v2194 = vpow.pop %v2193
  %v2195 = vadd.f32 %v2194, 1.0
  %v2196 = vrcp.pop %v2195
  %v2197 = vmul.f32 1.0, %v2196
  %v2198 = vmul.f32 %v2190, %v2179
  %v2199 = vadd.f32 %v1942, %v2198
  %v2200 = vtanh.pop %v2199
  %v2201 = vsub.f32 1.0, %v2197
  %v2202 = vmul.f32 %v2201, %v2200
  %v2203 = vmul.f32 %v2197, %v1617
  %v2204 = vadd.f32 %v2202, %v2203
  %v2205 = vpack.c.bf16 %v2204, %v2204
  %v2206 = vld [vmem:[%s12] sm:$0xf]
  %v2207 = vld [vmem:[%s12 + $0x4] sm:$0xf]
  %v2208 = vld [vmem:[%s12 + $0x8] sm:$0xf]
  %v2209 = vld [vmem:[%s12 + $0xc] sm:$0xf]
  %v2210 = vld [vmem:[%s12 + $0x10] sm:$0xf]
  %v2211 = vld [vmem:[%s12 + $0x14] sm:$0xf]
  %v2212 = vld [vmem:[%s12 + $0x18] sm:$0xf]
  %v2213 = vld [vmem:[%s12 + $0x1c] sm:$0xf]
  %v2214 = vld [vmem:[%s12 + $0x20] sm:$0xf]
  %v2215 = vld [vmem:[%s12 + $0x24] sm:$0xf]
  %v2216 = vld [vmem:[%s12 + $0x28] sm:$0xf]
  %v2217 = vld [vmem:[%s12 + $0x2c] sm:$0xf]
  %v2218 = vld [vmem:[%s12 + $0x30] sm:$0xf]
  %v2219 = vld [vmem:[%s12 + $0x34] sm:$0xf]
  %v2220 = vld [vmem:[%s12 + $0x38] sm:$0xf]
  %v2221 = vld [vmem:[%s12 + $0x3c] sm:$0xf]
  %v2238 = vunpack.c.l.b16 %v2206
  %v2239 = vunpack.c.l.b16 %v2207
  %v2240 = vunpack.c.l.b16 %v2208
  %v2241 = vunpack.c.l.b16 %v2209
  %v2242 = vunpack.c.l.b16 %v2210
  %v2243 = vunpack.c.l.b16 %v2211
  %v2244 = vunpack.c.l.b16 %v2212
  %v2245 = vunpack.c.l.b16 %v2213
  %v2246 = vunpack.c.l.b16 %v2214
  %v2247 = vunpack.c.l.b16 %v2215
  %v2248 = vunpack.c.l.b16 %v2216
  %v2249 = vunpack.c.l.b16 %v2217
  %v2250 = vunpack.c.l.b16 %v2218
  %v2251 = vunpack.c.l.b16 %v2219
  %v2252 = vunpack.c.l.b16 %v2220
  %v2253 = vunpack.c.l.b16 %v2221
  %v2254 = vpack.c.b16 %v2239, %v2238
  %v2255 = vpack.c.b16 %v2241, %v2240
  %v2256 = vpack.c.b16 %v2243, %v2242
  %v2257 = vpack.c.b16 %v2245, %v2244
  %v2258 = vpack.c.b16 %v2247, %v2246
  %v2259 = vpack.c.b16 %v2249, %v2248
  %v2260 = vpack.c.b16 %v2251, %v2250
  %v2261 = vpack.c.b16 %v2253, %v2252
  %2270 = vmatprep.subr.bf16.mxu0 0
  %2271 = vmatpush1.bf16.msra.mxu0 %v2254
  %2272 = vmatprep.subr.bf16.mxu0 0
  %2273 = vmatpush1.bf16.msra.mxu0 %v2255
  %2274 = vmatprep.subr.bf16.mxu0 0
  %2275 = vmatpush1.bf16.msra.mxu0 %v2256
  %2276 = vmatprep.subr.bf16.mxu0 0
  %2277 = vmatpush1.bf16.msra.mxu0 %v2257
  %2278 = vmatprep.subr.bf16.mxu0 0
  %2279 = vmatpush1.bf16.msra.mxu0 %v2258
  %2280 = vmatprep.subr.bf16.mxu0 0
  %2281 = vmatpush1.bf16.msra.mxu0 %v2259
  %2282 = vmatprep.subr.bf16.mxu0 0
  %2283 = vmatpush1.bf16.msra.mxu0 %v2260
  %2284 = vmatprep.subr.bf16.mxu0 0
  %2285 = vmatpush1.bf16.msra.mxu0 %v2261
  %2286 = vmatprep.subr.bf16.mxu0 0
  %2287 = vmatpush1.bf16.msra.mxu0 0
  %2288 = vmatprep.subr.bf16.mxu0 0
  %2289 = vmatpush1.bf16.msra.mxu0 0
  %2290 = vmatprep.subr.bf16.mxu0 0
  %2291 = vmatpush1.bf16.msra.mxu0 0
  %2292 = vmatprep.subr.bf16.mxu0 0
  %2293 = vmatpush1.bf16.msra.mxu0 0
  %2294 = vmatprep.subr.bf16.mxu0 0
  %2295 = vmatpush1.bf16.msra.mxu0 0
  %2296 = vmatprep.subr.bf16.mxu0 0
  %2297 = vmatpush1.bf16.msra.mxu0 0
  %2298 = vmatprep.subr.bf16.mxu0 0
  %2299 = vmatpush1.bf16.msra.mxu0 0
  %2300 = vmatprep.subr.bf16.mxu0 0
  %2301 = vmatpush1.bf16.msra.mxu0 0
  %2302 = vmatprep.mubr.bf16.mxu0 0
  %2303 = vmatmul.mubr.bf16.gmra.mrb[0].mxu0 %v2205
  %v2304 = vpop.f32.mrb[0].mxu0
  %v2305 = vadd.f32 %v644, %v2304
  %v2306 = vpop.f32.mrb[0].mxu0
  %v2307 = vpop.f32.mrb[0].mxu0
  %v2308 = vpop.f32.mrb[0].mxu0
  %2309 = vdwg.mxu0
  %v2310 = vtanh.pop %v2305
  %v2311 = vpack.c.bf16 %v2310, %v2310
  %v2312 = vld [vmem:[%s14] sm:$0xf]
  %v2313 = vld [vmem:[%s14 + $0x4] sm:$0xf]
  %v2314 = vld [vmem:[%s14 + $0x8] sm:$0xf]
  %v2315 = vld [vmem:[%s14 + $0xc] sm:$0xf]
  %v2316 = vld [vmem:[%s14 + $0x10] sm:$0xf]
  %v2317 = vld [vmem:[%s14 + $0x14] sm:$0xf]
  %v2318 = vld [vmem:[%s14 + $0x18] sm:$0xf]
  %v2319 = vld [vmem:[%s14 + $0x1c] sm:$0xf]
  %v2320 = vld [vmem:[%s14 + $0x20] sm:$0xf]
  %v2321 = vld [vmem:[%s14 + $0x24] sm:$0xf]
  %v2322 = vld [vmem:[%s14 + $0x28] sm:$0xf]
  %v2323 = vld [vmem:[%s14 + $0x2c] sm:$0xf]
  %v2324 = vld [vmem:[%s14 + $0x30] sm:$0xf]
  %v2325 = vld [vmem:[%s14 + $0x34] sm:$0xf]
  %v2326 = vld [vmem:[%s14 + $0x38] sm:$0xf]
  %v2327 = vld [vmem:[%s14 + $0x3c] sm:$0xf]
  %v2344 = vunpack.c.l.b16 %v2312
  %v2345 = vunpack.c.l.b16 %v2313
  %v2346 = vunpack.c.l.b16 %v2314
  %v2347 = vunpack.c.l.b16 %v2315
  %v2348 = vunpack.c.l.b16 %v2316
  %v2349 = vunpack.c.l.b16 %v2317
  %v2350 = vunpack.c.l.b16 %v2318
  %v2351 = vunpack.c.l.b16 %v2319
  %v2352 = vunpack.c.l.b16 %v2320
  %v2353 = vunpack.c.l.b16 %v2321
  %v2354 = vunpack.c.l.b16 %v2322
  %v2355 = vunpack.c.l.b16 %v2323
  %v2356 = vunpack.c.l.b16 %v2324
  %v2357 = vunpack.c.l.b16 %v2325
  %v2358 = vunpack.c.l.b16 %v2326
  %v2359 = vunpack.c.l.b16 %v2327
  %v2360 = vpack.c.b16 %v2345, %v2344
  %v2361 = vpack.c.b16 %v2347, %v2346
  %v2362 = vpack.c.b16 %v2349, %v2348
  %v2363 = vpack.c.b16 %v2351, %v2350
  %v2364 = vpack.c.b16 %v2353, %v2352
  %v2365 = vpack.c.b16 %v2355, %v2354
  %v2366 = vpack.c.b16 %v2357, %v2356
  %v2367 = vpack.c.b16 %v2359, %v2358
  %2376 = vmatprep.subr.bf16.mxu0 0
  %2377 = vmatpush1.bf16.msra.mxu0 %v2360
  %2378 = vmatprep.subr.bf16.mxu0 0
  %2379 = vmatpush1.bf16.msra.mxu0 %v2361
  %2380 = vmatprep.subr.bf16.mxu0 0
  %2381 = vmatpush1.bf16.msra.mxu0 %v2362
  %2382 = vmatprep.subr.bf16.mxu0 0
  %2383 = vmatpush1.bf16.msra.mxu0 %v2363
  %2384 = vmatprep.subr.bf16.mxu0 0
  %2385 = vmatpush1.bf16.msra.mxu0 %v2364
  %2386 = vmatprep.subr.bf16.mxu0 0
  %2387 = vmatpush1.bf16.msra.mxu0 %v2365
  %2388 = vmatprep.subr.bf16.mxu0 0
  %2389 = vmatpush1.bf16.msra.mxu0 %v2366
  %2390 = vmatprep.subr.bf16.mxu0 0
  %2391 = vmatpush1.bf16.msra.mxu0 %v2367
  %2392 = vmatprep.subr.bf16.mxu0 0
  %2393 = vmatpush1.bf16.msra.mxu0 0
  %2394 = vmatprep.subr.bf16.mxu0 0
  %2395 = vmatpush1.bf16.msra.mxu0 0
  %2396 = vmatprep.subr.bf16.mxu0 0
  %2397 = vmatpush1.bf16.msra.mxu0 0
  %2398 = vmatprep.subr.bf16.mxu0 0
  %2399 = vmatpush1.bf16.msra.mxu0 0
  %2400 = vmatprep.subr.bf16.mxu0 0
  %2401 = vmatpush1.bf16.msra.mxu0 0
  %2402 = vmatprep.subr.bf16.mxu0 0
  %2403 = vmatpush1.bf16.msra.mxu0 0
  %2404 = vmatprep.subr.bf16.mxu0 0
  %2405 = vmatpush1.bf16.msra.mxu0 0
  %2406 = vmatprep.subr.bf16.mxu0 0
  %2407 = vmatpush1.bf16.msra.mxu0 0
  %2408 = vmatprep.mubr.bf16.mxu0 0
  %2409 = vmatmul.mubr.bf16.gmra.mrb[0].mxu0 %v2311
  %v2410 = vpop.f32.mrb[0].mxu0
  %v2411 = vadd.f32 %v651, %v2410
  %v2412 = vpop.f32.mrb[0].mxu0
  %v2413 = vpop.f32.mrb[0].mxu0
  %v2414 = vpop.f32.mrb[0].mxu0
  %2415 = vdwg.mxu0
  %2416 = vst.msk [vmem:[%s20 + $0x10] sm:$0xff] %vm283, %v2411
  %v2417 = vld [vmem:[%s1 + $0x18] sm:$0xff]
  %v2418 = vsub.f32 1.0, %v2417
  %v2419 = vmul.f32 %v2418, %v2411
  %v2420 = vld [vmem:[#allocation4 + $0x48] sm:$0xff]
  %v2421 = vld [vmem:[#allocation4 + $0x50] sm:$0xff]
  %v2422 = vld [vmem:[#allocation4 + $0x58] sm:$0xff]
  %v2423 = vpack.c.bf16 %v2419, %v2419
  %v2424 = vld [vmem:[%s7] sm:$0xff]
  %v2425 = vld [vmem:[%s7 + $0x8] sm:$0xf]
  %v2428 = vunpack.c.l.b16 %v2424
  %v2429 = vunpack.c.h.b16 %v2424
  %v2430 = vunpack.c.l.b16 %v2425
  %v2431 = vpack.c.b16 %v2428, %v2428
  %v2432 = vpack.c.b16 %v2429, %v2429
  %v2433 = vpack.c.b16 %v2430, %v2430
  %v2435 = vsel %vm283, %v2423, 0
  %v2438 = vsel %vm293, %v2431, 0
  %v2441 = vsel %vm293, %v2432, 0
  %v2444 = vsel %vm293, %v2433, 0
  %2446 = vmatprep.subr.bf16.mxu0 %v2441
  %2447 = vmatpush1.bf16.msra.mxu0 %v2438
  %2448 = vmatprep.subr.bf16.mxu0 0
  %2449 = vmatpush1.bf16.msra.mxu0 0
  %2450 = vmatprep.subr.bf16.mxu0 0
  %2451 = vmatpush1.bf16.msra.mxu0 0
  %2452 = vmatprep.subr.bf16.mxu0 0
  %2453 = vmatpush1.bf16.msra.mxu0 0
  %2454 = vmatprep.subr.bf16.mxu0 0
  %2455 = vmatpush1.bf16.msra.mxu0 0
  %2456 = vmatprep.subr.bf16.mxu0 0
  %2457 = vmatpush1.bf16.msra.mxu0 0
  %2458 = vmatprep.subr.bf16.mxu0 0
  %2459 = vmatpush1.bf16.msra.mxu0 0
  %2460 = vmatprep.subr.bf16.mxu0 0
  %2461 = vmatpush1.bf16.msra.mxu0 0
  %2462 = vmatprep.subr.bf16.mxu0 0
  %2463 = vmatpush1.bf16.msra.mxu0 0
  %2464 = vmatprep.subr.bf16.mxu0 0
  %2465 = vmatpush1.bf16.msra.mxu0 0
  %2466 = vmatprep.subr.bf16.mxu0 0
  %2467 = vmatpush1.bf16.msra.mxu0 0
  %2468 = vmatprep.subr.bf16.mxu0 0
  %2469 = vmatpush1.bf16.msra.mxu0 0
  %2470 = vmatprep.subr.bf16.mxu0 0
  %2471 = vmatpush1.bf16.msra.mxu0 0
  %2472 = vmatprep.subr.bf16.mxu0 0
  %2473 = vmatpush1.bf16.msra.mxu0 0
  %2474 = vmatprep.subr.bf16.mxu0 0
  %2475 = vmatpush1.bf16.msra.mxu0 0
  %2476 = vmatprep.subr.bf16.mxu0 0
  %2477 = vmatpush1.bf16.msra.mxu0 0
  %2478 = vmatprep.mubr.bf16.mxu0 0
  %2479 = vmatmul.mubr.bf16.gmra.mrb[0].mxu0 %v2435
  %v2480 = vpop.f32.mrb[0].mxu0
  %v2481 = vadd.f32 0.0, %v2480
  %v2482 = vpop.f32.mrb[0].mxu0
  %v2483 = vadd.f32 0.0, %v2482
  %v2484 = vpop.f32.mrb[0].mxu0
  %v2485 = vpop.f32.mrb[0].mxu0
  %2486 = vdwg.mxu0
  %2487 = vmatprep.subr.bf16.mxu0 0
  %2488 = vmatpush1.bf16.msra.mxu0 %v2444
  %2489 = vmatprep.subr.bf16.mxu0 0
  %2490 = vmatpush1.bf16.msra.mxu0 0
  %2491 = vmatprep.subr.bf16.mxu0 0
  %2492 = vmatpush1.bf16.msra.mxu0 0
  %2493 = vmatprep.subr.bf16.mxu0 0
  %2494 = vmatpush1.bf16.msra.mxu0 0
  %2495 = vmatprep.subr.bf16.mxu0 0
  %2496 = vmatpush1.bf16.msra.mxu0 0
  %2497 = vmatprep.subr.bf16.mxu0 0
  %2498 = vmatpush1.bf16.msra.mxu0 0
  %2499 = vmatprep.subr.bf16.mxu0 0
  %2500 = vmatpush1.bf16.msra.mxu0 0
  %2501 = vmatprep.subr.bf16.mxu0 0
  %2502 = vmatpush1.bf16.msra.mxu0 0
  %2503 = vmatprep.subr.bf16.mxu0 0
  %2504 = vmatpush1.bf16.msra.mxu0 0
  %2505 = vmatprep.subr.bf16.mxu0 0
  %2506 = vmatpush1.bf16.msra.mxu0 0
  %2507 = vmatprep.subr.bf16.mxu0 0
  %2508 = vmatpush1.bf16.msra.mxu0 0
  %2509 = vmatprep.subr.bf16.mxu0 0
  %2510 = vmatpush1.bf16.msra.mxu0 0
  %2511 = vmatprep.subr.bf16.mxu0 0
  %2512 = vmatpush1.bf16.msra.mxu0 0
  %2513 = vmatprep.subr.bf16.mxu0 0
  %2514 = vmatpush1.bf16.msra.mxu0 0
  %2515 = vmatprep.subr.bf16.mxu0 0
  %2516 = vmatpush1.bf16.msra.mxu0 0
  %2517 = vmatprep.subr.bf16.mxu0 0
  %2518 = vmatpush1.bf16.msra.mxu0 0
  %2519 = vmatprep.mubr.bf16.mxu0 0
  %2520 = vmatmul.mubr.bf16.gmra.mrb[0].mxu0 %v2435
  %v2521 = vpop.f32.mrb[0].mxu0
  %v2522 = vadd.f32 0.0, %v2521
  %v2523 = vpop.f32.mrb[0].mxu0
  %v2524 = vpop.f32.mrb[0].mxu0
  %v2525 = vpop.f32.mrb[0].mxu0
  %2526 = vdwg.mxu0
  %v2527 = vadd.f32 %v2420, %v2481
  %v2528 = vadd.f32 %v2421, %v2483
  %v2529 = vadd.f32 %v2422, %v2522
  %v2530 = vld [vmem:[%s10] sm:$0xff]
  %v2531 = vld [vmem:[%s10 + $0x8] sm:$0xf]
  %v2532 = vld [vmem:[%s10 + $0xc] sm:$0xff]
  %v2533 = vld [vmem:[%s10 + $0x14] sm:$0xf]
  %v2534 = vld [vmem:[%s10 + $0x18] sm:$0xff]
  %v2535 = vld [vmem:[%s10 + $0x20] sm:$0xf]
  %v2536 = vld [vmem:[%s10 + $0x24] sm:$0xff]
  %v2537 = vld [vmem:[%s10 + $0x2c] sm:$0xf]
  %v2538 = vld [vmem:[%s10 + $0x30] sm:$0xff]
  %v2539 = vld [vmem:[%s10 + $0x38] sm:$0xf]
  %v2540 = vld [vmem:[%s10 + $0x3c] sm:$0xff]
  %v2541 = vld [vmem:[%s10 + $0x44] sm:$0xf]
  %v2542 = vld [vmem:[%s10 + $0x48] sm:$0xff]
  %v2543 = vld [vmem:[%s10 + $0x50] sm:$0xf]
  %v2544 = vld [vmem:[%s10 + $0x54] sm:$0xff]
  %v2545 = vld [vmem:[%s10 + $0x5c] sm:$0xf]
  %v2546 = vld [vmem:[%s10 + $0x60] sm:$0xff]
  %v2547 = vld [vmem:[%s10 + $0x68] sm:$0xf]
  %v2548 = vld [vmem:[%s10 + $0x6c] sm:$0xff]
  %v2549 = vld [vmem:[%s10 + $0x74] sm:$0xf]
  %v2550 = vld [vmem:[%s10 + $0x78] sm:$0xff]
  %v2551 = vld [vmem:[%s10 + $0x80] sm:$0xf]
  %v2552 = vld [vmem:[%s10 + $0x84] sm:$0xff]
  %v2553 = vld [vmem:[%s10 + $0x8c] sm:$0xf]
  %v2554 = vld [vmem:[%s10 + $0x90] sm:$0xff]
  %v2555 = vld [vmem:[%s10 + $0x98] sm:$0xf]
  %v2556 = vld [vmem:[%s10 + $0x9c] sm:$0xff]
  %v2557 = vld [vmem:[%s10 + $0xa4] sm:$0xf]
  %v2558 = vld [vmem:[%s10 + $0xa8] sm:$0xff]
  %v2559 = vld [vmem:[%s10 + $0xb0] sm:$0xf]
  %v2560 = vld [vmem:[%s10 + $0xb4] sm:$0xff]
  %v2561 = vld [vmem:[%s10 + $0xbc] sm:$0xf]
  %v2594 = vunpack.c.l.b16 %v2530
  %v2595 = vunpack.c.h.b16 %v2530
  %v2596 = vunpack.c.l.b16 %v2531
  %v2597 = vunpack.c.l.b16 %v2532
  %v2598 = vunpack.c.h.b16 %v2532
  %v2599 = vunpack.c.l.b16 %v2533
  %v2600 = vunpack.c.l.b16 %v2534
  %v2601 = vunpack.c.h.b16 %v2534
  %v2602 = vunpack.c.l.b16 %v2535
  %v2603 = vunpack.c.l.b16 %v2536
  %v2604 = vunpack.c.h.b16 %v2536
  %v2605 = vunpack.c.l.b16 %v2537
  %v2606 = vunpack.c.l.b16 %v2538
  %v2607 = vunpack.c.h.b16 %v2538
  %v2608 = vunpack.c.l.b16 %v2539
  %v2609 = vunpack.c.l.b16 %v2540
  %v2610 = vunpack.c.h.b16 %v2540
  %v2611 = vunpack.c.l.b16 %v2541
  %v2612 = vunpack.c.l.b16 %v2542
  %v2613 = vunpack.c.h.b16 %v2542
  %v2614 = vunpack.c.l.b16 %v2543
  %v2615 = vunpack.c.l.b16 %v2544
  %v2616 = vunpack.c.h.b16 %v2544
  %v2617 = vunpack.c.l.b16 %v2545
  %v2618 = vunpack.c.l.b16 %v2546
  %v2619 = vunpack.c.h.b16 %v2546
  %v2620 = vunpack.c.l.b16 %v2547
  %v2621 = vunpack.c.l.b16 %v2548
  %v2622 = vunpack.c.h.b16 %v2548
  %v2623 = vunpack.c.l.b16 %v2549
  %v2624 = vunpack.c.l.b16 %v2550
  %v2625 = vunpack.c.h.b16 %v2550
  %v2626 = vunpack.c.l.b16 %v2551
  %v2627 = vunpack.c.l.b16 %v2552
  %v2628 = vunpack.c.h.b16 %v2552
  %v2629 = vunpack.c.l.b16 %v2553
  %v2630 = vunpack.c.l.b16 %v2554
  %v2631 = vunpack.c.h.b16 %v2554
  %v2632 = vunpack.c.l.b16 %v2555
  %v2633 = vunpack.c.l.b16 %v2556
  %v2634 = vunpack.c.h.b16 %v2556
  %v2635 = vunpack.c.l.b16 %v2557
  %v2636 = vunpack.c.l.b16 %v2558
  %v2637 = vunpack.c.h.b16 %v2558
  %v2638 = vunpack.c.l.b16 %v2559
  %v2639 = vunpack.c.l.b16 %v2560
  %v2640 = vunpack.c.h.b16 %v2560
  %v2641 = vunpack.c.l.b16 %v2561
  %v2642 = vpack.c.b16 %v2597, %v2594
  %v2643 = vpack.c.b16 %v2598, %v2595
  %v2644 = vpack.c.b16 %v2599, %v2596
  %v2645 = vpack.c.b16 %v2603, %v2600
  %v2646 = vpack.c.b16 %v2604, %v2601
  %v2647 = vpack.c.b16 %v2605, %v2602
  %v2648 = vpack.c.b16 %v2609, %v2606
  %v2649 = vpack.c.b16 %v2610, %v2607
  %v2650 = vpack.c.b16 %v2611, %v2608
  %v2651 = vpack.c.b16 %v2615, %v2612
  %v2652 = vpack.c.b16 %v2616, %v2613
  %v2653 = vpack.c.b16 %v2617, %v2614
  %v2654 = vpack.c.b16 %v2621, %v2618
  %v2655 = vpack.c.b16 %v2622, %v2619
  %v2656 = vpack.c.b16 %v2623, %v2620
  %v2657 = vpack.c.b16 %v2627, %v2624
  %v2658 = vpack.c.b16 %v2628, %v2625
  %v2659 = vpack.c.b16 %v2629, %v2626
  %v2660 = vpack.c.b16 %v2633, %v2630
  %v2661 = vpack.c.b16 %v2634, %v2631
  %v2662 = vpack.c.b16 %v2635, %v2632
  %v2663 = vpack.c.b16 %v2639, %v2636
  %v2664 = vpack.c.b16 %v2640, %v2637
  %v2665 = vpack.c.b16 %v2641, %v2638
  %2690 = vmatprep.subr.bf16.mxu0 %v2643
  %2691 = vmatpush1.bf16.msra.mxu0 %v2642
  %2692 = vmatprep.subr.bf16.mxu0 %v2646
  %2693 = vmatpush1.bf16.msra.mxu0 %v2645
  %2694 = vmatprep.subr.bf16.mxu0 %v2649
  %2695 = vmatpush1.bf16.msra.mxu0 %v2648
  %2696 = vmatprep.subr.bf16.mxu0 %v2652
  %2697 = vmatpush1.bf16.msra.mxu0 %v2651
  %2698 = vmatprep.subr.bf16.mxu0 %v2655
  %2699 = vmatpush1.bf16.msra.mxu0 %v2654
  %2700 = vmatprep.subr.bf16.mxu0 %v2658
  %2701 = vmatpush1.bf16.msra.mxu0 %v2657
  %2702 = vmatprep.subr.bf16.mxu0 %v2661
  %2703 = vmatpush1.bf16.msra.mxu0 %v2660
  %2704 = vmatprep.subr.bf16.mxu0 %v2664
  %2705 = vmatpush1.bf16.msra.mxu0 %v2663
  %2706 = vmatprep.subr.bf16.mxu0 0
  %2707 = vmatpush1.bf16.msra.mxu0 0
  %2708 = vmatprep.subr.bf16.mxu0 0
  %2709 = vmatpush1.bf16.msra.mxu0 0
  %2710 = vmatprep.subr.bf16.mxu0 0
  %2711 = vmatpush1.bf16.msra.mxu0 0
  %2712 = vmatprep.subr.bf16.mxu0 0
  %2713 = vmatpush1.bf16.msra.mxu0 0
  %2714 = vmatprep.subr.bf16.mxu0 0
  %2715 = vmatpush1.bf16.msra.mxu0 0
  %2716 = vmatprep.subr.bf16.mxu0 0
  %2717 = vmatpush1.bf16.msra.mxu0 0
  %2718 = vmatprep.subr.bf16.mxu0 0
  %2719 = vmatpush1.bf16.msra.mxu0 0
  %2720 = vmatprep.subr.bf16.mxu0 0
  %2721 = vmatpush1.bf16.msra.mxu0 0
  %2722 = vmatprep.mubr.bf16.mxu0 0
  %2723 = vmatmul.mubr.bf16.gmra.mrb[0].mxu0 %v2205
  %v2724 = vpop.f32.mrb[0].mxu0
  %v2725 = vadd.f32 %v627, %v2724
  %v2726 = vpop.f32.mrb[0].mxu0
  %v2727 = vadd.f32 %v631, %v2726
  %v2728 = vpop.f32.mrb[0].mxu0
  %v2729 = vpop.f32.mrb[0].mxu0
  %2730 = vdwg.mxu0
  %2731 = vmatprep.subr.bf16.mxu0 0
  %2732 = vmatpush1.bf16.msra.mxu0 %v2644
  %2733 = vmatprep.subr.bf16.mxu0 0
  %2734 = vmatpush1.bf16.msra.mxu0 %v2647
  %2735 = vmatprep.subr.bf16.mxu0 0
  %2736 = vmatpush1.bf16.msra.mxu0 %v2650
  %2737 = vmatprep.subr.bf16.mxu0 0
  %2738 = vmatpush1.bf16.msra.mxu0 %v2653
  %2739 = vmatprep.subr.bf16.mxu0 0
  %2740 = vmatpush1.bf16.msra.mxu0 %v2656
  %2741 = vmatprep.subr.bf16.mxu0 0
  %2742 = vmatpush1.bf16.msra.mxu0 %v2659
  %2743 = vmatprep.subr.bf16.mxu0 0
  %2744 = vmatpush1.bf16.msra.mxu0 %v2662
  %2745 = vmatprep.subr.bf16.mxu0 0
  %2746 = vmatpush1.bf16.msra.mxu0 %v2665
  %2747 = vmatprep.subr.bf16.mxu0 0
  %2748 = vmatpush1.bf16.msra.mxu0 0
  %2749 = vmatprep.subr.bf16.mxu0 0
  %2750 = vmatpush1.bf16.msra.mxu0 0
  %2751 = vmatprep.subr.bf16.mxu0 0
  %2752 = vmatpush1.bf16.msra.mxu0 0
  %2753 = vmatprep.subr.bf16.mxu0 0
  %2754 = vmatpush1.bf16.msra.mxu0 0
  %2755 = vmatprep.subr.bf16.mxu0 0
  %2756 = vmatpush1.bf16.msra.mxu0 0
  %2757 = vmatprep.subr.bf16.mxu0 0
  %2758 = vmatpush1.bf16.msra.mxu0 0
  %2759 = vmatprep.subr.bf16.mxu0 0
  %2760 = vmatpush1.bf16.msra.mxu0 0
  %2761 = vmatprep.subr.bf16.mxu0 0
  %2762 = vmatpush1.bf16.msra.mxu0 0
  %2763 = vmatprep.mubr.bf16.mxu0 0
  %2764 = vmatmul.mubr.bf16.gmra.mrb[0].mxu0 %v2205
  %v2765 = vpop.f32.mrb[0].mxu0
  %v2766 = vadd.f32 %v635, %v2765
  %v2767 = vpop.f32.mrb[0].mxu0
  %v2768 = vpop.f32.mrb[0].mxu0
  %v2769 = vpop.f32.mrb[0].mxu0
  %2770 = vdwg.mxu0
  %v2771 = vadd.f32 %v2527, %v2725
  %v2772 = vxor.u32 %v2771, 2147483648
  %v2773 = vmul.f32 %v2772, 1.442695
  %v2774 = vpow.pop %v2773
  %v2775 = vadd.f32 %v2774, 1.0
  %v2776 = vrcp.pop %v2775
  %v2777 = vmul.f32 1.0, %v2776
  %v2778 = vadd.f32 %v2528, %v2727
  %v2779 = vxor.u32 %v2778, 2147483648
  %v2780 = vmul.f32 %v2779, 1.442695
  %v2781 = vpow.pop %v2780
  %v2782 = vadd.f32 %v2781, 1.0
  %v2783 = vrcp.pop %v2782
  %v2784 = vmul.f32 1.0, %v2783
  %v2785 = vmul.f32 %v2777, %v2766
  %v2786 = vadd.f32 %v2529, %v2785
  %v2787 = vtanh.pop %v2786
  %v2788 = vsub.f32 1.0, %v2784
  %v2789 = vmul.f32 %v2788, %v2787
  %v2790 = vmul.f32 %v2784, %v2204
  %v2791 = vadd.f32 %v2789, %v2790
  %v2792 = vpack.c.bf16 %v2791, %v2791
  %v2793 = vld [vmem:[%s12] sm:$0xf]
  %v2794 = vld [vmem:[%s12 + $0x4] sm:$0xf]
  %v2795 = vld [vmem:[%s12 + $0x8] sm:$0xf]
  %v2796 = vld [vmem:[%s12 + $0xc] sm:$0xf]
  %v2797 = vld [vmem:[%s12 + $0x10] sm:$0xf]
  %v2798 = vld [vmem:[%s12 + $0x14] sm:$0xf]
  %v2799 = vld [vmem:[%s12 + $0x18] sm:$0xf]
  %v2800 = vld [vmem:[%s12 + $0x1c] sm:$0xf]
  %v2801 = vld [vmem:[%s12 + $0x20] sm:$0xf]
  %v2802 = vld [vmem:[%s12 + $0x24] sm:$0xf]
  %v2803 = vld [vmem:[%s12 + $0x28] sm:$0xf]
  %v2804 = vld [vmem:[%s12 + $0x2c] sm:$0xf]
  %v2805 = vld [vmem:[%s12 + $0x30] sm:$0xf]
  %v2806 = vld [vmem:[%s12 + $0x34] sm:$0xf]
  %v2807 = vld [vmem:[%s12 + $0x38] sm:$0xf]
  %v2808 = vld [vmem:[%s12 + $0x3c] sm:$0xf]
  %v2825 = vunpack.c.l.b16 %v2793
  %v2826 = vunpack.c.l.b16 %v2794
  %v2827 = vunpack.c.l.b16 %v2795
  %v2828 = vunpack.c.l.b16 %v2796
  %v2829 = vunpack.c.l.b16 %v2797
  %v2830 = vunpack.c.l.b16 %v2798
  %v2831 = vunpack.c.l.b16 %v2799
  %v2832 = vunpack.c.l.b16 %v2800
  %v2833 = vunpack.c.l.b16 %v2801
  %v2834 = vunpack.c.l.b16 %v2802
  %v2835 = vunpack.c.l.b16 %v2803
  %v2836 = vunpack.c.l.b16 %v2804
  %v2837 = vunpack.c.l.b16 %v2805
  %v2838 = vunpack.c.l.b16 %v2806
  %v2839 = vunpack.c.l.b16 %v2807
  %v2840 = vunpack.c.l.b16 %v2808
  %v2841 = vpack.c.b16 %v2826, %v2825
  %v2842 = vpack.c.b16 %v2828, %v2827
  %v2843 = vpack.c.b16 %v2830, %v2829
  %v2844 = vpack.c.b16 %v2832, %v2831
  %v2845 = vpack.c.b16 %v2834, %v2833
  %v2846 = vpack.c.b16 %v2836, %v2835
  %v2847 = vpack.c.b16 %v2838, %v2837
  %v2848 = vpack.c.b16 %v2840, %v2839
  %2857 = vmatprep.subr.bf16.mxu0 0
  %2858 = vmatpush1.bf16.msra.mxu0 %v2841
  %2859 = vmatprep.subr.bf16.mxu0 0
  %2860 = vmatpush1.bf16.msra.mxu0 %v2842
  %2861 = vmatprep.subr.bf16.mxu0 0
  %2862 = vmatpush1.bf16.msra.mxu0 %v2843
  %2863 = vmatprep.subr.bf16.mxu0 0
  %2864 = vmatpush1.bf16.msra.mxu0 %v2844
  %2865 = vmatprep.subr.bf16.mxu0 0
  %2866 = vmatpush1.bf16.msra.mxu0 %v2845
  %2867 = vmatprep.subr.bf16.mxu0 0
  %2868 = vmatpush1.bf16.msra.mxu0 %v2846
  %2869 = vmatprep.subr.bf16.mxu0 0
  %2870 = vmatpush1.bf16.msra.mxu0 %v2847
  %2871 = vmatprep.subr.bf16.mxu0 0
  %2872 = vmatpush1.bf16.msra.mxu0 %v2848
  %2873 = vmatprep.subr.bf16.mxu0 0
  %2874 = vmatpush1.bf16.msra.mxu0 0
  %2875 = vmatprep.subr.bf16.mxu0 0
  %2876 = vmatpush1.bf16.msra.mxu0 0
  %2877 = vmatprep.subr.bf16.mxu0 0
  %2878 = vmatpush1.bf16.msra.mxu0 0
  %2879 = vmatprep.subr.bf16.mxu0 0
  %2880 = vmatpush1.bf16.msra.mxu0 0
  %2881 = vmatprep.subr.bf16.mxu0 0
  %2882 = vmatpush1.bf16.msra.mxu0 0
  %2883 = vmatprep.subr.bf16.mxu0 0
  %2884 = vmatpush1.bf16.msra.mxu0 0
  %2885 = vmatprep.subr.bf16.mxu0 0
  %2886 = vmatpush1.bf16.msra.mxu0 0
  %2887 = vmatprep.subr.bf16.mxu0 0
  %2888 = vmatpush1.bf16.msra.mxu0 0
  %2889 = vmatprep.mubr.bf16.mxu0 0
  %2890 = vmatmul.mubr.bf16.gmra.mrb[0].mxu0 %v2792
  %v2891 = vpop.f32.mrb[0].mxu0
  %v2892 = vadd.f32 %v644, %v2891
  %v2893 = vpop.f32.mrb[0].mxu0
  %v2894 = vpop.f32.mrb[0].mxu0
  %v2895 = vpop.f32.mrb[0].mxu0
  %2896 = vdwg.mxu0
  %v2897 = vtanh.pop %v2892
  %v2898 = vpack.c.bf16 %v2897, %v2897
  %v2899 = vld [vmem:[%s14] sm:$0xf]
  %v2900 = vld [vmem:[%s14 + $0x4] sm:$0xf]
  %v2901 = vld [vmem:[%s14 + $0x8] sm:$0xf]
  %v2902 = vld [vmem:[%s14 + $0xc] sm:$0xf]
  %v2903 = vld [vmem:[%s14 + $0x10] sm:$0xf]
  %v2904 = vld [vmem:[%s14 + $0x14] sm:$0xf]
  %v2905 = vld [vmem:[%s14 + $0x18] sm:$0xf]
  %v2906 = vld [vmem:[%s14 + $0x1c] sm:$0xf]
  %v2907 = vld [vmem:[%s14 + $0x20] sm:$0xf]
  %v2908 = vld [vmem:[%s14 + $0x24] sm:$0xf]
  %v2909 = vld [vmem:[%s14 + $0x28] sm:$0xf]
  %v2910 = vld [vmem:[%s14 + $0x2c] sm:$0xf]
  %v2911 = vld [vmem:[%s14 + $0x30] sm:$0xf]
  %v2912 = vld [vmem:[%s14 + $0x34] sm:$0xf]
  %v2913 = vld [vmem:[%s14 + $0x38] sm:$0xf]
  %v2914 = vld [vmem:[%s14 + $0x3c] sm:$0xf]
  %v2931 = vunpack.c.l.b16 %v2899
  %v2932 = vunpack.c.l.b16 %v2900
  %v2933 = vunpack.c.l.b16 %v2901
  %v2934 = vunpack.c.l.b16 %v2902
  %v2935 = vunpack.c.l.b16 %v2903
  %v2936 = vunpack.c.l.b16 %v2904
  %v2937 = vunpack.c.l.b16 %v2905
  %v2938 = vunpack.c.l.b16 %v2906
  %v2939 = vunpack.c.l.b16 %v2907
  %v2940 = vunpack.c.l.b16 %v2908
  %v2941 = vunpack.c.l.b16 %v2909
  %v2942 = vunpack.c.l.b16 %v2910
  %v2943 = vunpack.c.l.b16 %v2911
  %v2944 = vunpack.c.l.b16 %v2912
  %v2945 = vunpack.c.l.b16 %v2913
  %v2946 = vunpack.c.l.b16 %v2914
  %v2947 = vpack.c.b16 %v2932, %v2931
  %v2948 = vpack.c.b16 %v2934, %v2933
  %v2949 = vpack.c.b16 %v2936, %v2935
  %v2950 = vpack.c.b16 %v2938, %v2937
  %v2951 = vpack.c.b16 %v2940, %v2939
  %v2952 = vpack.c.b16 %v2942, %v2941
  %v2953 = vpack.c.b16 %v2944, %v2943
  %v2954 = vpack.c.b16 %v2946, %v2945
  %2963 = vmatprep.subr.bf16.mxu0 0
  %2964 = vmatpush1.bf16.msra.mxu0 %v2947
  %2965 = vmatprep.subr.bf16.mxu0 0
  %2966 = vmatpush1.bf16.msra.mxu0 %v2948
  %2967 = vmatprep.subr.bf16.mxu0 0
  %2968 = vmatpush1.bf16.msra.mxu0 %v2949
  %2969 = vmatprep.subr.bf16.mxu0 0
  %2970 = vmatpush1.bf16.msra.mxu0 %v2950
  %2971 = vmatprep.subr.bf16.mxu0 0
  %2972 = vmatpush1.bf16.msra.mxu0 %v2951
  %2973 = vmatprep.subr.bf16.mxu0 0
  %2974 = vmatpush1.bf16.msra.mxu0 %v2952
  %2975 = vmatprep.subr.bf16.mxu0 0
  %2976 = vmatpush1.bf16.msra.mxu0 %v2953
  %2977 = vmatprep.subr.bf16.mxu0 0
  %2978 = vmatpush1.bf16.msra.mxu0 %v2954
  %2979 = vmatprep.subr.bf16.mxu0 0
  %2980 = vmatpush1.bf16.msra.mxu0 0
  %2981 = vmatprep.subr.bf16.mxu0 0
  %2982 = vmatpush1.bf16.msra.mxu0 0
  %2983 = vmatprep.subr.bf16.mxu0 0
  %2984 = vmatpush1.bf16.msra.mxu0 0
  %2985 = vmatprep.subr.bf16.mxu0 0
  %2986 = vmatpush1.bf16.msra.mxu0 0
  %2987 = vmatprep.subr.bf16.mxu0 0
  %2988 = vmatpush1.bf16.msra.mxu0 0
  %2989 = vmatprep.subr.bf16.mxu0 0
  %2990 = vmatpush1.bf16.msra.mxu0 0
  %2991 = vmatprep.subr.bf16.mxu0 0
  %2992 = vmatpush1.bf16.msra.mxu0 0
  %2993 = vmatprep.subr.bf16.mxu0 0
  %2994 = vmatpush1.bf16.msra.mxu0 0
  %2995 = vmatprep.mubr.bf16.mxu0 0
  %2996 = vmatmul.mubr.bf16.gmra.mrb[0].mxu0 %v2898
  %v2997 = vpop.f32.mrb[0].mxu0
  %v2998 = vadd.f32 %v651, %v2997
  %v2999 = vpop.f32.mrb[0].mxu0
  %v3000 = vpop.f32.mrb[0].mxu0
  %v3001 = vpop.f32.mrb[0].mxu0
  %3002 = vdwg.mxu0
  %3003 = vst.msk [vmem:[%s20 + $0x18] sm:$0xff] %vm283, %v2998
  %v3004 = vld [vmem:[%s1 + $0x20] sm:$0xff]
  %v3005 = vsub.f32 1.0, %v3004
  %v3006 = vmul.f32 %v3005, %v2998
  %v3007 = vld [vmem:[#allocation4 + $0x60] sm:$0xff]
  %v3008 = vld [vmem:[#allocation4 + $0x68] sm:$0xff]
  %v3009 = vld [vmem:[#allocation4 + $0x70] sm:$0xff]
  %v3010 = vpack.c.bf16 %v3006, %v3006
  %v3011 = vld [vmem:[%s7] sm:$0xff]
  %v3012 = vld [vmem:[%s7 + $0x8] sm:$0xf]
  %v3015 = vunpack.c.l.b16 %v3011
  %v3016 = vunpack.c.h.b16 %v3011
  %v3017 = vunpack.c.l.b16 %v3012
  %v3018 = vpack.c.b16 %v3015, %v3015
  %v3019 = vpack.c.b16 %v3016, %v3016
  %v3020 = vpack.c.b16 %v3017, %v3017
  %v3022 = vsel %vm283, %v3010, 0
  %v3025 = vsel %vm293, %v3018, 0
  %v3028 = vsel %vm293, %v3019, 0
  %v3031 = vsel %vm293, %v3020, 0
  %3033 = vmatprep.subr.bf16.mxu0 %v3028
  %3034 = vmatpush1.bf16.msra.mxu0 %v3025
  %3035 = vmatprep.subr.bf16.mxu0 0
  %3036 = vmatpush1.bf16.msra.mxu0 0
  %3037 = vmatprep.subr.bf16.mxu0 0
  %3038 = vmatpush1.bf16.msra.mxu0 0
  %3039 = vmatprep.subr.bf16.mxu0 0
  %3040 = vmatpush1.bf16.msra.mxu0 0
  %3041 = vmatprep.subr.bf16.mxu0 0
  %3042 = vmatpush1.bf16.msra.mxu0 0
  %3043 = vmatprep.subr.bf16.mxu0 0
  %3044 = vmatpush1.bf16.msra.mxu0 0
  %3045 = vmatprep.subr.bf16.mxu0 0
  %3046 = vmatpush1.bf16.msra.mxu0 0
  %3047 = vmatprep.subr.bf16.mxu0 0
  %3048 = vmatpush1.bf16.msra.mxu0 0
  %3049 = vmatprep.subr.bf16.mxu0 0
  %3050 = vmatpush1.bf16.msra.mxu0 0
  %3051 = vmatprep.subr.bf16.mxu0 0
  %3052 = vmatpush1.bf16.msra.mxu0 0
  %3053 = vmatprep.subr.bf16.mxu0 0
  %3054 = vmatpush1.bf16.msra.mxu0 0
  %3055 = vmatprep.subr.bf16.mxu0 0
  %3056 = vmatpush1.bf16.msra.mxu0 0
  %3057 = vmatprep.subr.bf16.mxu0 0
  %3058 = vmatpush1.bf16.msra.mxu0 0
  %3059 = vmatprep.subr.bf16.mxu0 0
  %3060 = vmatpush1.bf16.msra.mxu0 0
  %3061 = vmatprep.subr.bf16.mxu0 0
  %3062 = vmatpush1.bf16.msra.mxu0 0
  %3063 = vmatprep.subr.bf16.mxu0 0
  %3064 = vmatpush1.bf16.msra.mxu0 0
  %3065 = vmatprep.mubr.bf16.mxu0 0
  %3066 = vmatmul.mubr.bf16.gmra.mrb[0].mxu0 %v3022
  %v3067 = vpop.f32.mrb[0].mxu0
  %v3068 = vadd.f32 0.0, %v3067
  %v3069 = vpop.f32.mrb[0].mxu0
  %v3070 = vadd.f32 0.0, %v3069
  %v3071 = vpop.f32.mrb[0].mxu0
  %v3072 = vpop.f32.mrb[0].mxu0
  %3073 = vdwg.mxu0
  %3074 = vmatprep.subr.bf16.mxu0 0
  %3075 = vmatpush1.bf16.msra.mxu0 %v3031
  %3076 = vmatprep.subr.bf16.mxu0 0
  %3077 = vmatpush1.bf16.msra.mxu0 0
  %3078 = vmatprep.subr.bf16.mxu0 0
  %3079 = vmatpush1.bf16.msra.mxu0 0
  %3080 = vmatprep.subr.bf16.mxu0 0
  %3081 = vmatpush1.bf16.msra.mxu0 0
  %3082 = vmatprep.subr.bf16.mxu0 0
  %3083 = vmatpush1.bf16.msra.mxu0 0
  %3084 = vmatprep.subr.bf16.mxu0 0
  %3085 = vmatpush1.bf16.msra.mxu0 0
  %3086 = vmatprep.subr.bf16.mxu0 0
  %3087 = vmatpush1.bf16.msra.mxu0 0
  %3088 = vmatprep.subr.bf16.mxu0 0
  %3089 = vmatpush1.bf16.msra.mxu0 0
  %3090 = vmatprep.subr.bf16.mxu0 0
  %3091 = vmatpush1.bf16.msra.mxu0 0
  %3092 = vmatprep.subr.bf16.mxu0 0
  %3093 = vmatpush1.bf16.msra.mxu0 0
  %3094 = vmatprep.subr.bf16.mxu0 0
  %3095 = vmatpush1.bf16.msra.mxu0 0
  %3096 = vmatprep.subr.bf16.mxu0 0
  %3097 = vmatpush1.bf16.msra.mxu0 0
  %3098 = vmatprep.subr.bf16.mxu0 0
  %3099 = vmatpush1.bf16.msra.mxu0 0
  %3100 = vmatprep.subr.bf16.mxu0 0
  %3101 = vmatpush1.bf16.msra.mxu0 0
  %3102 = vmatprep.subr.bf16.mxu0 0
  %3103 = vmatpush1.bf16.msra.mxu0 0
  %3104 = vmatprep.subr.bf16.mxu0 0
  %3105 = vmatpush1.bf16.msra.mxu0 0
  %3106 = vmatprep.mubr.bf16.mxu0 0
  %3107 = vmatmul.mubr.bf16.gmra.mrb[0].mxu0 %v3022
  %v3108 = vpop.f32.mrb[0].mxu0
  %v3109 = vadd.f32 0.0, %v3108
  %v3110 = vpop.f32.mrb[0].mxu0
  %v3111 = vpop.f32.mrb[0].mxu0
  %v3112 = vpop.f32.mrb[0].mxu0
  %3113 = vdwg.mxu0
  %v3114 = vadd.f32 %v3007, %v3068
  %v3115 = vadd.f32 %v3008, %v3070
  %v3116 = vadd.f32 %v3009, %v3109
  %v3117 = vld [vmem:[%s10] sm:$0xff]
  %v3118 = vld [vmem:[%s10 + $0x8] sm:$0xf]
  %v3119 = vld [vmem:[%s10 + $0xc] sm:$0xff]
  %v3120 = vld [vmem:[%s10 + $0x14] sm:$0xf]
  %v3121 = vld [vmem:[%s10 + $0x18] sm:$0xff]
  %v3122 = vld [vmem:[%s10 + $0x20] sm:$0xf]
  %v3123 = vld [vmem:[%s10 + $0x24] sm:$0xff]
  %v3124 = vld [vmem:[%s10 + $0x2c] sm:$0xf]
  %v3125 = vld [vmem:[%s10 + $0x30] sm:$0xff]
  %v3126 = vld [vmem:[%s10 + $0x38] sm:$0xf]
  %v3127 = vld [vmem:[%s10 + $0x3c] sm:$0xff]
  %v3128 = vld [vmem:[%s10 + $0x44] sm:$0xf]
  %v3129 = vld [vmem:[%s10 + $0x48] sm:$0xff]
  %v3130 = vld [vmem:[%s10 + $0x50] sm:$0xf]
  %v3131 = vld [vmem:[%s10 + $0x54] sm:$0xff]
  %v3132 = vld [vmem:[%s10 + $0x5c] sm:$0xf]
  %v3133 = vld [vmem:[%s10 + $0x60] sm:$0xff]
  %v3134 = vld [vmem:[%s10 + $0x68] sm:$0xf]
  %v3135 = vld [vmem:[%s10 + $0x6c] sm:$0xff]
  %v3136 = vld [vmem:[%s10 + $0x74] sm:$0xf]
  %v3137 = vld [vmem:[%s10 + $0x78] sm:$0xff]
  %v3138 = vld [vmem:[%s10 + $0x80] sm:$0xf]
  %v3139 = vld [vmem:[%s10 + $0x84] sm:$0xff]
  %v3140 = vld [vmem:[%s10 + $0x8c] sm:$0xf]
  %v3141 = vld [vmem:[%s10 + $0x90] sm:$0xff]
  %v3142 = vld [vmem:[%s10 + $0x98] sm:$0xf]
  %v3143 = vld [vmem:[%s10 + $0x9c] sm:$0xff]
  %v3144 = vld [vmem:[%s10 + $0xa4] sm:$0xf]
  %v3145 = vld [vmem:[%s10 + $0xa8] sm:$0xff]
  %v3146 = vld [vmem:[%s10 + $0xb0] sm:$0xf]
  %v3147 = vld [vmem:[%s10 + $0xb4] sm:$0xff]
  %v3148 = vld [vmem:[%s10 + $0xbc] sm:$0xf]
  %v3181 = vunpack.c.l.b16 %v3117
  %v3182 = vunpack.c.h.b16 %v3117
  %v3183 = vunpack.c.l.b16 %v3118
  %v3184 = vunpack.c.l.b16 %v3119
  %v3185 = vunpack.c.h.b16 %v3119
  %v3186 = vunpack.c.l.b16 %v3120
  %v3187 = vunpack.c.l.b16 %v3121
  %v3188 = vunpack.c.h.b16 %v3121
  %v3189 = vunpack.c.l.b16 %v3122
  %v3190 = vunpack.c.l.b16 %v3123
  %v3191 = vunpack.c.h.b16 %v3123
  %v3192 = vunpack.c.l.b16 %v3124
  %v3193 = vunpack.c.l.b16 %v3125
  %v3194 = vunpack.c.h.b16 %v3125
  %v3195 = vunpack.c.l.b16 %v3126
  %v3196 = vunpack.c.l.b16 %v3127
  %v3197 = vunpack.c.h.b16 %v3127
  %v3198 = vunpack.c.l.b16 %v3128
  %v3199 = vunpack.c.l.b16 %v3129
  %v3200 = vunpack.c.h.b16 %v3129
  %v3201 = vunpack.c.l.b16 %v3130
  %v3202 = vunpack.c.l.b16 %v3131
  %v3203 = vunpack.c.h.b16 %v3131
  %v3204 = vunpack.c.l.b16 %v3132
  %v3205 = vunpack.c.l.b16 %v3133
  %v3206 = vunpack.c.h.b16 %v3133
  %v3207 = vunpack.c.l.b16 %v3134
  %v3208 = vunpack.c.l.b16 %v3135
  %v3209 = vunpack.c.h.b16 %v3135
  %v3210 = vunpack.c.l.b16 %v3136
  %v3211 = vunpack.c.l.b16 %v3137
  %v3212 = vunpack.c.h.b16 %v3137
  %v3213 = vunpack.c.l.b16 %v3138
  %v3214 = vunpack.c.l.b16 %v3139
  %v3215 = vunpack.c.h.b16 %v3139
  %v3216 = vunpack.c.l.b16 %v3140
  %v3217 = vunpack.c.l.b16 %v3141
  %v3218 = vunpack.c.h.b16 %v3141
  %v3219 = vunpack.c.l.b16 %v3142
  %v3220 = vunpack.c.l.b16 %v3143
  %v3221 = vunpack.c.h.b16 %v3143
  %v3222 = vunpack.c.l.b16 %v3144
  %v3223 = vunpack.c.l.b16 %v3145
  %v3224 = vunpack.c.h.b16 %v3145
  %v3225 = vunpack.c.l.b16 %v3146
  %v3226 = vunpack.c.l.b16 %v3147
  %v3227 = vunpack.c.h.b16 %v3147
  %v3228 = vunpack.c.l.b16 %v3148
  %v3229 = vpack.c.b16 %v3184, %v3181
  %v3230 = vpack.c.b16 %v3185, %v3182
  %v3231 = vpack.c.b16 %v3186, %v3183
  %v3232 = vpack.c.b16 %v3190, %v3187
  %v3233 = vpack.c.b16 %v3191, %v3188
  %v3234 = vpack.c.b16 %v3192, %v3189
  %v3235 = vpack.c.b16 %v3196, %v3193
  %v3236 = vpack.c.b16 %v3197, %v3194
  %v3237 = vpack.c.b16 %v3198, %v3195
  %v3238 = vpack.c.b16 %v3202, %v3199
  %v3239 = vpack.c.b16 %v3203, %v3200
  %v3240 = vpack.c.b16 %v3204, %v3201
  %v3241 = vpack.c.b16 %v3208, %v3205
  %v3242 = vpack.c.b16 %v3209, %v3206
  %v3243 = vpack.c.b16 %v3210, %v3207
  %v3244 = vpack.c.b16 %v3214, %v3211
  %v3245 = vpack.c.b16 %v3215, %v3212
  %v3246 = vpack.c.b16 %v3216, %v3213
  %v3247 = vpack.c.b16 %v3220, %v3217
  %v3248 = vpack.c.b16 %v3221, %v3218
  %v3249 = vpack.c.b16 %v3222, %v3219
  %v3250 = vpack.c.b16 %v3226, %v3223
  %v3251 = vpack.c.b16 %v3227, %v3224
  %v3252 = vpack.c.b16 %v3228, %v3225
  %3277 = vmatprep.subr.bf16.mxu0 %v3230
  %3278 = vmatpush1.bf16.msra.mxu0 %v3229
  %3279 = vmatprep.subr.bf16.mxu0 %v3233
  %3280 = vmatpush1.bf16.msra.mxu0 %v3232
  %3281 = vmatprep.subr.bf16.mxu0 %v3236
  %3282 = vmatpush1.bf16.msra.mxu0 %v3235
  %3283 = vmatprep.subr.bf16.mxu0 %v3239
  %3284 = vmatpush1.bf16.msra.mxu0 %v3238
  %3285 = vmatprep.subr.bf16.mxu0 %v3242
  %3286 = vmatpush1.bf16.msra.mxu0 %v3241
  %3287 = vmatprep.subr.bf16.mxu0 %v3245
  %3288 = vmatpush1.bf16.msra.mxu0 %v3244
  %3289 = vmatprep.subr.bf16.mxu0 %v3248
  %3290 = vmatpush1.bf16.msra.mxu0 %v3247
  %3291 = vmatprep.subr.bf16.mxu0 %v3251
  %3292 = vmatpush1.bf16.msra.mxu0 %v3250
  %3293 = vmatprep.subr.bf16.mxu0 0
  %3294 = vmatpush1.bf16.msra.mxu0 0
  %3295 = vmatprep.subr.bf16.mxu0 0
  %3296 = vmatpush1.bf16.msra.mxu0 0
  %3297 = vmatprep.subr.bf16.mxu0 0
  %3298 = vmatpush1.bf16.msra.mxu0 0
  %3299 = vmatprep.subr.bf16.mxu0 0
  %3300 = vmatpush1.bf16.msra.mxu0 0
  %3301 = vmatprep.subr.bf16.mxu0 0
  %3302 = vmatpush1.bf16.msra.mxu0 0
  %3303 = vmatprep.subr.bf16.mxu0 0
  %3304 = vmatpush1.bf16.msra.mxu0 0
  %3305 = vmatprep.subr.bf16.mxu0 0
  %3306 = vmatpush1.bf16.msra.mxu0 0
  %3307 = vmatprep.subr.bf16.mxu0 0
  %3308 = vmatpush1.bf16.msra.mxu0 0
  %3309 = vmatprep.mubr.bf16.mxu0 0
  %3310 = vmatmul.mubr.bf16.gmra.mrb[0].mxu0 %v2792
  %v3311 = vpop.f32.mrb[0].mxu0
  %v3312 = vadd.f32 %v627, %v3311
  %v3313 = vpop.f32.mrb[0].mxu0
  %v3314 = vadd.f32 %v631, %v3313
  %v3315 = vpop.f32.mrb[0].mxu0
  %v3316 = vpop.f32.mrb[0].mxu0
  %3317 = vdwg.mxu0
  %3318 = vmatprep.subr.bf16.mxu0 0
  %3319 = vmatpush1.bf16.msra.mxu0 %v3231
  %3320 = vmatprep.subr.bf16.mxu0 0
  %3321 = vmatpush1.bf16.msra.mxu0 %v3234
  %3322 = vmatprep.subr.bf16.mxu0 0
  %3323 = vmatpush1.bf16.msra.mxu0 %v3237
  %3324 = vmatprep.subr.bf16.mxu0 0
  %3325 = vmatpush1.bf16.msra.mxu0 %v3240
  %3326 = vmatprep.subr.bf16.mxu0 0
  %3327 = vmatpush1.bf16.msra.mxu0 %v3243
  %3328 = vmatprep.subr.bf16.mxu0 0
  %3329 = vmatpush1.bf16.msra.mxu0 %v3246
  %3330 = vmatprep.subr.bf16.mxu0 0
  %3331 = vmatpush1.bf16.msra.mxu0 %v3249
  %3332 = vmatprep.subr.bf16.mxu0 0
  %3333 = vmatpush1.bf16.msra.mxu0 %v3252
  %3334 = vmatprep.subr.bf16.mxu0 0
  %3335 = vmatpush1.bf16.msra.mxu0 0
  %3336 = vmatprep.subr.bf16.mxu0 0
  %3337 = vmatpush1.bf16.msra.mxu0 0
  %3338 = vmatprep.subr.bf16.mxu0 0
  %3339 = vmatpush1.bf16.msra.mxu0 0
  %3340 = vmatprep.subr.bf16.mxu0 0
  %3341 = vmatpush1.bf16.msra.mxu0 0
  %3342 = vmatprep.subr.bf16.mxu0 0
  %3343 = vmatpush1.bf16.msra.mxu0 0
  %3344 = vmatprep.subr.bf16.mxu0 0
  %3345 = vmatpush1.bf16.msra.mxu0 0
  %3346 = vmatprep.subr.bf16.mxu0 0
  %3347 = vmatpush1.bf16.msra.mxu0 0
  %3348 = vmatprep.subr.bf16.mxu0 0
  %3349 = vmatpush1.bf16.msra.mxu0 0
  %3350 = vmatprep.mubr.bf16.mxu0 0
  %3351 = vmatmul.mubr.bf16.gmra.mrb[0].mxu0 %v2792
  %v3352 = vpop.f32.mrb[0].mxu0
  %v3353 = vadd.f32 %v635, %v3352
  %v3354 = vpop.f32.mrb[0].mxu0
  %v3355 = vpop.f32.mrb[0].mxu0
  %v3356 = vpop.f32.mrb[0].mxu0
  %3357 = vdwg.mxu0
  %v3358 = vadd.f32 %v3114, %v3312
  %v3359 = vxor.u32 %v3358, 2147483648
  %v3360 = vmul.f32 %v3359, 1.442695
  %v3361 = vpow.pop %v3360
  %v3362 = vadd.f32 %v3361, 1.0
  %v3363 = vrcp.pop %v3362
  %v3364 = vmul.f32 1.0, %v3363
  %v3365 = vadd.f32 %v3115, %v3314
  %v3366 = vxor.u32 %v3365, 2147483648
  %v3367 = vmul.f32 %v3366, 1.442695
  %v3368 = vpow.pop %v3367
  %v3369 = vadd.f32 %v3368, 1.0
  %v3370 = vrcp.pop %v3369
  %v3371 = vmul.f32 1.0, %v3370
  %v3372 = vmul.f32 %v3364, %v3353
  %v3373 = vadd.f32 %v3116, %v3372
  %v3374 = vtanh.pop %v3373
  %v3375 = vsub.f32 1.0, %v3371
  %v3376 = vmul.f32 %v3375, %v3374
  %v3377 = vmul.f32 %v3371, %v2791
  %v3378 = vadd.f32 %v3376, %v3377
  %v3379 = vpack.c.bf16 %v3378, %v3378
  %v3380 = vld [vmem:[%s12] sm:$0xf]
  %v3381 = vld [vmem:[%s12 + $0x4] sm:$0xf]
  %v3382 = vld [vmem:[%s12 + $0x8] sm:$0xf]
  %v3383 = vld [vmem:[%s12 + $0xc] sm:$0xf]
  %v3384 = vld [vmem:[%s12 + $0x10] sm:$0xf]
  %v3385 = vld [vmem:[%s12 + $0x14] sm:$0xf]
  %v3386 = vld [vmem:[%s12 + $0x18] sm:$0xf]
  %v3387 = vld [vmem:[%s12 + $0x1c] sm:$0xf]
  %v3388 = vld [vmem:[%s12 + $0x20] sm:$0xf]
  %v3389 = vld [vmem:[%s12 + $0x24] sm:$0xf]
  %v3390 = vld [vmem:[%s12 + $0x28] sm:$0xf]
  %v3391 = vld [vmem:[%s12 + $0x2c] sm:$0xf]
  %v3392 = vld [vmem:[%s12 + $0x30] sm:$0xf]
  %v3393 = vld [vmem:[%s12 + $0x34] sm:$0xf]
  %v3394 = vld [vmem:[%s12 + $0x38] sm:$0xf]
  %v3395 = vld [vmem:[%s12 + $0x3c] sm:$0xf]
  %v3412 = vunpack.c.l.b16 %v3380
  %v3413 = vunpack.c.l.b16 %v3381
  %v3414 = vunpack.c.l.b16 %v3382
  %v3415 = vunpack.c.l.b16 %v3383
  %v3416 = vunpack.c.l.b16 %v3384
  %v3417 = vunpack.c.l.b16 %v3385
  %v3418 = vunpack.c.l.b16 %v3386
  %v3419 = vunpack.c.l.b16 %v3387
  %v3420 = vunpack.c.l.b16 %v3388
  %v3421 = vunpack.c.l.b16 %v3389
  %v3422 = vunpack.c.l.b16 %v3390
  %v3423 = vunpack.c.l.b16 %v3391
  %v3424 = vunpack.c.l.b16 %v3392
  %v3425 = vunpack.c.l.b16 %v3393
  %v3426 = vunpack.c.l.b16 %v3394
  %v3427 = vunpack.c.l.b16 %v3395
  %v3428 = vpack.c.b16 %v3413, %v3412
  %v3429 = vpack.c.b16 %v3415, %v3414
  %v3430 = vpack.c.b16 %v3417, %v3416
  %v3431 = vpack.c.b16 %v3419, %v3418
  %v3432 = vpack.c.b16 %v3421, %v3420
  %v3433 = vpack.c.b16 %v3423, %v3422
  %v3434 = vpack.c.b16 %v3425, %v3424
  %v3435 = vpack.c.b16 %v3427, %v3426
  %3444 = vmatprep.subr.bf16.mxu0 0
  %3445 = vmatpush1.bf16.msra.mxu0 %v3428
  %3446 = vmatprep.subr.bf16.mxu0 0
  %3447 = vmatpush1.bf16.msra.mxu0 %v3429
  %3448 = vmatprep.subr.bf16.mxu0 0
  %3449 = vmatpush1.bf16.msra.mxu0 %v3430
  %3450 = vmatprep.subr.bf16.mxu0 0
  %3451 = vmatpush1.bf16.msra.mxu0 %v3431
  %3452 = vmatprep.subr.bf16.mxu0 0
  %3453 = vmatpush1.bf16.msra.mxu0 %v3432
  %3454 = vmatprep.subr.bf16.mxu0 0
  %3455 = vmatpush1.bf16.msra.mxu0 %v3433
  %3456 = vmatprep.subr.bf16.mxu0 0
  %3457 = vmatpush1.bf16.msra.mxu0 %v3434
  %3458 = vmatprep.subr.bf16.mxu0 0
  %3459 = vmatpush1.bf16.msra.mxu0 %v3435
  %3460 = vmatprep.subr.bf16.mxu0 0
  %3461 = vmatpush1.bf16.msra.mxu0 0
  %3462 = vmatprep.subr.bf16.mxu0 0
  %3463 = vmatpush1.bf16.msra.mxu0 0
  %3464 = vmatprep.subr.bf16.mxu0 0
  %3465 = vmatpush1.bf16.msra.mxu0 0
  %3466 = vmatprep.subr.bf16.mxu0 0
  %3467 = vmatpush1.bf16.msra.mxu0 0
  %3468 = vmatprep.subr.bf16.mxu0 0
  %3469 = vmatpush1.bf16.msra.mxu0 0
  %3470 = vmatprep.subr.bf16.mxu0 0
  %3471 = vmatpush1.bf16.msra.mxu0 0
  %3472 = vmatprep.subr.bf16.mxu0 0
  %3473 = vmatpush1.bf16.msra.mxu0 0
  %3474 = vmatprep.subr.bf16.mxu0 0
  %3475 = vmatpush1.bf16.msra.mxu0 0
  %3476 = vmatprep.mubr.bf16.mxu0 0
  %3477 = vmatmul.mubr.bf16.gmra.mrb[0].mxu0 %v3379
  %v3478 = vpop.f32.mrb[0].mxu0
  %v3479 = vadd.f32 %v644, %v3478
  %v3480 = vpop.f32.mrb[0].mxu0
  %v3481 = vpop.f32.mrb[0].mxu0
  %v3482 = vpop.f32.mrb[0].mxu0
  %3483 = vdwg.mxu0
  %v3484 = vtanh.pop %v3479
  %v3485 = vpack.c.bf16 %v3484, %v3484
  %v3486 = vld [vmem:[%s14] sm:$0xf]
  %v3487 = vld [vmem:[%s14 + $0x4] sm:$0xf]
  %v3488 = vld [vmem:[%s14 + $0x8] sm:$0xf]
  %v3489 = vld [vmem:[%s14 + $0xc] sm:$0xf]
  %v3490 = vld [vmem:[%s14 + $0x10] sm:$0xf]
  %v3491 = vld [vmem:[%s14 + $0x14] sm:$0xf]
  %v3492 = vld [vmem:[%s14 + $0x18] sm:$0xf]
  %v3493 = vld [vmem:[%s14 + $0x1c] sm:$0xf]
  %v3494 = vld [vmem:[%s14 + $0x20] sm:$0xf]
  %v3495 = vld [vmem:[%s14 + $0x24] sm:$0xf]
  %v3496 = vld [vmem:[%s14 + $0x28] sm:$0xf]
  %v3497 = vld [vmem:[%s14 + $0x2c] sm:$0xf]
  %v3498 = vld [vmem:[%s14 + $0x30] sm:$0xf]
  %v3499 = vld [vmem:[%s14 + $0x34] sm:$0xf]
  %v3500 = vld [vmem:[%s14 + $0x38] sm:$0xf]
  %v3501 = vld [vmem:[%s14 + $0x3c] sm:$0xf]
  %v3518 = vunpack.c.l.b16 %v3486
  %v3519 = vunpack.c.l.b16 %v3487
  %v3520 = vunpack.c.l.b16 %v3488
  %v3521 = vunpack.c.l.b16 %v3489
  %v3522 = vunpack.c.l.b16 %v3490
  %v3523 = vunpack.c.l.b16 %v3491
  %v3524 = vunpack.c.l.b16 %v3492
  %v3525 = vunpack.c.l.b16 %v3493
  %v3526 = vunpack.c.l.b16 %v3494
  %v3527 = vunpack.c.l.b16 %v3495
  %v3528 = vunpack.c.l.b16 %v3496
  %v3529 = vunpack.c.l.b16 %v3497
  %v3530 = vunpack.c.l.b16 %v3498
  %v3531 = vunpack.c.l.b16 %v3499
  %v3532 = vunpack.c.l.b16 %v3500
  %v3533 = vunpack.c.l.b16 %v3501
  %v3534 = vpack.c.b16 %v3519, %v3518
  %v3535 = vpack.c.b16 %v3521, %v3520
  %v3536 = vpack.c.b16 %v3523, %v3522
  %v3537 = vpack.c.b16 %v3525, %v3524
  %v3538 = vpack.c.b16 %v3527, %v3526
  %v3539 = vpack.c.b16 %v3529, %v3528
  %v3540 = vpack.c.b16 %v3531, %v3530
  %v3541 = vpack.c.b16 %v3533, %v3532
  %3550 = vmatprep.subr.bf16.mxu0 0
  %3551 = vmatpush1.bf16.msra.mxu0 %v3534
  %3552 = vmatprep.subr.bf16.mxu0 0
  %3553 = vmatpush1.bf16.msra.mxu0 %v3535
  %3554 = vmatprep.subr.bf16.mxu0 0
  %3555 = vmatpush1.bf16.msra.mxu0 %v3536
  %3556 = vmatprep.subr.bf16.mxu0 0
  %3557 = vmatpush1.bf16.msra.mxu0 %v3537
  %3558 = vmatprep.subr.bf16.mxu0 0
  %3559 = vmatpush1.bf16.msra.mxu0 %v3538
  %3560 = vmatprep.subr.bf16.mxu0 0
  %3561 = vmatpush1.bf16.msra.mxu0 %v3539
  %3562 = vmatprep.subr.bf16.mxu0 0
  %3563 = vmatpush1.bf16.msra.mxu0 %v3540
  %3564 = vmatprep.subr.bf16.mxu0 0
  %3565 = vmatpush1.bf16.msra.mxu0 %v3541
  %3566 = vmatprep.subr.bf16.mxu0 0
  %3567 = vmatpush1.bf16.msra.mxu0 0
  %3568 = vmatprep.subr.bf16.mxu0 0
  %3569 = vmatpush1.bf16.msra.mxu0 0
  %3570 = vmatprep.subr.bf16.mxu0 0
  %3571 = vmatpush1.bf16.msra.mxu0 0
  %3572 = vmatprep.subr.bf16.mxu0 0
  %3573 = vmatpush1.bf16.msra.mxu0 0
  %3574 = vmatprep.subr.bf16.mxu0 0
  %3575 = vmatpush1.bf16.msra.mxu0 0
  %3576 = vmatprep.subr.bf16.mxu0 0
  %3577 = vmatpush1.bf16.msra.mxu0 0
  %3578 = vmatprep.subr.bf16.mxu0 0
  %3579 = vmatpush1.bf16.msra.mxu0 0
  %3580 = vmatprep.subr.bf16.mxu0 0
  %3581 = vmatpush1.bf16.msra.mxu0 0
  %3582 = vmatprep.mubr.bf16.mxu0 0
  %3583 = vmatmul.mubr.bf16.gmra.mrb[0].mxu0 %v3485
  %v3584 = vpop.f32.mrb[0].mxu0
  %v3585 = vadd.f32 %v651, %v3584
  %v3586 = vpop.f32.mrb[0].mxu0
  %v3587 = vpop.f32.mrb[0].mxu0
  %v3588 = vpop.f32.mrb[0].mxu0
  %3589 = vdwg.mxu0
  %3590 = vst.msk [vmem:[%s20 + $0x20] sm:$0xff] %vm283, %v3585
  %v3591 = vld [vmem:[%s1 + $0x28] sm:$0xff]
  %v3592 = vsub.f32 1.0, %v3591
  %v3593 = vmul.f32 %v3592, %v3585
  %v3594 = vld [vmem:[#allocation4 + $0x78] sm:$0xff]
  %v3595 = vld [vmem:[#allocation4 + $0x80] sm:$0xff]
  %v3596 = vld [vmem:[#allocation4 + $0x88] sm:$0xff]
  %v3597 = vpack.c.bf16 %v3593, %v3593
  %v3598 = vld [vmem:[%s7] sm:$0xff]
  %v3599 = vld [vmem:[%s7 + $0x8] sm:$0xf]
  %v3602 = vunpack.c.l.b16 %v3598
  %v3603 = vunpack.c.h.b16 %v3598
  %v3604 = vunpack.c.l.b16 %v3599
  %v3605 = vpack.c.b16 %v3602, %v3602
  %v3606 = vpack.c.b16 %v3603, %v3603
  %v3607 = vpack.c.b16 %v3604, %v3604
  %v3609 = vsel %vm283, %v3597, 0
  %v3612 = vsel %vm293, %v3605, 0
  %v3615 = vsel %vm293, %v3606, 0
  %v3618 = vsel %vm293, %v3607, 0
  %3620 = vmatprep.subr.bf16.mxu0 %v3615
  %3621 = vmatpush1.bf16.msra.mxu0 %v3612
  %3622 = vmatprep.subr.bf16.mxu0 0
  %3623 = vmatpush1.bf16.msra.mxu0 0
  %3624 = vmatprep.subr.bf16.mxu0 0
  %3625 = vmatpush1.bf16.msra.mxu0 0
  %3626 = vmatprep.subr.bf16.mxu0 0
  %3627 = vmatpush1.bf16.msra.mxu0 0
  %3628 = vmatprep.subr.bf16.mxu0 0
  %3629 = vmatpush1.bf16.msra.mxu0 0
  %3630 = vmatprep.subr.bf16.mxu0 0
  %3631 = vmatpush1.bf16.msra.mxu0 0
  %3632 = vmatprep.subr.bf16.mxu0 0
  %3633 = vmatpush1.bf16.msra.mxu0 0
  %3634 = vmatprep.subr.bf16.mxu0 0
  %3635 = vmatpush1.bf16.msra.mxu0 0
  %3636 = vmatprep.subr.bf16.mxu0 0
  %3637 = vmatpush1.bf16.msra.mxu0 0
  %3638 = vmatprep.subr.bf16.mxu0 0
  %3639 = vmatpush1.bf16.msra.mxu0 0
  %3640 = vmatprep.subr.bf16.mxu0 0
  %3641 = vmatpush1.bf16.msra.mxu0 0
  %3642 = vmatprep.subr.bf16.mxu0 0
  %3643 = vmatpush1.bf16.msra.mxu0 0
  %3644 = vmatprep.subr.bf16.mxu0 0
  %3645 = vmatpush1.bf16.msra.mxu0 0
  %3646 = vmatprep.subr.bf16.mxu0 0
  %3647 = vmatpush1.bf16.msra.mxu0 0
  %3648 = vmatprep.subr.bf16.mxu0 0
  %3649 = vmatpush1.bf16.msra.mxu0 0
  %3650 = vmatprep.subr.bf16.mxu0 0
  %3651 = vmatpush1.bf16.msra.mxu0 0
  %3652 = vmatprep.mubr.bf16.mxu0 0
  %3653 = vmatmul.mubr.bf16.gmra.mrb[0].mxu0 %v3609
  %v3654 = vpop.f32.mrb[0].mxu0
  %v3655 = vadd.f32 0.0, %v3654
  %v3656 = vpop.f32.mrb[0].mxu0
  %v3657 = vadd.f32 0.0, %v3656
  %v3658 = vpop.f32.mrb[0].mxu0
  %v3659 = vpop.f32.mrb[0].mxu0
  %3660 = vdwg.mxu0
  %3661 = vmatprep.subr.bf16.mxu0 0
  %3662 = vmatpush1.bf16.msra.mxu0 %v3618
  %3663 = vmatprep.subr.bf16.mxu0 0
  %3664 = vmatpush1.bf16.msra.mxu0 0
  %3665 = vmatprep.subr.bf16.mxu0 0
  %3666 = vmatpush1.bf16.msra.mxu0 0
  %3667 = vmatprep.subr.bf16.mxu0 0
  %3668 = vmatpush1.bf16.msra.mxu0 0
  %3669 = vmatprep.subr.bf16.mxu0 0
  %3670 = vmatpush1.bf16.msra.mxu0 0
  %3671 = vmatprep.subr.bf16.mxu0 0
  %3672 = vmatpush1.bf16.msra.mxu0 0
  %3673 = vmatprep.subr.bf16.mxu0 0
  %3674 = vmatpush1.bf16.msra.mxu0 0
  %3675 = vmatprep.subr.bf16.mxu0 0
  %3676 = vmatpush1.bf16.msra.mxu0 0
  %3677 = vmatprep.subr.bf16.mxu0 0
  %3678 = vmatpush1.bf16.msra.mxu0 0
  %3679 = vmatprep.subr.bf16.mxu0 0
  %3680 = vmatpush1.bf16.msra.mxu0 0
  %3681 = vmatprep.subr.bf16.mxu0 0
  %3682 = vmatpush1.bf16.msra.mxu0 0
  %3683 = vmatprep.subr.bf16.mxu0 0
  %3684 = vmatpush1.bf16.msra.mxu0 0
  %3685 = vmatprep.subr.bf16.mxu0 0
  %3686 = vmatpush1.bf16.msra.mxu0 0
  %3687 = vmatprep.subr.bf16.mxu0 0
  %3688 = vmatpush1.bf16.msra.mxu0 0
  %3689 = vmatprep.subr.bf16.mxu0 0
  %3690 = vmatpush1.bf16.msra.mxu0 0
  %3691 = vmatprep.subr.bf16.mxu0 0
  %3692 = vmatpush1.bf16.msra.mxu0 0
  %3693 = vmatprep.mubr.bf16.mxu0 0
  %3694 = vmatmul.mubr.bf16.gmra.mrb[0].mxu0 %v3609
  %v3695 = vpop.f32.mrb[0].mxu0
  %v3696 = vadd.f32 0.0, %v3695
  %v3697 = vpop.f32.mrb[0].mxu0
  %v3698 = vpop.f32.mrb[0].mxu0
  %v3699 = vpop.f32.mrb[0].mxu0
  %3700 = vdwg.mxu0
  %v3701 = vadd.f32 %v3594, %v3655
  %v3702 = vadd.f32 %v3595, %v3657
  %v3703 = vadd.f32 %v3596, %v3696
  %v3704 = vld [vmem:[%s10] sm:$0xff]
  %v3705 = vld [vmem:[%s10 + $0x8] sm:$0xf]
  %v3706 = vld [vmem:[%s10 + $0xc] sm:$0xff]
  %v3707 = vld [vmem:[%s10 + $0x14] sm:$0xf]
  %v3708 = vld [vmem:[%s10 + $0x18] sm:$0xff]
  %v3709 = vld [vmem:[%s10 + $0x20] sm:$0xf]
  %v3710 = vld [vmem:[%s10 + $0x24] sm:$0xff]
  %v3711 = vld [vmem:[%s10 + $0x2c] sm:$0xf]
  %v3712 = vld [vmem:[%s10 + $0x30] sm:$0xff]
  %v3713 = vld [vmem:[%s10 + $0x38] sm:$0xf]
  %v3714 = vld [vmem:[%s10 + $0x3c] sm:$0xff]
  %v3715 = vld [vmem:[%s10 + $0x44] sm:$0xf]
  %v3716 = vld [vmem:[%s10 + $0x48] sm:$0xff]
  %v3717 = vld [vmem:[%s10 + $0x50] sm:$0xf]
  %v3718 = vld [vmem:[%s10 + $0x54] sm:$0xff]
  %v3719 = vld [vmem:[%s10 + $0x5c] sm:$0xf]
  %v3720 = vld [vmem:[%s10 + $0x60] sm:$0xff]
  %v3721 = vld [vmem:[%s10 + $0x68] sm:$0xf]
  %v3722 = vld [vmem:[%s10 + $0x6c] sm:$0xff]
  %v3723 = vld [vmem:[%s10 + $0x74] sm:$0xf]
  %v3724 = vld [vmem:[%s10 + $0x78] sm:$0xff]
  %v3725 = vld [vmem:[%s10 + $0x80] sm:$0xf]
  %v3726 = vld [vmem:[%s10 + $0x84] sm:$0xff]
  %v3727 = vld [vmem:[%s10 + $0x8c] sm:$0xf]
  %v3728 = vld [vmem:[%s10 + $0x90] sm:$0xff]
  %v3729 = vld [vmem:[%s10 + $0x98] sm:$0xf]
  %v3730 = vld [vmem:[%s10 + $0x9c] sm:$0xff]
  %v3731 = vld [vmem:[%s10 + $0xa4] sm:$0xf]
  %v3732 = vld [vmem:[%s10 + $0xa8] sm:$0xff]
  %v3733 = vld [vmem:[%s10 + $0xb0] sm:$0xf]
  %v3734 = vld [vmem:[%s10 + $0xb4] sm:$0xff]
  %v3735 = vld [vmem:[%s10 + $0xbc] sm:$0xf]
  %v3768 = vunpack.c.l.b16 %v3704
  %v3769 = vunpack.c.h.b16 %v3704
  %v3770 = vunpack.c.l.b16 %v3705
  %v3771 = vunpack.c.l.b16 %v3706
  %v3772 = vunpack.c.h.b16 %v3706
  %v3773 = vunpack.c.l.b16 %v3707
  %v3774 = vunpack.c.l.b16 %v3708
  %v3775 = vunpack.c.h.b16 %v3708
  %v3776 = vunpack.c.l.b16 %v3709
  %v3777 = vunpack.c.l.b16 %v3710
  %v3778 = vunpack.c.h.b16 %v3710
  %v3779 = vunpack.c.l.b16 %v3711
  %v3780 = vunpack.c.l.b16 %v3712
  %v3781 = vunpack.c.h.b16 %v3712
  %v3782 = vunpack.c.l.b16 %v3713
  %v3783 = vunpack.c.l.b16 %v3714
  %v3784 = vunpack.c.h.b16 %v3714
  %v3785 = vunpack.c.l.b16 %v3715
  %v3786 = vunpack.c.l.b16 %v3716
  %v3787 = vunpack.c.h.b16 %v3716
  %v3788 = vunpack.c.l.b16 %v3717
  %v3789 = vunpack.c.l.b16 %v3718
  %v3790 = vunpack.c.h.b16 %v3718
  %v3791 = vunpack.c.l.b16 %v3719
  %v3792 = vunpack.c.l.b16 %v3720
  %v3793 = vunpack.c.h.b16 %v3720
  %v3794 = vunpack.c.l.b16 %v3721
  %v3795 = vunpack.c.l.b16 %v3722
  %v3796 = vunpack.c.h.b16 %v3722
  %v3797 = vunpack.c.l.b16 %v3723
  %v3798 = vunpack.c.l.b16 %v3724
  %v3799 = vunpack.c.h.b16 %v3724
  %v3800 = vunpack.c.l.b16 %v3725
  %v3801 = vunpack.c.l.b16 %v3726
  %v3802 = vunpack.c.h.b16 %v3726
  %v3803 = vunpack.c.l.b16 %v3727
  %v3804 = vunpack.c.l.b16 %v3728
  %v3805 = vunpack.c.h.b16 %v3728
  %v3806 = vunpack.c.l.b16 %v3729
  %v3807 = vunpack.c.l.b16 %v3730
  %v3808 = vunpack.c.h.b16 %v3730
  %v3809 = vunpack.c.l.b16 %v3731
  %v3810 = vunpack.c.l.b16 %v3732
  %v3811 = vunpack.c.h.b16 %v3732
  %v3812 = vunpack.c.l.b16 %v3733
  %v3813 = vunpack.c.l.b16 %v3734
  %v3814 = vunpack.c.h.b16 %v3734
  %v3815 = vunpack.c.l.b16 %v3735
  %v3816 = vpack.c.b16 %v3771, %v3768
  %v3817 = vpack.c.b16 %v3772, %v3769
  %v3818 = vpack.c.b16 %v3773, %v3770
  %v3819 = vpack.c.b16 %v3777, %v3774
  %v3820 = vpack.c.b16 %v3778, %v3775
  %v3821 = vpack.c.b16 %v3779, %v3776
  %v3822 = vpack.c.b16 %v3783, %v3780
  %v3823 = vpack.c.b16 %v3784, %v3781
  %v3824 = vpack.c.b16 %v3785, %v3782
  %v3825 = vpack.c.b16 %v3789, %v3786
  %v3826 = vpack.c.b16 %v3790, %v3787
  %v3827 = vpack.c.b16 %v3791, %v3788
  %v3828 = vpack.c.b16 %v3795, %v3792
  %v3829 = vpack.c.b16 %v3796, %v3793
  %v3830 = vpack.c.b16 %v3797, %v3794
  %v3831 = vpack.c.b16 %v3801, %v3798
  %v3832 = vpack.c.b16 %v3802, %v3799
  %v3833 = vpack.c.b16 %v3803, %v3800
  %v3834 = vpack.c.b16 %v3807, %v3804
  %v3835 = vpack.c.b16 %v3808, %v3805
  %v3836 = vpack.c.b16 %v3809, %v3806
  %v3837 = vpack.c.b16 %v3813, %v3810
  %v3838 = vpack.c.b16 %v3814, %v3811
  %v3839 = vpack.c.b16 %v3815, %v3812
  %3864 = vmatprep.subr.bf16.mxu0 %v3817
  %3865 = vmatpush1.bf16.msra.mxu0 %v3816
  %3866 = vmatprep.subr.bf16.mxu0 %v3820
  %3867 = vmatpush1.bf16.msra.mxu0 %v3819
  %3868 = vmatprep.subr.bf16.mxu0 %v3823
  %3869 = vmatpush1.bf16.msra.mxu0 %v3822
  %3870 = vmatprep.subr.bf16.mxu0 %v3826
  %3871 = vmatpush1.bf16.msra.mxu0 %v3825
  %3872 = vmatprep.subr.bf16.mxu0 %v3829
  %3873 = vmatpush1.bf16.msra.mxu0 %v3828
  %3874 = vmatprep.subr.bf16.mxu0 %v3832
  %3875 = vmatpush1.bf16.msra.mxu0 %v3831
  %3876 = vmatprep.subr.bf16.mxu0 %v3835
  %3877 = vmatpush1.bf16.msra.mxu0 %v3834
  %3878 = vmatprep.subr.bf16.mxu0 %v3838
  %3879 = vmatpush1.bf16.msra.mxu0 %v3837
  %3880 = vmatprep.subr.bf16.mxu0 0
  %3881 = vmatpush1.bf16.msra.mxu0 0
  %3882 = vmatprep.subr.bf16.mxu0 0
  %3883 = vmatpush1.bf16.msra.mxu0 0
  %3884 = vmatprep.subr.bf16.mxu0 0
  %3885 = vmatpush1.bf16.msra.mxu0 0
  %3886 = vmatprep.subr.bf16.mxu0 0
  %3887 = vmatpush1.bf16.msra.mxu0 0
  %3888 = vmatprep.subr.bf16.mxu0 0
  %3889 = vmatpush1.bf16.msra.mxu0 0
  %3890 = vmatprep.subr.bf16.mxu0 0
  %3891 = vmatpush1.bf16.msra.mxu0 0
  %3892 = vmatprep.subr.bf16.mxu0 0
  %3893 = vmatpush1.bf16.msra.mxu0 0
  %3894 = vmatprep.subr.bf16.mxu0 0
  %3895 = vmatpush1.bf16.msra.mxu0 0
  %3896 = vmatprep.mubr.bf16.mxu0 0
  %3897 = vmatmul.mubr.bf16.gmra.mrb[0].mxu0 %v3379
  %v3898 = vpop.f32.mrb[0].mxu0
  %v3899 = vadd.f32 %v627, %v3898
  %v3900 = vpop.f32.mrb[0].mxu0
  %v3901 = vadd.f32 %v631, %v3900
  %v3902 = vpop.f32.mrb[0].mxu0
  %v3903 = vpop.f32.mrb[0].mxu0
  %3904 = vdwg.mxu0
  %3905 = vmatprep.subr.bf16.mxu0 0
  %3906 = vmatpush1.bf16.msra.mxu0 %v3818
  %3907 = vmatprep.subr.bf16.mxu0 0
  %3908 = vmatpush1.bf16.msra.mxu0 %v3821
  %3909 = vmatprep.subr.bf16.mxu0 0
  %3910 = vmatpush1.bf16.msra.mxu0 %v3824
  %3911 = vmatprep.subr.bf16.mxu0 0
  %3912 = vmatpush1.bf16.msra.mxu0 %v3827
  %3913 = vmatprep.subr.bf16.mxu0 0
  %3914 = vmatpush1.bf16.msra.mxu0 %v3830
  %3915 = vmatprep.subr.bf16.mxu0 0
  %3916 = vmatpush1.bf16.msra.mxu0 %v3833
  %3917 = vmatprep.subr.bf16.mxu0 0
  %3918 = vmatpush1.bf16.msra.mxu0 %v3836
  %3919 = vmatprep.subr.bf16.mxu0 0
  %3920 = vmatpush1.bf16.msra.mxu0 %v3839
  %3921 = vmatprep.subr.bf16.mxu0 0
  %3922 = vmatpush1.bf16.msra.mxu0 0
  %3923 = vmatprep.subr.bf16.mxu0 0
  %3924 = vmatpush1.bf16.msra.mxu0 0
  %3925 = vmatprep.subr.bf16.mxu0 0
  %3926 = vmatpush1.bf16.msra.mxu0 0
  %3927 = vmatprep.subr.bf16.mxu0 0
  %3928 = vmatpush1.bf16.msra.mxu0 0
  %3929 = vmatprep.subr.bf16.mxu0 0
  %3930 = vmatpush1.bf16.msra.mxu0 0
  %3931 = vmatprep.subr.bf16.mxu0 0
  %3932 = vmatpush1.bf16.msra.mxu0 0
  %3933 = vmatprep.subr.bf16.mxu0 0
  %3934 = vmatpush1.bf16.msra.mxu0 0
  %3935 = vmatprep.subr.bf16.mxu0 0
  %3936 = vmatpush1.bf16.msra.mxu0 0
  %3937 = vmatprep.mubr.bf16.mxu0 0
  %3938 = vmatmul.mubr.bf16.gmra.mrb[0].mxu0 %v3379
  %v3939 = vpop.f32.mrb[0].mxu0
  %v3940 = vadd.f32 %v635, %v3939
  %v3941 = vpop.f32.mrb[0].mxu0
  %v3942 = vpop.f32.mrb[0].mxu0
  %v3943 = vpop.f32.mrb[0].mxu0
  %3944 = vdwg.mxu0
  %v3945 = vadd.f32 %v3701, %v3899
  %v3946 = vxor.u32 %v3945, 2147483648
  %v3947 = vmul.f32 %v3946, 1.442695
  %v3948 = vpow.pop %v3947
  %v3949 = vadd.f32 %v3948, 1.0
  %v3950 = vrcp.pop %v3949
  %v3951 = vmul.f32 1.0, %v3950
  %v3952 = vadd.f32 %v3702, %v3901
  %v3953 = vxor.u32 %v3952, 2147483648
  %v3954 = vmul.f32 %v3953, 1.442695
  %v3955 = vpow.pop %v3954
  %v3956 = vadd.f32 %v3955, 1.0
  %v3957 = vrcp.pop %v3956
  %v3958 = vmul.f32 1.0, %v3957
  %v3959 = vmul.f32 %v3951, %v3940
  %v3960 = vadd.f32 %v3703, %v3959
  %v3961 = vtanh.pop %v3960
  %v3962 = vsub.f32 1.0, %v3958
  %v3963 = vmul.f32 %v3962, %v3961
  %v3964 = vmul.f32 %v3958, %v3378
  %v3965 = vadd.f32 %v3963, %v3964
  %v3966 = vpack.c.bf16 %v3965, %v3965
  %v3967 = vld [vmem:[%s12] sm:$0xf]
  %v3968 = vld [vmem:[%s12 + $0x4] sm:$0xf]
  %v3969 = vld [vmem:[%s12 + $0x8] sm:$0xf]
  %v3970 = vld [vmem:[%s12 + $0xc] sm:$0xf]
  %v3971 = vld [vmem:[%s12 + $0x10] sm:$0xf]
  %v3972 = vld [vmem:[%s12 + $0x14] sm:$0xf]
  %v3973 = vld [vmem:[%s12 + $0x18] sm:$0xf]
  %v3974 = vld [vmem:[%s12 + $0x1c] sm:$0xf]
  %v3975 = vld [vmem:[%s12 + $0x20] sm:$0xf]
  %v3976 = vld [vmem:[%s12 + $0x24] sm:$0xf]
  %v3977 = vld [vmem:[%s12 + $0x28] sm:$0xf]
  %v3978 = vld [vmem:[%s12 + $0x2c] sm:$0xf]
  %v3979 = vld [vmem:[%s12 + $0x30] sm:$0xf]
  %v3980 = vld [vmem:[%s12 + $0x34] sm:$0xf]
  %v3981 = vld [vmem:[%s12 + $0x38] sm:$0xf]
  %v3982 = vld [vmem:[%s12 + $0x3c] sm:$0xf]
  %v3999 = vunpack.c.l.b16 %v3967
  %v4000 = vunpack.c.l.b16 %v3968
  %v4001 = vunpack.c.l.b16 %v3969
  %v4002 = vunpack.c.l.b16 %v3970
  %v4003 = vunpack.c.l.b16 %v3971
  %v4004 = vunpack.c.l.b16 %v3972
  %v4005 = vunpack.c.l.b16 %v3973
  %v4006 = vunpack.c.l.b16 %v3974
  %v4007 = vunpack.c.l.b16 %v3975
  %v4008 = vunpack.c.l.b16 %v3976
  %v4009 = vunpack.c.l.b16 %v3977
  %v4010 = vunpack.c.l.b16 %v3978
  %v4011 = vunpack.c.l.b16 %v3979
  %v4012 = vunpack.c.l.b16 %v3980
  %v4013 = vunpack.c.l.b16 %v3981
  %v4014 = vunpack.c.l.b16 %v3982
  %v4015 = vpack.c.b16 %v4000, %v3999
  %v4016 = vpack.c.b16 %v4002, %v4001
  %v4017 = vpack.c.b16 %v4004, %v4003
  %v4018 = vpack.c.b16 %v4006, %v4005
  %v4019 = vpack.c.b16 %v4008, %v4007
  %v4020 = vpack.c.b16 %v4010, %v4009
  %v4021 = vpack.c.b16 %v4012, %v4011
  %v4022 = vpack.c.b16 %v4014, %v4013
  %4031 = vmatprep.subr.bf16.mxu0 0
  %4032 = vmatpush1.bf16.msra.mxu0 %v4015
  %4033 = vmatprep.subr.bf16.mxu0 0
  %4034 = vmatpush1.bf16.msra.mxu0 %v4016
  %4035 = vmatprep.subr.bf16.mxu0 0
  %4036 = vmatpush1.bf16.msra.mxu0 %v4017
  %4037 = vmatprep.subr.bf16.mxu0 0
  %4038 = vmatpush1.bf16.msra.mxu0 %v4018
  %4039 = vmatprep.subr.bf16.mxu0 0
  %4040 = vmatpush1.bf16.msra.mxu0 %v4019
  %4041 = vmatprep.subr.bf16.mxu0 0
  %4042 = vmatpush1.bf16.msra.mxu0 %v4020
  %4043 = vmatprep.subr.bf16.mxu0 0
  %4044 = vmatpush1.bf16.msra.mxu0 %v4021
  %4045 = vmatprep.subr.bf16.mxu0 0
  %4046 = vmatpush1.bf16.msra.mxu0 %v4022
  %4047 = vmatprep.subr.bf16.mxu0 0
  %4048 = vmatpush1.bf16.msra.mxu0 0
  %4049 = vmatprep.subr.bf16.mxu0 0
  %4050 = vmatpush1.bf16.msra.mxu0 0
  %4051 = vmatprep.subr.bf16.mxu0 0
  %4052 = vmatpush1.bf16.msra.mxu0 0
  %4053 = vmatprep.subr.bf16.mxu0 0
  %4054 = vmatpush1.bf16.msra.mxu0 0
  %4055 = vmatprep.subr.bf16.mxu0 0
  %4056 = vmatpush1.bf16.msra.mxu0 0
  %4057 = vmatprep.subr.bf16.mxu0 0
  %4058 = vmatpush1.bf16.msra.mxu0 0
  %4059 = vmatprep.subr.bf16.mxu0 0
  %4060 = vmatpush1.bf16.msra.mxu0 0
  %4061 = vmatprep.subr.bf16.mxu0 0
  %4062 = vmatpush1.bf16.msra.mxu0 0
  %4063 = vmatprep.mubr.bf16.mxu0 0
  %4064 = vmatmul.mubr.bf16.gmra.mrb[0].mxu0 %v3966
  %v4065 = vpop.f32.mrb[0].mxu0
  %v4066 = vadd.f32 %v644, %v4065
  %v4067 = vpop.f32.mrb[0].mxu0
  %v4068 = vpop.f32.mrb[0].mxu0
  %v4069 = vpop.f32.mrb[0].mxu0
  %4070 = vdwg.mxu0
  %v4071 = vtanh.pop %v4066
  %v4072 = vpack.c.bf16 %v4071, %v4071
  %v4073 = vld [vmem:[%s14] sm:$0xf]
  %v4074 = vld [vmem:[%s14 + $0x4] sm:$0xf]
  %v4075 = vld [vmem:[%s14 + $0x8] sm:$0xf]
  %v4076 = vld [vmem:[%s14 + $0xc] sm:$0xf]
  %v4077 = vld [vmem:[%s14 + $0x10] sm:$0xf]
  %v4078 = vld [vmem:[%s14 + $0x14] sm:$0xf]
  %v4079 = vld [vmem:[%s14 + $0x18] sm:$0xf]
  %v4080 = vld [vmem:[%s14 + $0x1c] sm:$0xf]
  %v4081 = vld [vmem:[%s14 + $0x20] sm:$0xf]
  %v4082 = vld [vmem:[%s14 + $0x24] sm:$0xf]
  %v4083 = vld [vmem:[%s14 + $0x28] sm:$0xf]
  %v4084 = vld [vmem:[%s14 + $0x2c] sm:$0xf]
  %v4085 = vld [vmem:[%s14 + $0x30] sm:$0xf]
  %v4086 = vld [vmem:[%s14 + $0x34] sm:$0xf]
  %v4087 = vld [vmem:[%s14 + $0x38] sm:$0xf]
  %v4088 = vld [vmem:[%s14 + $0x3c] sm:$0xf]
  %v4105 = vunpack.c.l.b16 %v4073
  %v4106 = vunpack.c.l.b16 %v4074
  %v4107 = vunpack.c.l.b16 %v4075
  %v4108 = vunpack.c.l.b16 %v4076
  %v4109 = vunpack.c.l.b16 %v4077
  %v4110 = vunpack.c.l.b16 %v4078
  %v4111 = vunpack.c.l.b16 %v4079
  %v4112 = vunpack.c.l.b16 %v4080
  %v4113 = vunpack.c.l.b16 %v4081
  %v4114 = vunpack.c.l.b16 %v4082
  %v4115 = vunpack.c.l.b16 %v4083
  %v4116 = vunpack.c.l.b16 %v4084
  %v4117 = vunpack.c.l.b16 %v4085
  %v4118 = vunpack.c.l.b16 %v4086
  %v4119 = vunpack.c.l.b16 %v4087
  %v4120 = vunpack.c.l.b16 %v4088
  %v4121 = vpack.c.b16 %v4106, %v4105
  %v4122 = vpack.c.b16 %v4108, %v4107
  %v4123 = vpack.c.b16 %v4110, %v4109
  %v4124 = vpack.c.b16 %v4112, %v4111
  %v4125 = vpack.c.b16 %v4114, %v4113
  %v4126 = vpack.c.b16 %v4116, %v4115
  %v4127 = vpack.c.b16 %v4118, %v4117
  %v4128 = vpack.c.b16 %v4120, %v4119
  %4137 = vmatprep.subr.bf16.mxu0 0
  %4138 = vmatpush1.bf16.msra.mxu0 %v4121
  %4139 = vmatprep.subr.bf16.mxu0 0
  %4140 = vmatpush1.bf16.msra.mxu0 %v4122
  %4141 = vmatprep.subr.bf16.mxu0 0
  %4142 = vmatpush1.bf16.msra.mxu0 %v4123
  %4143 = vmatprep.subr.bf16.mxu0 0
  %4144 = vmatpush1.bf16.msra.mxu0 %v4124
  %4145 = vmatprep.subr.bf16.mxu0 0
  %4146 = vmatpush1.bf16.msra.mxu0 %v4125
  %4147 = vmatprep.subr.bf16.mxu0 0
  %4148 = vmatpush1.bf16.msra.mxu0 %v4126
  %4149 = vmatprep.subr.bf16.mxu0 0
  %4150 = vmatpush1.bf16.msra.mxu0 %v4127
  %4151 = vmatprep.subr.bf16.mxu0 0
  %4152 = vmatpush1.bf16.msra.mxu0 %v4128
  %4153 = vmatprep.subr.bf16.mxu0 0
  %4154 = vmatpush1.bf16.msra.mxu0 0
  %4155 = vmatprep.subr.bf16.mxu0 0
  %4156 = vmatpush1.bf16.msra.mxu0 0
  %4157 = vmatprep.subr.bf16.mxu0 0
  %4158 = vmatpush1.bf16.msra.mxu0 0
  %4159 = vmatprep.subr.bf16.mxu0 0
  %4160 = vmatpush1.bf16.msra.mxu0 0
  %4161 = vmatprep.subr.bf16.mxu0 0
  %4162 = vmatpush1.bf16.msra.mxu0 0
  %4163 = vmatprep.subr.bf16.mxu0 0
  %4164 = vmatpush1.bf16.msra.mxu0 0
  %4165 = vmatprep.subr.bf16.mxu0 0
  %4166 = vmatpush1.bf16.msra.mxu0 0
  %4167 = vmatprep.subr.bf16.mxu0 0
  %4168 = vmatpush1.bf16.msra.mxu0 0
  %4169 = vmatprep.mubr.bf16.mxu0 0
  %4170 = vmatmul.mubr.bf16.gmra.mrb[0].mxu0 %v4072
  %v4171 = vpop.f32.mrb[0].mxu0
  %v4172 = vadd.f32 %v651, %v4171
  %v4173 = vpop.f32.mrb[0].mxu0
  %v4174 = vpop.f32.mrb[0].mxu0
  %v4175 = vpop.f32.mrb[0].mxu0
  %4176 = vdwg.mxu0
  %4177 = vst.msk [vmem:[%s20 + $0x28] sm:$0xff] %vm283, %v4172
  %4178 = vst [vmem:[#allocation2] sm:$0xff] %v3965
  %4179 = vst.msk [vmem:[#allocation3] sm:$0xff] %vm283, %v4172
  // Predicated region
  $region86: #{gru_teach_forward.1} parent=0 // pred_check
    %p4180 = pneg %p70
  $region87: #{gru_teach_forward.1} parent=0 // pred_check_branch
    %4182 = sbr.rel (%p4180) target = $region89
  $region88: #{gru_teach_forward.1} parent=0 // pred_region
    %v4183 = vld [vmem:[%s16] sm:$0xf]
    %v4184 = vld [vmem:[%s16 + $0x4] sm:$0xf]
    %v4185 = vld [vmem:[%s16 + $0x8] sm:$0xf]
    %v4186 = vld [vmem:[%s16 + $0xc] sm:$0xf]
    %v4187 = vld [vmem:[%s16 + $0x10] sm:$0xf]
    %v4188 = vld [vmem:[%s16 + $0x14] sm:$0xf]
    %v4189 = vld [vmem:[%s16 + $0x18] sm:$0xf]
    %v4190 = vld [vmem:[%s16 + $0x1c] sm:$0xf]
    %v4191 = vld [vmem:[%s16 + $0x20] sm:$0xf]
    %v4192 = vld [vmem:[%s16 + $0x24] sm:$0xf]
    %v4193 = vld [vmem:[%s16 + $0x28] sm:$0xf]
    %v4194 = vld [vmem:[%s16 + $0x2c] sm:$0xf]
    %v4195 = vld [vmem:[%s16 + $0x30] sm:$0xf]
    %v4196 = vld [vmem:[%s16 + $0x34] sm:$0xf]
    %v4197 = vld [vmem:[%s16 + $0x38] sm:$0xf]
    %v4198 = vld [vmem:[%s16 + $0x3c] sm:$0xf]
    %v4199 = vld [vmem:[%s17] sm:$0x1]
    %v4201 = vlaneseq
    %v4202 = vshrl.u32 %v4201, 7
    %v4203 = vsub.s32 0, %v4202
    %v4204 = vrot.slane %v4199, %v4203
    %v4222 = vunpack.c.l.b16 %v4183
    %v4223 = vunpack.c.l.b16 %v4184
    %v4224 = vunpack.c.l.b16 %v4185
    %v4225 = vunpack.c.l.b16 %v4186
    %v4226 = vunpack.c.l.b16 %v4187
    %v4227 = vunpack.c.l.b16 %v4188
    %v4228 = vunpack.c.l.b16 %v4189
    %v4229 = vunpack.c.l.b16 %v4190
    %v4230 = vunpack.c.l.b16 %v4191
    %v4231 = vunpack.c.l.b16 %v4192
    %v4232 = vunpack.c.l.b16 %v4193
    %v4233 = vunpack.c.l.b16 %v4194
    %v4234 = vunpack.c.l.b16 %v4195
    %v4235 = vunpack.c.l.b16 %v4196
    %v4236 = vunpack.c.l.b16 %v4197
    %v4237 = vunpack.c.l.b16 %v4198
    %v4238 = vpack.c.b16 %v4223, %v4222
    %v4239 = vpack.c.b16 %v4225, %v4224
    %v4240 = vpack.c.b16 %v4227, %v4226
    %v4241 = vpack.c.b16 %v4229, %v4228
    %v4242 = vpack.c.b16 %v4231, %v4230
    %v4243 = vpack.c.b16 %v4233, %v4232
    %v4244 = vpack.c.b16 %v4235, %v4234
    %v4245 = vpack.c.b16 %v4237, %v4236
    %4254 = vmatprep.subr.bf16.mxu0 0
    %4255 = vmatpush1.bf16.msra.mxu0 %v4238
    %4256 = vmatprep.subr.bf16.mxu0 0
    %4257 = vmatpush1.bf16.msra.mxu0 %v4239
    %4258 = vmatprep.subr.bf16.mxu0 0
    %4259 = vmatpush1.bf16.msra.mxu0 %v4240
    %4260 = vmatprep.subr.bf16.mxu0 0
    %4261 = vmatpush1.bf16.msra.mxu0 %v4241
    %4262 = vmatprep.subr.bf16.mxu0 0
    %4263 = vmatpush1.bf16.msra.mxu0 %v4242
    %4264 = vmatprep.subr.bf16.mxu0 0
    %4265 = vmatpush1.bf16.msra.mxu0 %v4243
    %4266 = vmatprep.subr.bf16.mxu0 0
    %4267 = vmatpush1.bf16.msra.mxu0 %v4244
    %4268 = vmatprep.subr.bf16.mxu0 0
    %4269 = vmatpush1.bf16.msra.mxu0 %v4245
    %4270 = vmatprep.subr.bf16.mxu0 0
    %4271 = vmatpush1.bf16.msra.mxu0 0
    %4272 = vmatprep.subr.bf16.mxu0 0
    %4273 = vmatpush1.bf16.msra.mxu0 0
    %4274 = vmatprep.subr.bf16.mxu0 0
    %4275 = vmatpush1.bf16.msra.mxu0 0
    %4276 = vmatprep.subr.bf16.mxu0 0
    %4277 = vmatpush1.bf16.msra.mxu0 0
    %4278 = vmatprep.subr.bf16.mxu0 0
    %4279 = vmatpush1.bf16.msra.mxu0 0
    %4280 = vmatprep.subr.bf16.mxu0 0
    %4281 = vmatpush1.bf16.msra.mxu0 0
    %4282 = vmatprep.subr.bf16.mxu0 0
    %4283 = vmatpush1.bf16.msra.mxu0 0
    %4284 = vmatprep.subr.bf16.mxu0 0
    %4285 = vmatpush1.bf16.msra.mxu0 0
    %4286 = vmatprep.mubr.bf16.mxu0 0
    %4287 = vmatmul.mubr.bf16.gmra.mrb[0].mxu0 %v3966
    %v4288 = vpop.f32.mrb[0].mxu0
    %v4289 = vadd.f32 %v4204, %v4288
    %v4290 = vpop.f32.mrb[0].mxu0
    %v4291 = vpop.f32.mrb[0].mxu0
    %v4292 = vpop.f32.mrb[0].mxu0
    %4293 = vdwg.mxu0
    %v4294 = vmax.f32 %v4289, 0.0
    %v4295 = vld [vmem:[%s18] sm:$0x1]
    %v4297 = vlaneseq
    %v4298 = vshrl.u32 %v4297, 7
    %v4299 = vsub.s32 0, %v4298
    %v4300 = vrot.slane %v4295, %v4299
    %v4302 = vmul.f32 %v4294, %v4300
    %vm4303 = vcmask 408576
    %v4304 = vsel %vm4303, %v4302, 0.0
    %4305 = vadd.xlane.f32.xlu0 %v4304
    %v4306 = vpop.xlane.xlu0 %4305
    %v4307 = vld [vmem:[#allocation5] sm:$0x1]
    %v4309 = vlaneseq
    %v4310 = vshrl.u32 %v4309, 7
    %v4311 = vsub.s32 0, %v4310
    %v4312 = vrot.slane %v4307, %v4311
    %v4314 = vadd.f32 %v4306, %v4312
    %vm4315 = vcmask 7168
    %4316 = vst.msk [vmem:[%s21] sm:$0xff] %vm4315, %v4314
  $region89: #{gru_teach_forward.1} parent=0 // pred_fallthru
    _
  // Predicated region
  $region90: #{gru_teach_forward.1} parent=0 // pred_check
    _
  $region91: #{gru_teach_forward.1} parent=0 // pred_check_branch
    %4318 = sbr.rel (0) target = $region93
  $region92: #{gru_teach_forward.1} parent=0 // pred_region
    _
  $region93: #{gru_teach_forward.1} parent=0 // pred_fallthru
    _
  // Predicated region
  $region94: #{gru_teach_forward.1} parent=0 // pred_check
    _
  $region95: #{gru_teach_forward.1} parent=0 // pred_check_branch
    %4320 = sbr.rel (0) target = $region97
  $region96: #{gru_teach_forward.1} parent=0 // pred_region
    _
  $region97: #{gru_teach_forward.1} parent=0 // pred_fallthru
    _
  // Predicated region
  $region98: #{gru_teach_forward.1} parent=0 // pred_check
    _
  $region99: #{gru_teach_forward.1} parent=0 // pred_check_branch
    %4322 = sbr.rel (0) target = $region101
  $region100: #{gru_teach_forward.1} parent=0 // pred_region
    _
  $region101: #{gru_teach_forward.1} parent=0 // pred_fallthru
    _
  // Predicated region
  $region102: #{gru_teach_forward.1} parent=0 // pred_check
    _
  $region103: #{gru_teach_forward.1} parent=0 // pred_check_branch
    %4324 = sbr.rel (0) target = $region105
  $region104: #{gru_teach_forward.1} parent=0 // pred_region
    _
  $region105: #{gru_teach_forward.1} parent=0 // pred_fallthru
    _

</llo_original>
